<compile_context>
chip_gen: v7x
topology: tpu7x:2x2x1
jax: 0.10.0
libtpu: 0.0.40
codegen_flags: <defaults>
</compile_context>

<pallas_src>
import functools

import jax
import jax.numpy as jnp
from jax.experimental import pallas as pl
from jax.experimental.pallas import tpu as pltpu

BN_EPS = 1e-5
LANE = 128


def _round_up(x, m):
    return (x + m - 1) // m * m


# ----------------------------- Pallas kernels ------------------------------

def _mm_bias_kernel(x_ref, w_ref, b_ref, o_ref, *, relu):
    acc = jnp.dot(x_ref[...], w_ref[...], preferred_element_type=jnp.float32)
    acc = acc + b_ref[...]
    if relu:
        acc = jnp.maximum(acc, 0.0)
    o_ref[...] = acc.astype(o_ref.dtype)


def matmul_bias(x, w_pad, b_pad, *, relu, out_dtype=jnp.bfloat16, tile_m=512):
    """y = [relu](x @ w + b); w_pad/b_pad are pre-padded (Kp, Np)/(1, Np) at init."""
    M, K = x.shape
    Kp, Np = w_pad.shape
    assert K <= Kp
    x = x.astype(jnp.bfloat16)
    if K < Kp:
        x = jnp.pad(x, ((0, 0), (0, Kp - K)))
    tile_m = min(tile_m, _round_up(M, 16))
    Mp = _round_up(M, tile_m)
    if Mp > M:
        x = jnp.pad(x, ((0, Mp - M), (0, 0)))
    out = pl.pallas_call(
        functools.partial(_mm_bias_kernel, relu=relu),
        out_shape=jax.ShapeDtypeStruct((Mp, Np), out_dtype),
        grid=(Mp // tile_m,),
        in_specs=[
            pl.BlockSpec((tile_m, Kp), lambda i: (i, 0)),
            pl.BlockSpec((Kp, Np), lambda i: (0, 0)),   # weight resident across M tiles
            pl.BlockSpec((1, Np), lambda i: (0, 0)),
        ],
        out_specs=pl.BlockSpec((tile_m, Np), lambda i: (i, 0)),
        compiler_params=pltpu.CompilerParams(dimension_semantics=("parallel",)),
    )(x, w_pad, b_pad)
    return out[:M] if Mp > M else out


def _block_kernel(x_ref, w1_ref, b1_ref, w2_ref, b2_ref, w3_ref, b3_ref,
                  wa_ref, ba_ref, out_ref, aux_ref, y1pad_ref, *, H, W):
    """ModifiedBlock (1x1 -> 3x3 -> 1x1 + residual + ReLU) + aux 1x1 conv, fully
    fused; the 3x3 conv uses a zero-haloed flat copy of y1 in VMEM scratch."""
    HW = H * W
    rows = y1pad_ref.shape[0]
    halo = (rows - HW) // 2
    cbp = w2_ref.shape[-1]

    x_bf = x_ref[0]                                  # (HW, Cp) bf16
    x_f32 = x_bf.astype(jnp.float32)

    # conv1 (1x1) + bn1 + relu
    y1 = jnp.dot(x_bf, w1_ref[...], preferred_element_type=jnp.float32) + b1_ref[...]
    y1 = jnp.maximum(y1, 0.0)

    # stash y1 inside a zero halo so row-shifts (+/-W) read zeros out of range;
    # only the halo bands need re-zeroing (interior is fully overwritten).
    y1pad_ref[:halo, :] = jnp.zeros((halo, cbp), jnp.float32)
    y1pad_ref[halo + HW:, :] = jnp.zeros((rows - halo - HW, cbp), jnp.float32)
    y1pad_ref[halo:halo + HW, :] = y1

    # conv2 (3x3, padding=1) + bn2 + relu as 9 shifted matmuls on the flat tile.
    col = jax.lax.broadcasted_iota(jnp.int32, (HW, cbp), 0) % W
    ok_left = col >= 1                               # column j-1 exists
    ok_right = col <= W - 2                          # column j+1 exists
    acc2 = jnp.zeros((HW, cbp), jnp.float32)
    for dh in (-1, 0, 1):
        for dw in (-1, 0, 1):
            s = dh * W + dw
            tap = y1pad_ref[halo + s:halo + s + HW, :]
            if dw == -1:
                tap = jnp.where(ok_left, tap, 0.0)
            elif dw == 1:
                tap = jnp.where(ok_right, tap, 0.0)
            t = (dh + 1) * 3 + (dw + 1)
            acc2 = acc2 + jnp.dot(tap.astype(jnp.bfloat16), w2_ref[t],
                                  preferred_element_type=jnp.float32)
    y2 = jnp.maximum(acc2 + b2_ref[...], 0.0).astype(jnp.bfloat16)

    # conv3 (1x1) + bn3 + residual + relu
    y3 = jnp.dot(y2, w3_ref[...], preferred_element_type=jnp.float32)
    y3 = jnp.maximum(y3 + b3_ref[...] + x_f32, 0.0)
    y3_bf = y3.astype(jnp.bfloat16)                  # cast once, reuse for out + aux
    out_ref[0] = y3_bf

    # aux 1x1 conv + bn + relu (fused, reuses y3 while still in VMEM)
    aux = jnp.dot(y3_bf, wa_ref[...], preferred_element_type=jnp.float32) + ba_ref[...]
    aux_ref[0] = jnp.maximum(aux, 0.0).astype(aux_ref.dtype)


def modified_block_fused(x, p, H, W):
    """x: (N, H*W, Cp) bf16 -> (block_out, aux_out), one pallas_call per block."""
    n, hw, cp = x.shape
    cbp = p["w2"].shape[-1]
    ap = p["wa"].shape[-1]
    halo = _round_up(W + 1, 8)
    out, aux = pl.pallas_call(
        functools.partial(_block_kernel, H=H, W=W),
        out_shape=(jax.ShapeDtypeStruct((n, hw, cp), jnp.bfloat16),
                   jax.ShapeDtypeStruct((n, hw, ap), jnp.bfloat16)),
        grid=(n,),
        in_specs=[
            pl.BlockSpec((1, hw, cp), lambda b: (b, 0, 0)),
            pl.BlockSpec(p["w1"].shape, lambda b: (0, 0)),
            pl.BlockSpec(p["b1"].shape, lambda b: (0, 0)),
            pl.BlockSpec(p["w2"].shape, lambda b: (0, 0, 0)),
            pl.BlockSpec(p["b2"].shape, lambda b: (0, 0)),
            pl.BlockSpec(p["w3"].shape, lambda b: (0, 0)),
            pl.BlockSpec(p["b3"].shape, lambda b: (0, 0)),
            pl.BlockSpec(p["wa"].shape, lambda b: (0, 0)),
            pl.BlockSpec(p["ba"].shape, lambda b: (0, 0)),
        ],
        out_specs=(pl.BlockSpec((1, hw, cp), lambda b: (b, 0, 0)),
                   pl.BlockSpec((1, hw, ap), lambda b: (b, 0, 0))),
        scratch_shapes=[pltpu.VMEM((hw + 2 * halo, cbp), jnp.float32)],
        compiler_params=pltpu.CompilerParams(dimension_semantics=("parallel",)),
    )(x, p["w1"], p["b1"], p["w2"], p["b2"], p["w3"], p["b3"], p["wa"], p["ba"])
    return out, aux


def conv_transpose_s2(x_nhwc, w_comb, b_comb, cout, *, relu, out_dtype=jnp.bfloat16):
    """ConvTranspose2d(k=3, s=2, p=1, output_padding=1) as ONE matmul over the
    4 output-pixel parities (no zero-filled dilation, no 9x im2col)."""
    n, h, w, c = x_nhwc.shape
    xp = jnp.pad(x_nhwc, ((0, 0), (0, 1), (0, 1), (0, 0)))
    taps = [xp[:, dh:dh + h, dw:dw + w, :] for dh in (0, 1) for dw in (0, 1)]
    xt = jnp.concatenate(taps, axis=-1).reshape(n * h * w, 4 * c)
    y = matmul_bias(xt, w_comb, b_comb, relu=relu, out_dtype=out_dtype)
    y = y[:, :4 * cout].reshape(n, h, w, 2, 2, cout)          # (n, i, j, ph, pw, c)
    y = jnp.transpose(y, (0, 1, 3, 2, 4, 5)).reshape(n, 2 * h, 2 * w, cout)
    return y


# --------------------------- parameter handling ------------------------------

class KeyGen:
    def __init__(self, key):
        self.key = key

    def __call__(self):
        self.key, k = jax.random.split(self.key)
        return k


def _w(kg, shape, scale=0.1):
    return scale * jax.random.normal(kg(), shape, dtype=jnp.float32)


def init_bn(kg, c):
    gamma = 1.0 + 0.05 * jax.random.normal(kg(), (c,), jnp.float32)
    beta = 0.05 * jax.random.normal(kg(), (c,), jnp.float32)
    mean = 0.05 * jax.random.normal(kg(), (c,), jnp.float32)
    var = 1.0 + 0.1 * jax.random.uniform(kg(), (c,), jnp.float32)
    return gamma, beta, mean, var


def fold_bn(w_mat, b_conv, gamma, beta, mean, var):
    # Inference-mode BatchNorm folded into the preceding conv (matmul form).
    scale = gamma / jnp.sqrt(var + BN_EPS)
    return w_mat * scale[None, :], b_conv * scale + (beta - mean * scale)


def pad_wb(w, b, kp, np_):
    """Zero-pad (K,N) weight / (N,) bias to lane-aligned shapes; bf16 weight, f32 bias."""
    k, n_ = w.shape
    wp = jnp.zeros((kp, np_), jnp.float32).at[:k, :n_].set(w)
    bp = jnp.zeros((1, np_), jnp.float32).at[:, :n_].set(b[None, :])
    return wp.astype(jnp.bfloat16), bp


def convT_combined(wt, b):
    """torch ConvTranspose2d weight (Cin, Cout, 3, 3) -> one (4*Cin, 4*Cout) matrix
    producing all 4 output parities from the 4 shifted input taps."""
    cin, cout = wt.shape[0], wt.shape[1]

    def ksel(par, d):   # kernel index used by output parity `par` for input offset `d`
        if par == 0:
            return 1 if d == 0 else None
        return 2 if d == 0 else 0

    wk = jnp.zeros((4, cin, 4, cout), jnp.float32)
    for ph in (0, 1):
        for pw in (0, 1):
            p = 2 * ph + pw
            for dh in (0, 1):
                for dw in (0, 1):
                    kh, kw = ksel(ph, dh), ksel(pw, dw)
                    if kh is None or kw is None:
                        continue
                    wk = wk.at[2 * dh + dw, :, p, :].set(wt[:, :, kh, kw])
    return wk.reshape(4 * cin, 4 * cout), jnp.tile(b, 4)


def init_modified_block(kg, c, cp, cbp, aux_c, ap):
    cb = c // 4
    w1, b1 = fold_bn(_w(kg, (c, cb)), _w(kg, (cb,)), *init_bn(kg, cb))
    w1p, b1p = pad_wb(w1, b1, cp, cbp)
    # 3x3 conv: torch weight (Cout, Cin, kh, kw) -> tap-major (9, Cin, Cout), BN folded.
    w2t = _w(kg, (cb, cb, 3, 3))
    w2m = jnp.transpose(w2t, (2, 3, 1, 0)).reshape(9 * cb, cb)
    w2m, b2 = fold_bn(w2m, _w(kg, (cb,)), *init_bn(kg, cb))
    w2p = jnp.zeros((9, cbp, cbp), jnp.float32).at[:, :cb, :cb].set(
        w2m.reshape(9, cb, cb)).astype(jnp.bfloat16)
    b2p = jnp.zeros((1, cbp), jnp.float32).at[:, :cb].set(b2[None, :])
    w3, b3 = fold_bn(_w(kg, (cb, c)), _w(kg, (c,)), *init_bn(kg, c))
    w3p, b3p = pad_wb(w3, b3, cbp, cp)
    wa, ba = fold_bn(_w(kg, (c, aux_c)), _w(kg, (aux_c,)), *init_bn(kg, aux_c))
    wap, bap = pad_wb(wa, ba, cp, ap)
    return dict(w1=w1p, b1=b1p, w2=w2p, b2=b2p, w3=w3p, b3=b3p, wa=wap, ba=bap)


def init_head(kg, num_aux, aux_c, ap):
    head_in = aux_c * num_aux
    w1 = _w(kg, (head_in, 128))
    b1 = _w(kg, (128,))
    # scatter real rows to the padded positions of the concatenated aux features
    w1p = jnp.zeros((num_aux * ap, 128), jnp.float32)
    for m in range(num_aux):
        w1p = w1p.at[m * ap:m * ap + aux_c, :].set(w1[m * aux_c:(m + 1) * aux_c, :])
    head = dict(w1=w1p.astype(jnp.bfloat16), b1=b1[None, :])
    wc1, bc1 = convT_combined(_w(kg, (128, 64, 3, 3)), _w(kg, (64,)))
    head["wt1"], head["bt1"] = pad_wb(wc1, bc1, wc1.shape[0],
                                      _round_up(wc1.shape[1], LANE))
    wc2, bc2 = convT_combined(_w(kg, (64, 1, 3, 3)), _w(kg, (1,)))
    head["wt2"], head["bt2"] = pad_wb(wc2, bc2, wc2.shape[0],
                                      _round_up(wc2.shape[1], LANE))
    return head


def init_params(key, *, in_ch=3, c_feat=32, num_aux_modules=4, aux_channels=8):
    kg = KeyGen(key)
    cp = _round_up(c_feat, LANE)
    cbp = _round_up(c_feat // 4, LANE)
    ap = _round_up(aux_channels, LANE)
    bw, bb = pad_wb(_w(kg, (in_ch, c_feat)), _w(kg, (c_feat,)),
                    _round_up(in_ch, LANE), cp)
    # TODO(synk): original module mixes 1024-ch and 2048-ch ModifiedBlocks on a single
    # 2048-ch resnet152 feature map, which is not runnable as written; here all blocks
    # share one (scaled-down) channel width so the sequential forward is well defined.
    blocks = [init_modified_block(kg, c_feat, cp, cbp, aux_channels, ap)
              for _ in range(num_aux_modules)]
    head = init_head(kg, num_aux_modules, aux_channels, ap)
    return dict(backbone=dict(w=bw, b=bb), blocks=blocks, head=head)


# ------------------------------ forward pass --------------------------------

def backbone_fwd(x_nhwc, p):
    # TODO(synk): pretrained resnet152 trunk replaced by a deterministic stand-in
    # (8x8 average pool + 1x1 conv + ReLU); no checkpoint loading.
    n, h, w, c = x_nhwc.shape
    s = 8
    pooled = x_nhwc.reshape(n, h // s, s, w // s, s, c).mean(axis=(2, 4))
    y = matmul_bias(pooled.reshape(-1, c), p["w"], p["b"], relu=True)
    return y.reshape(n, (h // s) * (w // s), -1), h // s, w // s


def depth_net_fwd(x_nchw, params):
    x = jnp.transpose(x_nchw, (0, 2, 3, 1))                 # NCHW -> NHWC
    feat, h, w = backbone_fwd(x, params["backbone"])        # (N, H*W, Cp) bf16
    n = feat.shape[0]
    aux_feats = []
    for blk in params["blocks"]:
        feat, aux = modified_block_fused(feat, blk, h, w)
        aux_feats.append(aux)
    y = jnp.concatenate(aux_feats, axis=-1)                 # == torch.cat(dim=1)
    hp = params["head"]
    y = matmul_bias(y.reshape(n * h * w, -1), hp["w1"], hp["b1"], relu=True)
    y = y.reshape(n, h, w, hp["w1"].shape[1])
    y = conv_transpose_s2(y, hp["wt1"], hp["bt1"], cout=64, relu=True)
    y = conv_transpose_s2(y, hp["wt2"], hp["bt2"], cout=1, relu=False,
                          out_dtype=jnp.float32)
    return jnp.transpose(y, (0, 3, 1, 2))                   # NHWC -> NCHW depth map


# --------------------------------- main --------------------------------------

if __name__ == "__main__":
    key = jax.random.PRNGKey(0)
    kparam, kx = jax.random.split(key)
    params = init_params(kparam, in_ch=3, c_feat=32, num_aux_modules=4, aux_channels=8)
    x = jax.random.normal(kx, (2, 3, 32, 32), dtype=jnp.float32)   # NCHW, like torch

    depth = jax.jit(depth_net_fwd)(x, params)
    depth = jax.block_until_ready(depth)
    assert depth.shape == (2, 1, 16, 16), depth.shape
    assert jnp.isfinite(depth).all()
    print("KERNEL_OK")
</pallas_src>

<mosaic_0001>
module attributes {stable_mosaic.version = 11 : i64} {
  func.func @_mm_bias_kernel(%arg0: i32, %arg1: memref<32x128xbf16, #tpu.memory_space<vmem>>, %arg2: memref<128x128xbf16, #tpu.memory_space<vmem>>, %arg3: memref<1x128xf32, #tpu.memory_space<vmem>>, %arg4: memref<32x128xbf16, #tpu.memory_space<vmem>>) attributes {dimension_semantics = [#tpu.dimension_semantics<parallel>], iteration_bounds = array<i64: 1>, scalar_prefetch = 0 : i64, scratch_operands = 0 : i64, tpu.core_type = #tpu.core_type<tc>, window_params = [{transform_indices = @transform_0, window_bounds = array<i64: 32, 128>}, {pipeline_mode = #tpu.pipeline_mode<synchronous>, transform_indices = @transform_1, window_bounds = array<i64: 128, 128>}, {pipeline_mode = #tpu.pipeline_mode<synchronous>, transform_indices = @transform_2, window_bounds = array<i64: 1, 128>}, {transform_indices = @transform_3, window_bounds = array<i64: 32, 128>}]} {
    %c0 = arith.constant 0 : index
    %c0_0 = arith.constant 0 : index
    %0 = vector.load %arg1[%c0, %c0_0] : memref<32x128xbf16, #tpu.memory_space<vmem>>, vector<32x128xbf16>
    %c0_1 = arith.constant 0 : index
    %c0_2 = arith.constant 0 : index
    %1 = vector.load %arg2[%c0_1, %c0_2] : memref<128x128xbf16, #tpu.memory_space<vmem>>, vector<128x128xbf16>
    %cst = arith.constant dense<0.000000e+00> : vector<32x128xf32>
    %2 = tpu.matmul %0, %1, %cst {dimension_numbers = #tpu.dot_dimension_numbers<[1], [0], [0], [1], [0, 0, 1, 1], [], []>} : vector<32x128xbf16>, vector<128x128xbf16>, vector<32x128xf32> -> vector<32x128xf32>
    %c0_3 = arith.constant 0 : index
    %c0_4 = arith.constant 0 : index
    %3 = vector.load %arg3[%c0_3, %c0_4] : memref<1x128xf32, #tpu.memory_space<vmem>>, vector<1x128xf32>
    %4 = vector.broadcast %3 : vector<1x128xf32> to vector<32x128xf32>
    %5 = arith.addf %2, %4 : vector<32x128xf32>
    %cst_5 = arith.constant 0.000000e+00 : f32
    %6 = vector.broadcast %cst_5 : f32 to vector<32x128xf32>
    %7 = arith.maximumf %5, %6 : vector<32x128xf32>
    %8 = arith.truncf %7 : vector<32x128xf32> to vector<32x128xbf16>
    %c0_6 = arith.constant 0 : index
    %c0_7 = arith.constant 0 : index
    %9 = vector.load %arg4[%c0_6, %c0_7] : memref<32x128xbf16, #tpu.memory_space<vmem>>, vector<32x128xbf16>
    tpu.vector_store %arg4[%c0_6, %c0_7], %8 {strides = array<i32>} : memref<32x128xbf16, #tpu.memory_space<vmem>>, vector<32x128xbf16>,
    return
  }
  func.func @transform_0(%arg0: i32) -> (i32, i32) {
    %c0_i32 = arith.constant 0 : i32
    %c0_i32_0 = arith.constant 0 : i32
    return %arg0, %c0_i32 : i32, i32
  }
  func.func @transform_1(%arg0: i32) -> (i32, i32) {
    %c0_i32 = arith.constant 0 : i32
    %c0_i32_0 = arith.constant 0 : i32
    %c0_i32_1 = arith.constant 0 : i32
    return %c0_i32, %c0_i32_0 : i32, i32
  }
  func.func @transform_2(%arg0: i32) -> (i32, i32) {
    %c0_i32 = arith.constant 0 : i32
    %c0_i32_0 = arith.constant 0 : i32
    %c0_i32_1 = arith.constant 0 : i32
    return %c0_i32, %c0_i32_0 : i32, i32
  }
  func.func @transform_3(%arg0: i32) -> (i32, i32) {
    %c0_i32 = arith.constant 0 : i32
    %c0_i32_0 = arith.constant 0 : i32
    return %arg0, %c0_i32 : i32, i32
  }
}

module attributes {stable_mosaic.version = 11 : i64} {
  func.func @_block_kernel(%arg0: i32, %arg1: memref<1x16x128xbf16, #tpu.memory_space<vmem>>, %arg2: memref<128x128xbf16, #tpu.memory_space<vmem>>, %arg3: memref<1x128xf32, #tpu.memory_space<vmem>>, %arg4: memref<9x128x128xbf16, #tpu.memory_space<vmem>>, %arg5: memref<1x128xf32, #tpu.memory_space<vmem>>, %arg6: memref<128x128xbf16, #tpu.memory_space<vmem>>, %arg7: memref<1x128xf32, #tpu.memory_space<vmem>>, %arg8: memref<128x128xbf16, #tpu.memory_space<vmem>>, %arg9: memref<1x128xf32, #tpu.memory_space<vmem>>, %arg10: memref<1x16x128xbf16, #tpu.memory_space<vmem>>, %arg11: memref<1x16x128xbf16, #tpu.memory_space<vmem>>, %arg12: memref<32x128xf32, #tpu.memory_space<vmem>>) attributes {dimension_semantics = [#tpu.dimension_semantics<parallel>], iteration_bounds = array<i64: 2>, scalar_prefetch = 0 : i64, scratch_operands = 1 : i64, tpu.core_type = #tpu.core_type<tc>, window_params = [{transform_indices = @transform_0, window_bounds = array<i64: 1, 16, 128>}, {pipeline_mode = #tpu.pipeline_mode<synchronous>, transform_indices = @transform_1, window_bounds = array<i64: 128, 128>}, {pipeline_mode = #tpu.pipeline_mode<synchronous>, transform_indices = @transform_2, window_bounds = array<i64: 1, 128>}, {pipeline_mode = #tpu.pipeline_mode<synchronous>, transform_indices = @transform_3, window_bounds = array<i64: 9, 128, 128>}, {pipeline_mode = #tpu.pipeline_mode<synchronous>, transform_indices = @transform_4, window_bounds = array<i64: 1, 128>}, {pipeline_mode = #tpu.pipeline_mode<synchronous>, transform_indices = @transform_5, window_bounds = array<i64: 128, 128>}, {pipeline_mode = #tpu.pipeline_mode<synchronous>, transform_indices = @transform_6, window_bounds = array<i64: 1, 128>}, {pipeline_mode = #tpu.pipeline_mode<synchronous>, transform_indices = @transform_7, window_bounds = array<i64: 128, 128>}, {pipeline_mode = #tpu.pipeline_mode<synchronous>, transform_indices = @transform_8, window_bounds = array<i64: 1, 128>}, {transform_indices = @transform_9, window_bounds = array<i64: 1, 16, 128>}, {transform_indices = @transform_10, window_bounds = array<i64: 1, 16, 128>}]} {
    %c0 = arith.constant 0 : index
    %c0_0 = arith.constant 0 : index
    %c0_1 = arith.constant 0 : index
    %0 = vector.load %arg1[%c0, %c0_0, %c0_1] : memref<1x16x128xbf16, #tpu.memory_space<vmem>>, vector<1x16x128xbf16>
    %1 = vector.shape_cast %0 : vector<1x16x128xbf16> to vector<16x128xbf16>
    %2 = arith.extf %1 : vector<16x128xbf16> to vector<16x128xf32>
    %c0_2 = arith.constant 0 : index
    %c0_3 = arith.constant 0 : index
    %3 = vector.load %arg2[%c0_2, %c0_3] : memref<128x128xbf16, #tpu.memory_space<vmem>>, vector<128x128xbf16>
    %cst = arith.constant dense<0.000000e+00> : vector<16x128xf32>
    %4 = tpu.matmul %1, %3, %cst {dimension_numbers = #tpu.dot_dimension_numbers<[1], [0], [0], [1], [0, 0, 1, 1], [], []>} : vector<16x128xbf16>, vector<128x128xbf16>, vector<16x128xf32> -> vector<16x128xf32>
    %c0_4 = arith.constant 0 : index
    %c0_5 = arith.constant 0 : index
    %5 = vector.load %arg3[%c0_4, %c0_5] : memref<1x128xf32, #tpu.memory_space<vmem>>, vector<1x128xf32>
    %6 = vector.broadcast %5 : vector<1x128xf32> to vector<16x128xf32>
    %7 = arith.addf %4, %6 : vector<16x128xf32>
    %cst_6 = arith.constant 0.000000e+00 : f32
    %8 = vector.broadcast %cst_6 : f32 to vector<16x128xf32>
    %9 = arith.maximumf %7, %8 : vector<16x128xf32>
    %cst_7 = arith.constant 0.000000e+00 : f32
    %10 = vector.broadcast %cst_7 : f32 to vector<8x128xf32>
    %c0_8 = arith.constant 0 : index
    %c0_9 = arith.constant 0 : index
    %11 = vector.load %arg12[%c0_8, %c0_9] : memref<32x128xf32, #tpu.memory_space<vmem>>, vector<8x128xf32>
    tpu.vector_store %arg12[%c0_8, %c0_9], %10 {strides = array<i32>} : memref<32x128xf32, #tpu.memory_space<vmem>>, vector<8x128xf32>,
    %cst_10 = arith.constant 0.000000e+00 : f32
    %12 = vector.broadcast %cst_10 : f32 to vector<8x128xf32>
    %c24 = arith.constant 24 : index
    %c0_11 = arith.constant 0 : index
    %13 = vector.load %arg12[%c24, %c0_11] : memref<32x128xf32, #tpu.memory_space<vmem>>, vector<8x128xf32>
    tpu.vector_store %arg12[%c24, %c0_11], %12 {strides = array<i32>} : memref<32x128xf32, #tpu.memory_space<vmem>>, vector<8x128xf32>,
    %c8 = arith.constant 8 : index
    %c0_12 = arith.constant 0 : index
    %14 = vector.load %arg12[%c8, %c0_12] : memref<32x128xf32, #tpu.memory_space<vmem>>, vector<16x128xf32>
    tpu.vector_store %arg12[%c8, %c0_12], %9 {strides = array<i32>} : memref<32x128xf32, #tpu.memory_space<vmem>>, vector<16x128xf32>,
    %15 = tpu.iota {dimensions = array<i32: 0>} : vector<16x128xi32>
    %c4_i32 = arith.constant 4 : i32
    %c0_i32 = arith.constant 0 : i32
    %16 = arith.cmpi eq, %c4_i32, %c0_i32 : i32
    %c1_i32 = arith.constant 1 : i32
    %17 = arith.select %16, %c1_i32, %c4_i32 : i32
    %18 = vector.broadcast %17 : i32 to vector<16x128xi32>
    %19 = arith.remsi %15, %18 : vector<16x128xi32>
    %c0_i32_13 = arith.constant 0 : i32
    %20 = vector.broadcast %c0_i32_13 : i32 to vector<16x128xi32>
    %21 = arith.cmpi ne, %19, %20 : vector<16x128xi32>
    %c0_i32_14 = arith.constant 0 : i32
    %22 = vector.broadcast %c0_i32_14 : i32 to vector<16x128xi32>
    %23 = arith.cmpi slt, %19, %22 : vector<16x128xi32>
    %c0_i32_15 = arith.constant 0 : i32
    %24 = arith.cmpi slt, %17, %c0_i32_15 : i32
    %25 = vector.broadcast %24 : i1 to vector<16x128xi1>
    %26 = vector.broadcast %25 : vector<16x128xi1> to vector<16x128xi1>
    %27 = arith.xori %23, %26 : vector<16x128xi1>
    %28 = arith.andi %27, %21 : vector<16x128xi1>
    %29 = vector.broadcast %17 : i32 to vector<16x128xi32>
    %30 = arith.addi %19, %29 : vector<16x128xi32>
    %31 = arith.select %28, %30, %19 : vector<16x128xi1>, vector<16x128xi32>
    %c1_i32_16 = arith.constant 1 : i32
    %32 = vector.broadcast %c1_i32_16 : i32 to vector<16x128xi32>
    %33 = arith.cmpi sge, %31, %32 : vector<16x128xi32>
    %c2_i32 = arith.constant 2 : i32
    %34 = vector.broadcast %c2_i32 : i32 to vector<16x128xi32>
    %35 = arith.cmpi sle, %31, %34 : vector<16x128xi32>
    %cst_17 = arith.constant 0.000000e+00 : f32
    %36 = vector.broadcast %cst_17 : f32 to vector<16x128xf32>
    %c3 = arith.constant 3 : index
    %c0_18 = arith.constant 0 : index
    %37 = vector.load %arg12[%c3, %c0_18] : memref<32x128xf32, #tpu.memory_space<vmem>>, vector<16x128xf32>
    %cst_19 = arith.constant 0.000000e+00 : f32
    %38 = vector.broadcast %cst_19 : f32 to vector<16x128xf32>
    %39 = arith.select %33, %37, %38 : vector<16x128xi1>, vector<16x128xf32>
    %40 = arith.truncf %39 : vector<16x128xf32> to vector<16x128xbf16>
    %c0_20 = arith.constant 0 : index
    %c0_21 = arith.constant 0 : index
    %c0_22 = arith.constant 0 : index
    %41 = vector.load %arg4[%c0_20, %c0_21, %c0_22] : memref<9x128x128xbf16, #tpu.memory_space<vmem>>, vector<1x128x128xbf16>
    %42 = vector.shape_cast %41 : vector<1x128x128xbf16> to vector<128x128xbf16>
    %cst_23 = arith.constant dense<0.000000e+00> : vector<16x128xf32>
    %43 = tpu.matmul %40, %42, %cst_23 {dimension_numbers = #tpu.dot_dimension_numbers<[1], [0], [0], [1], [0, 0, 1, 1], [], []>} : vector<16x128xbf16>, vector<128x128xbf16>, vector<16x128xf32> -> vector<16x128xf32>
    %44 = arith.addf %36, %43 : vector<16x128xf32>
    %c4 = arith.constant 4 : index
    %c0_24 = arith.constant 0 : index
    %45 = vector.load %arg12[%c4, %c0_24] : memref<32x128xf32, #tpu.memory_space<vmem>>, vector<16x128xf32>
    %46 = arith.truncf %45 : vector<16x128xf32> to vector<16x128xbf16>
    %c1 = arith.constant 1 : index
    %c0_25 = arith.constant 0 : index
    %c0_26 = arith.constant 0 : index
    %47 = vector.load %arg4[%c1, %c0_25, %c0_26] : memref<9x128x128xbf16, #tpu.memory_space<vmem>>, vector<1x128x128xbf16>
    %48 = vector.shape_cast %47 : vector<1x128x128xbf16> to vector<128x128xbf16>
    %cst_27 = arith.constant dense<0.000000e+00> : vector<16x128xf32>
    %49 = tpu.matmul %46, %48, %cst_27 {dimension_numbers = #tpu.dot_dimension_numbers<[1], [0], [0], [1], [0, 0, 1, 1], [], []>} : vector<16x128xbf16>, vector<128x128xbf16>, vector<16x128xf32> -> vector<16x128xf32>
    %50 = arith.addf %44, %49 : vector<16x128xf32>
    %c5 = arith.constant 5 : index
    %c0_28 = arith.constant 0 : index
    %51 = vector.load %arg12[%c5, %c0_28] : memref<32x128xf32, #tpu.memory_space<vmem>>, vector<16x128xf32>
    %cst_29 = arith.constant 0.000000e+00 : f32
    %52 = vector.broadcast %cst_29 : f32 to vector<16x128xf32>
    %53 = arith.select %35, %51, %52 : vector<16x128xi1>, vector<16x128xf32>
    %54 = arith.truncf %53 : vector<16x128xf32> to vector<16x128xbf16>
    %c2 = arith.constant 2 : index
    %c0_30 = arith.constant 0 : index
    %c0_31 = arith.constant 0 : index
    %55 = vector.load %arg4[%c2, %c0_30, %c0_31] : memref<9x128x128xbf16, #tpu.memory_space<vmem>>, vector<1x128x128xbf16>
    %56 = vector.shape_cast %55 : vector<1x128x128xbf16> to vector<128x128xbf16>
    %cst_32 = arith.constant dense<0.000000e+00> : vector<16x128xf32>
    %57 = tpu.matmul %54, %56, %cst_32 {dimension_numbers = #tpu.dot_dimension_numbers<[1], [0], [0], [1], [0, 0, 1, 1], [], []>} : vector<16x128xbf16>, vector<128x128xbf16>, vector<16x128xf32> -> vector<16x128xf32>
    %58 = arith.addf %50, %57 : vector<16x128xf32>
    %c7 = arith.constant 7 : index
    %c0_33 = arith.constant 0 : index
    %59 = vector.load %arg12[%c7, %c0_33] : memref<32x128xf32, #tpu.memory_space<vmem>>, vector<16x128xf32>
    %cst_34 = arith.constant 0.000000e+00 : f32
    %60 = vector.broadcast %cst_34 : f32 to vector<16x128xf32>
    %61 = arith.select %33, %59, %60 : vector<16x128xi1>, vector<16x128xf32>
    %62 = arith.truncf %61 : vector<16x128xf32> to vector<16x128xbf16>
    %c3_35 = arith.constant 3 : index
    %c0_36 = arith.constant 0 : index
    %c0_37 = arith.constant 0 : index
    %63 = vector.load %arg4[%c3_35, %c0_36, %c0_37] : memref<9x128x128xbf16, #tpu.memory_space<vmem>>, vector<1x128x128xbf16>
    %64 = vector.shape_cast %63 : vector<1x128x128xbf16> to vector<128x128xbf16>
    %cst_38 = arith.constant dense<0.000000e+00> : vector<16x128xf32>
    %65 = tpu.matmul %62, %64, %cst_38 {dimension_numbers = #tpu.dot_dimension_numbers<[1], [0], [0], [1], [0, 0, 1, 1], [], []>} : vector<16x128xbf16>, vector<128x128xbf16>, vector<16x128xf32> -> vector<16x128xf32>
    %66 = arith.addf %58, %65 : vector<16x128xf32>
    %c8_39 = arith.constant 8 : index
    %c0_40 = arith.constant 0 : index
    %67 = vector.load %arg12[%c8_39, %c0_40] : memref<32x128xf32, #tpu.memory_space<vmem>>, vector<16x128xf32>
    %68 = arith.truncf %67 : vector<16x128xf32> to vector<16x128xbf16>
    %c4_41 = arith.constant 4 : index
    %c0_42 = arith.constant 0 : index
    %c0_43 = arith.constant 0 : index
    %69 = vector.load %arg4[%c4_41, %c0_42, %c0_43] : memref<9x128x128xbf16, #tpu.memory_space<vmem>>, vector<1x128x128xbf16>
    %70 = vector.shape_cast %69 : vector<1x128x128xbf16> to vector<128x128xbf16>
    %cst_44 = arith.constant dense<0.000000e+00> : vector<16x128xf32>
    %71 = tpu.matmul %68, %70, %cst_44 {dimension_numbers = #tpu.dot_dimension_numbers<[1], [0], [0], [1], [0, 0, 1, 1], [], []>} : vector<16x128xbf16>, vector<128x128xbf16>, vector<16x128xf32> -> vector<16x128xf32>
    %72 = arith.addf %66, %71 : vector<16x128xf32>
    %c9 = arith.constant 9 : index
    %c0_45 = arith.constant 0 : index
    %73 = vector.load %arg12[%c9, %c0_45] : memref<32x128xf32, #tpu.memory_space<vmem>>, vector<16x128xf32>
    %cst_46 = arith.constant 0.000000e+00 : f32
    %74 = vector.broadcast %cst_46 : f32 to vector<16x128xf32>
    %75 = arith.select %35, %73, %74 : vector<16x128xi1>, vector<16x128xf32>
    %76 = arith.truncf %75 : vector<16x128xf32> to vector<16x128xbf16>
    %c5_47 = arith.constant 5 : index
    %c0_48 = arith.constant 0 : index
    %c0_49 = arith.constant 0 : index
    %77 = vector.load %arg4[%c5_47, %c0_48, %c0_49] : memref<9x128x128xbf16, #tpu.memory_space<vmem>>, vector<1x128x128xbf16>
    %78 = vector.shape_cast %77 : vector<1x128x128xbf16> to vector<128x128xbf16>
    %cst_50 = arith.constant dense<0.000000e+00> : vector<16x128xf32>
    %79 = tpu.matmul %76, %78, %cst_50 {dimension_numbers = #tpu.dot_dimension_numbers<[1], [0], [0], [1], [0, 0, 1, 1], [], []>} : vector<16x128xbf16>, vector<128x128xbf16>, vector<16x128xf32> -> vector<16x128xf32>
    %80 = arith.addf %72, %79 : vector<16x128xf32>
    %c11 = arith.constant 11 : index
    %c0_51 = arith.constant 0 : index
    %81 = vector.load %arg12[%c11, %c0_51] : memref<32x128xf32, #tpu.memory_space<vmem>>, vector<16x128xf32>
    %cst_52 = arith.constant 0.000000e+00 : f32
    %82 = vector.broadcast %cst_52 : f32 to vector<16x128xf32>
    %83 = arith.select %33, %81, %82 : vector<16x128xi1>, vector<16x128xf32>
    %84 = arith.truncf %83 : vector<16x128xf32> to vector<16x128xbf16>
    %c6 = arith.constant 6 : index
    %c0_53 = arith.constant 0 : index
    %c0_54 = arith.constant 0 : index
    %85 = vector.load %arg4[%c6, %c0_53, %c0_54] : memref<9x128x128xbf16, #tpu.memory_space<vmem>>, vector<1x128x128xbf16>
    %86 = vector.shape_cast %85 : vector<1x128x128xbf16> to vector<128x128xbf16>
    %cst_55 = arith.constant dense<0.000000e+00> : vector<16x128xf32>
    %87 = tpu.matmul %84, %86, %cst_55 {dimension_numbers = #tpu.dot_dimension_numbers<[1], [0], [0], [1], [0, 0, 1, 1], [], []>} : vector<16x128xbf16>, vector<128x128xbf16>, vector<16x128xf32> -> vector<16x128xf32>
    %88 = arith.addf %80, %87 : vector<16x128xf32>
    %c12 = arith.constant 12 : index
    %c0_56 = arith.constant 0 : index
    %89 = vector.load %arg12[%c12, %c0_56] : memref<32x128xf32, #tpu.memory_space<vmem>>, vector<16x128xf32>
    %90 = arith.truncf %89 : vector<16x128xf32> to vector<16x128xbf16>
    %c7_57 = arith.constant 7 : index
    %c0_58 = arith.constant 0 : index
    %c0_59 = arith.constant 0 : index
    %91 = vector.load %arg4[%c7_57, %c0_58, %c0_59] : memref<9x128x128xbf16, #tpu.memory_space<vmem>>, vector<1x128x128xbf16>
    %92 = vector.shape_cast %91 : vector<1x128x128xbf16> to vector<128x128xbf16>
    %cst_60 = arith.constant dense<0.000000e+00> : vector<16x128xf32>
    %93 = tpu.matmul %90, %92, %cst_60 {dimension_numbers = #tpu.dot_dimension_numbers<[1], [0], [0], [1], [0, 0, 1, 1], [], []>} : vector<16x128xbf16>, vector<128x128xbf16>, vector<16x128xf32> -> vector<16x128xf32>
    %94 = arith.addf %88, %93 : vector<16x128xf32>
    %c13 = arith.constant 13 : index
    %c0_61 = arith.constant 0 : index
    %95 = vector.load %arg12[%c13, %c0_61] : memref<32x128xf32, #tpu.memory_space<vmem>>, vector<16x128xf32>
    %cst_62 = arith.constant 0.000000e+00 : f32
    %96 = vector.broadcast %cst_62 : f32 to vector<16x128xf32>
    %97 = arith.select %35, %95, %96 : vector<16x128xi1>, vector<16x128xf32>
    %98 = arith.truncf %97 : vector<16x128xf32> to vector<16x128xbf16>
    %c8_63 = arith.constant 8 : index
    %c0_64 = arith.constant 0 : index
    %c0_65 = arith.constant 0 : index
    %99 = vector.load %arg4[%c8_63, %c0_64, %c0_65] : memref<9x128x128xbf16, #tpu.memory_space<vmem>>, vector<1x128x128xbf16>
    %100 = vector.shape_cast %99 : vector<1x128x128xbf16> to vector<128x128xbf16>
    %cst_66 = arith.constant dense<0.000000e+00> : vector<16x128xf32>
    %101 = tpu.matmul %98, %100, %cst_66 {dimension_numbers = #tpu.dot_dimension_numbers<[1], [0], [0], [1], [0, 0, 1, 1], [], []>} : vector<16x128xbf16>, vector<128x128xbf16>, vector<16x128xf32> -> vector<16x128xf32>
    %102 = arith.addf %94, %101 : vector<16x128xf32>
    %c0_67 = arith.constant 0 : index
    %c0_68 = arith.constant 0 : index
    %103 = vector.load %arg5[%c0_67, %c0_68] : memref<1x128xf32, #tpu.memory_space<vmem>>, vector<1x128xf32>
    %104 = vector.broadcast %103 : vector<1x128xf32> to vector<16x128xf32>
    %105 = arith.addf %102, %104 : vector<16x128xf32>
    %cst_69 = arith.constant 0.000000e+00 : f32
    %106 = vector.broadcast %cst_69 : f32 to vector<16x128xf32>
    %107 = arith.maximumf %105, %106 : vector<16x128xf32>
    %108 = arith.truncf %107 : vector<16x128xf32> to vector<16x128xbf16>
    %c0_70 = arith.constant 0 : index
    %c0_71 = arith.constant 0 : index
    %109 = vector.load %arg6[%c0_70, %c0_71] : memref<128x128xbf16, #tpu.memory_space<vmem>>, vector<128x128xbf16>
    %cst_72 = arith.constant dense<0.000000e+00> : vector<16x128xf32>
    %110 = tpu.matmul %108, %109, %cst_72 {dimension_numbers = #tpu.dot_dimension_numbers<[1], [0], [0], [1], [0, 0, 1, 1], [], []>} : vector<16x128xbf16>, vector<128x128xbf16>, vector<16x128xf32> -> vector<16x128xf32>
    %c0_73 = arith.constant 0 : index
    %c0_74 = arith.constant 0 : index
    %111 = vector.load %arg7[%c0_73, %c0_74] : memref<1x128xf32, #tpu.memory_space<vmem>>, vector<1x128xf32>
    %112 = vector.broadcast %111 : vector<1x128xf32> to vector<16x128xf32>
    %113 = arith.addf %110, %112 : vector<16x128xf32>
    %114 = arith.addf %113, %2 : vector<16x128xf32>
    %cst_75 = arith.constant 0.000000e+00 : f32
    %115 = vector.broadcast %cst_75 : f32 to vector<16x128xf32>
    %116 = arith.maximumf %114, %115 : vector<16x128xf32>
    %117 = arith.truncf %116 : vector<16x128xf32> to vector<16x128xbf16>
    %c0_76 = arith.constant 0 : index
    %c0_77 = arith.constant 0 : index
    %c0_78 = arith.constant 0 : index
    %118 = vector.load %arg10[%c0_76, %c0_77, %c0_78] : memref<1x16x128xbf16, #tpu.memory_space<vmem>>, vector<1x16x128xbf16>
    %119 = vector.shape_cast %118 : vector<1x16x128xbf16> to vector<16x128xbf16>
    %120 = vector.shape_cast %117 : vector<16x128xbf16> to vector<1x16x128xbf16>
    tpu.vector_store %arg10[%c0_76, %c0_77, %c0_78], %120 {strides = array<i32>} : memref<1x16x128xbf16, #tpu.memory_space<vmem>>, vector<1x16x128xbf16>,
    %c0_79 = arith.constant 0 : index
    %c0_80 = arith.constant 0 : index
    %121 = vector.load %arg8[%c0_79, %c0_80] : memref<128x128xbf16, #tpu.memory_space<vmem>>, vector<128x128xbf16>
    %cst_81 = arith.constant dense<0.000000e+00> : vector<16x128xf32>
    %122 = tpu.matmul %117, %121, %cst_81 {dimension_numbers = #tpu.dot_dimension_numbers<[1], [0], [0], [1], [0, 0, 1, 1], [], []>} : vector<16x128xbf16>, vector<128x128xbf16>, vector<16x128xf32> -> vector<16x128xf32>
    %c0_82 = arith.constant 0 : index
    %c0_83 = arith.constant 0 : index
    %123 = vector.load %arg9[%c0_82, %c0_83] : memref<1x128xf32, #tpu.memory_space<vmem>>, vector<1x128xf32>
    %124 = vector.broadcast %123 : vector<1x128xf32> to vector<16x128xf32>
    %125 = arith.addf %122, %124 : vector<16x128xf32>
    %cst_84 = arith.constant 0.000000e+00 : f32
    %126 = vector.broadcast %cst_84 : f32 to vector<16x128xf32>
    %127 = arith.maximumf %125, %126 : vector<16x128xf32>
    %128 = arith.truncf %127 : vector<16x128xf32> to vector<16x128xbf16>
    %c0_85 = arith.constant 0 : index
    %c0_86 = arith.constant 0 : index
    %c0_87 = arith.constant 0 : index
    %129 = vector.load %arg11[%c0_85, %c0_86, %c0_87] : memref<1x16x128xbf16, #tpu.memory_space<vmem>>, vector<1x16x128xbf16>
    %130 = vector.shape_cast %129 : vector<1x16x128xbf16> to vector<16x128xbf16>
    %131 = vector.shape_cast %128 : vector<16x128xbf16> to vector<1x16x128xbf16>
    tpu.vector_store %arg11[%c0_85, %c0_86, %c0_87], %131 {strides = array<i32>} : memref<1x16x128xbf16, #tpu.memory_space<vmem>>, vector<1x16x128xbf16>,
    return
  }
  func.func @transform_0(%arg0: i32) -> (i32, i32, i32) {
    %c0_i32 = arith.constant 0 : i32
    %c0_i32_0 = arith.constant 0 : i32
    %c0_i32_1 = arith.constant 0 : i32
    return %arg0, %c0_i32, %c0_i32_0 : i32, i32, i32
  }
  func.func @transform_1(%arg0: i32) -> (i32, i32) {
    %c0_i32 = arith.constant 0 : i32
    %c0_i32_0 = arith.constant 0 : i32
    %c0_i32_1 = arith.constant 0 : i32
    return %c0_i32, %c0_i32_0 : i32, i32
  }
  func.func @transform_2(%arg0: i32) -> (i32, i32) {
    %c0_i32 = arith.constant 0 : i32
    %c0_i32_0 = arith.constant 0 : i32
    %c0_i32_1 = arith.constant 0 : i32
    return %c0_i32, %c0_i32_0 : i32, i32
  }
  func.func @transform_3(%arg0: i32) -> (i32, i32, i32) {
    %c0_i32 = arith.constant 0 : i32
    %c0_i32_0 = arith.constant 0 : i32
    %c0_i32_1 = arith.constant 0 : i32
    %c0_i32_2 = arith.constant 0 : i32
    return %c0_i32, %c0_i32_0, %c0_i32_1 : i32, i32, i32
  }
  func.func @transform_4(%arg0: i32) -> (i32, i32) {
    %c0_i32 = arith.constant 0 : i32
    %c0_i32_0 = arith.constant 0 : i32
    %c0_i32_1 = arith.constant 0 : i32
    return %c0_i32, %c0_i32_0 : i32, i32
  }
  func.func @transform_5(%arg0: i32) -> (i32, i32) {
    %c0_i32 = arith.constant 0 : i32
    %c0_i32_0 = arith.constant 0 : i32
    %c0_i32_1 = arith.constant 0 : i32
    return %c0_i32, %c0_i32_0 : i32, i32
  }
  func.func @transform_6(%arg0: i32) -> (i32, i32) {
    %c0_i32 = arith.constant 0 : i32
    %c0_i32_0 = arith.constant 0 : i32
    %c0_i32_1 = arith.constant 0 : i32
    return %c0_i32, %c0_i32_0 : i32, i32
  }
  func.func @transform_7(%arg0: i32) -> (i32, i32) {
    %c0_i32 = arith.constant 0 : i32
    %c0_i32_0 = arith.constant 0 : i32
    %c0_i32_1 = arith.constant 0 : i32
    return %c0_i32, %c0_i32_0 : i32, i32
  }
  func.func @transform_8(%arg0: i32) -> (i32, i32) {
    %c0_i32 = arith.constant 0 : i32
    %c0_i32_0 = arith.constant 0 : i32
    %c0_i32_1 = arith.constant 0 : i32
    return %c0_i32, %c0_i32_0 : i32, i32
  }
  func.func @transform_9(%arg0: i32) -> (i32, i32, i32) {
    %c0_i32 = arith.constant 0 : i32
    %c0_i32_0 = arith.constant 0 : i32
    %c0_i32_1 = arith.constant 0 : i32
    return %arg0, %c0_i32, %c0_i32_0 : i32, i32, i32
  }
  func.func @transform_10(%arg0: i32) -> (i32, i32, i32) {
    %c0_i32 = arith.constant 0 : i32
    %c0_i32_0 = arith.constant 0 : i32
    %c0_i32_1 = arith.constant 0 : i32
    return %arg0, %c0_i32, %c0_i32_0 : i32, i32, i32
  }
}

module attributes {stable_mosaic.version = 11 : i64} {
  func.func @_block_kernel(%arg0: i32, %arg1: memref<1x16x128xbf16, #tpu.memory_space<vmem>>, %arg2: memref<128x128xbf16, #tpu.memory_space<vmem>>, %arg3: memref<1x128xf32, #tpu.memory_space<vmem>>, %arg4: memref<9x128x128xbf16, #tpu.memory_space<vmem>>, %arg5: memref<1x128xf32, #tpu.memory_space<vmem>>, %arg6: memref<128x128xbf16, #tpu.memory_space<vmem>>, %arg7: memref<1x128xf32, #tpu.memory_space<vmem>>, %arg8: memref<128x128xbf16, #tpu.memory_space<vmem>>, %arg9: memref<1x128xf32, #tpu.memory_space<vmem>>, %arg10: memref<1x16x128xbf16, #tpu.memory_space<vmem>>, %arg11: memref<1x16x128xbf16, #tpu.memory_space<vmem>>, %arg12: memref<32x128xf32, #tpu.memory_space<vmem>>) attributes {dimension_semantics = [#tpu.dimension_semantics<parallel>], iteration_bounds = array<i64: 2>, scalar_prefetch = 0 : i64, scratch_operands = 1 : i64, tpu.core_type = #tpu.core_type<tc>, window_params = [{transform_indices = @transform_0, window_bounds = array<i64: 1, 16, 128>}, {pipeline_mode = #tpu.pipeline_mode<synchronous>, transform_indices = @transform_1, window_bounds = array<i64: 128, 128>}, {pipeline_mode = #tpu.pipeline_mode<synchronous>, transform_indices = @transform_2, window_bounds = array<i64: 1, 128>}, {pipeline_mode = #tpu.pipeline_mode<synchronous>, transform_indices = @transform_3, window_bounds = array<i64: 9, 128, 128>}, {pipeline_mode = #tpu.pipeline_mode<synchronous>, transform_indices = @transform_4, window_bounds = array<i64: 1, 128>}, {pipeline_mode = #tpu.pipeline_mode<synchronous>, transform_indices = @transform_5, window_bounds = array<i64: 128, 128>}, {pipeline_mode = #tpu.pipeline_mode<synchronous>, transform_indices = @transform_6, window_bounds = array<i64: 1, 128>}, {pipeline_mode = #tpu.pipeline_mode<synchronous>, transform_indices = @transform_7, window_bounds = array<i64: 128, 128>}, {pipeline_mode = #tpu.pipeline_mode<synchronous>, transform_indices = @transform_8, window_bounds = array<i64: 1, 128>}, {transform_indices = @transform_9, window_bounds = array<i64: 1, 16, 128>}, {transform_indices = @transform_10, window_bounds = array<i64: 1, 16, 128>}]} {
    %c0 = arith.constant 0 : index
    %c0_0 = arith.constant 0 : index
    %c0_1 = arith.constant 0 : index
    %0 = vector.load %arg1[%c0, %c0_0, %c0_1] : memref<1x16x128xbf16, #tpu.memory_space<vmem>>, vector<1x16x128xbf16>
    %1 = vector.shape_cast %0 : vector<1x16x128xbf16> to vector<16x128xbf16>
    %2 = arith.extf %1 : vector<16x128xbf16> to vector<16x128xf32>
    %c0_2 = arith.constant 0 : index
    %c0_3 = arith.constant 0 : index
    %3 = vector.load %arg2[%c0_2, %c0_3] : memref<128x128xbf16, #tpu.memory_space<vmem>>, vector<128x128xbf16>
    %cst = arith.constant dense<0.000000e+00> : vector<16x128xf32>
    %4 = tpu.matmul %1, %3, %cst {dimension_numbers = #tpu.dot_dimension_numbers<[1], [0], [0], [1], [0, 0, 1, 1], [], []>} : vector<16x128xbf16>, vector<128x128xbf16>, vector<16x128xf32> -> vector<16x128xf32>
    %c0_4 = arith.constant 0 : index
    %c0_5 = arith.constant 0 : index
    %5 = vector.load %arg3[%c0_4, %c0_5] : memref<1x128xf32, #tpu.memory_space<vmem>>, vector<1x128xf32>
    %6 = vector.broadcast %5 : vector<1x128xf32> to vector<16x128xf32>
    %7 = arith.addf %4, %6 : vector<16x128xf32>
    %cst_6 = arith.constant 0.000000e+00 : f32
    %8 = vector.broadcast %cst_6 : f32 to vector<16x128xf32>
    %9 = arith.maximumf %7, %8 : vector<16x128xf32>
    %cst_7 = arith.constant 0.000000e+00 : f32
    %10 = vector.broadcast %cst_7 : f32 to vector<8x128xf32>
    %c0_8 = arith.constant 0 : index
    %c0_9 = arith.constant 0 : index
    %11 = vector.load %arg12[%c0_8, %c0_9] : memref<32x128xf32, #tpu.memory_space<vmem>>, vector<8x128xf32>
    tpu.vector_store %arg12[%c0_8, %c0_9], %10 {strides = array<i32>} : memref<32x128xf32, #tpu.memory_space<vmem>>, vector<8x128xf32>,
    %cst_10 = arith.constant 0.000000e+00 : f32
    %12 = vector.broadcast %cst_10 : f32 to vector<8x128xf32>
    %c24 = arith.constant 24 : index
    %c0_11 = arith.constant 0 : index
    %13 = vector.load %arg12[%c24, %c0_11] : memref<32x128xf32, #tpu.memory_space<vmem>>, vector<8x128xf32>
    tpu.vector_store %arg12[%c24, %c0_11], %12 {strides = array<i32>} : memref<32x128xf32, #tpu.memory_space<vmem>>, vector<8x128xf32>,
    %c8 = arith.constant 8 : index
    %c0_12 = arith.constant 0 : index
    %14 = vector.load %arg12[%c8, %c0_12] : memref<32x128xf32, #tpu.memory_space<vmem>>, vector<16x128xf32>
    tpu.vector_store %arg12[%c8, %c0_12], %9 {strides = array<i32>} : memref<32x128xf32, #tpu.memory_space<vmem>>, vector<16x128xf32>,
    %15 = tpu.iota {dimensions = array<i32: 0>} : vector<16x128xi32>
    %c4_i32 = arith.constant 4 : i32
    %c0_i32 = arith.constant 0 : i32
    %16 = arith.cmpi eq, %c4_i32, %c0_i32 : i32
    %c1_i32 = arith.constant 1 : i32
    %17 = arith.select %16, %c1_i32, %c4_i32 : i32
    %18 = vector.broadcast %17 : i32 to vector<16x128xi32>
    %19 = arith.remsi %15, %18 : vector<16x128xi32>
    %c0_i32_13 = arith.constant 0 : i32
    %20 = vector.broadcast %c0_i32_13 : i32 to vector<16x128xi32>
    %21 = arith.cmpi ne, %19, %20 : vector<16x128xi32>
    %c0_i32_14 = arith.constant 0 : i32
    %22 = vector.broadcast %c0_i32_14 : i32 to vector<16x128xi32>
    %23 = arith.cmpi slt, %19, %22 : vector<16x128xi32>
    %c0_i32_15 = arith.constant 0 : i32
    %24 = arith.cmpi slt, %17, %c0_i32_15 : i32
    %25 = vector.broadcast %24 : i1 to vector<16x128xi1>
    %26 = vector.broadcast %25 : vector<16x128xi1> to vector<16x128xi1>
    %27 = arith.xori %23, %26 : vector<16x128xi1>
    %28 = arith.andi %27, %21 : vector<16x128xi1>
    %29 = vector.broadcast %17 : i32 to vector<16x128xi32>
    %30 = arith.addi %19, %29 : vector<16x128xi32>
    %31 = arith.select %28, %30, %19 : vector<16x128xi1>, vector<16x128xi32>
    %c1_i32_16 = arith.constant 1 : i32
    %32 = vector.broadcast %c1_i32_16 : i32 to vector<16x128xi32>
    %33 = arith.cmpi sge, %31, %32 : vector<16x128xi32>
    %c2_i32 = arith.constant 2 : i32
    %34 = vector.broadcast %c2_i32 : i32 to vector<16x128xi32>
    %35 = arith.cmpi sle, %31, %34 : vector<16x128xi32>
    %cst_17 = arith.constant 0.000000e+00 : f32
    %36 = vector.broadcast %cst_17 : f32 to vector<16x128xf32>
    %c3 = arith.constant 3 : index
    %c0_18 = arith.constant 0 : index
    %37 = vector.load %arg12[%c3, %c0_18] : memref<32x128xf32, #tpu.memory_space<vmem>>, vector<16x128xf32>
    %cst_19 = arith.constant 0.000000e+00 : f32
    %38 = vector.broadcast %cst_19 : f32 to vector<16x128xf32>
    %39 = arith.select %33, %37, %38 : vector<16x128xi1>, vector<16x128xf32>
    %40 = arith.truncf %39 : vector<16x128xf32> to vector<16x128xbf16>
    %c0_20 = arith.constant 0 : index
    %c0_21 = arith.constant 0 : index
    %c0_22 = arith.constant 0 : index
    %41 = vector.load %arg4[%c0_20, %c0_21, %c0_22] : memref<9x128x128xbf16, #tpu.memory_space<vmem>>, vector<1x128x128xbf16>
    %42 = vector.shape_cast %41 : vector<1x128x128xbf16> to vector<128x128xbf16>
    %cst_23 = arith.constant dense<0.000000e+00> : vector<16x128xf32>
    %43 = tpu.matmul %40, %42, %cst_23 {dimension_numbers = #tpu.dot_dimension_numbers<[1], [0], [0], [1], [0, 0, 1, 1], [], []>} : vector<16x128xbf16>, vector<128x128xbf16>, vector<16x128xf32> -> vector<16x128xf32>
    %44 = arith.addf %36, %43 : vector<16x128xf32>
    %c4 = arith.constant 4 : index
    %c0_24 = arith.constant 0 : index
    %45 = vector.load %arg12[%c4, %c0_24] : memref<32x128xf32, #tpu.memory_space<vmem>>, vector<16x128xf32>
    %46 = arith.truncf %45 : vector<16x128xf32> to vector<16x128xbf16>
    %c1 = arith.constant 1 : index
    %c0_25 = arith.constant 0 : index
    %c0_26 = arith.constant 0 : index
    %47 = vector.load %arg4[%c1, %c0_25, %c0_26] : memref<9x128x128xbf16, #tpu.memory_space<vmem>>, vector<1x128x128xbf16>
    %48 = vector.shape_cast %47 : vector<1x128x128xbf16> to vector<128x128xbf16>
    %cst_27 = arith.constant dense<0.000000e+00> : vector<16x128xf32>
    %49 = tpu.matmul %46, %48, %cst_27 {dimension_numbers = #tpu.dot_dimension_numbers<[1], [0], [0], [1], [0, 0, 1, 1], [], []>} : vector<16x128xbf16>, vector<128x128xbf16>, vector<16x128xf32> -> vector<16x128xf32>
    %50 = arith.addf %44, %49 : vector<16x128xf32>
    %c5 = arith.constant 5 : index
    %c0_28 = arith.constant 0 : index
    %51 = vector.load %arg12[%c5, %c0_28] : memref<32x128xf32, #tpu.memory_space<vmem>>, vector<16x128xf32>
    %cst_29 = arith.constant 0.000000e+00 : f32
    %52 = vector.broadcast %cst_29 : f32 to vector<16x128xf32>
    %53 = arith.select %35, %51, %52 : vector<16x128xi1>, vector<16x128xf32>
    %54 = arith.truncf %53 : vector<16x128xf32> to vector<16x128xbf16>
    %c2 = arith.constant 2 : index
    %c0_30 = arith.constant 0 : index
    %c0_31 = arith.constant 0 : index
    %55 = vector.load %arg4[%c2, %c0_30, %c0_31] : memref<9x128x128xbf16, #tpu.memory_space<vmem>>, vector<1x128x128xbf16>
    %56 = vector.shape_cast %55 : vector<1x128x128xbf16> to vector<128x128xbf16>
    %cst_32 = arith.constant dense<0.000000e+00> : vector<16x128xf32>
    %57 = tpu.matmul %54, %56, %cst_32 {dimension_numbers = #tpu.dot_dimension_numbers<[1], [0], [0], [1], [0, 0, 1, 1], [], []>} : vector<16x128xbf16>, vector<128x128xbf16>, vector<16x128xf32> -> vector<16x128xf32>
    %58 = arith.addf %50, %57 : vector<16x128xf32>
    %c7 = arith.constant 7 : index
    %c0_33 = arith.constant 0 : index
    %59 = vector.load %arg12[%c7, %c0_33] : memref<32x128xf32, #tpu.memory_space<vmem>>, vector<16x128xf32>
    %cst_34 = arith.constant 0.000000e+00 : f32
    %60 = vector.broadcast %cst_34 : f32 to vector<16x128xf32>
    %61 = arith.select %33, %59, %60 : vector<16x128xi1>, vector<16x128xf32>
    %62 = arith.truncf %61 : vector<16x128xf32> to vector<16x128xbf16>
    %c3_35 = arith.constant 3 : index
    %c0_36 = arith.constant 0 : index
    %c0_37 = arith.constant 0 : index
    %63 = vector.load %arg4[%c3_35, %c0_36, %c0_37] : memref<9x128x128xbf16, #tpu.memory_space<vmem>>, vector<1x128x128xbf16>
    %64 = vector.shape_cast %63 : vector<1x128x128xbf16> to vector<128x128xbf16>
    %cst_38 = arith.constant dense<0.000000e+00> : vector<16x128xf32>
    %65 = tpu.matmul %62, %64, %cst_38 {dimension_numbers = #tpu.dot_dimension_numbers<[1], [0], [0], [1], [0, 0, 1, 1], [], []>} : vector<16x128xbf16>, vector<128x128xbf16>, vector<16x128xf32> -> vector<16x128xf32>
    %66 = arith.addf %58, %65 : vector<16x128xf32>
    %c8_39 = arith.constant 8 : index
    %c0_40 = arith.constant 0 : index
    %67 = vector.load %arg12[%c8_39, %c0_40] : memref<32x128xf32, #tpu.memory_space<vmem>>, vector<16x128xf32>
    %68 = arith.truncf %67 : vector<16x128xf32> to vector<16x128xbf16>
    %c4_41 = arith.constant 4 : index
    %c0_42 = arith.constant 0 : index
    %c0_43 = arith.constant 0 : index
    %69 = vector.load %arg4[%c4_41, %c0_42, %c0_43] : memref<9x128x128xbf16, #tpu.memory_space<vmem>>, vector<1x128x128xbf16>
    %70 = vector.shape_cast %69 : vector<1x128x128xbf16> to vector<128x128xbf16>
    %cst_44 = arith.constant dense<0.000000e+00> : vector<16x128xf32>
    %71 = tpu.matmul %68, %70, %cst_44 {dimension_numbers = #tpu.dot_dimension_numbers<[1], [0], [0], [1], [0, 0, 1, 1], [], []>} : vector<16x128xbf16>, vector<128x128xbf16>, vector<16x128xf32> -> vector<16x128xf32>
    %72 = arith.addf %66, %71 : vector<16x128xf32>
    %c9 = arith.constant 9 : index
    %c0_45 = arith.constant 0 : index
    %73 = vector.load %arg12[%c9, %c0_45] : memref<32x128xf32, #tpu.memory_space<vmem>>, vector<16x128xf32>
    %cst_46 = arith.constant 0.000000e+00 : f32
    %74 = vector.broadcast %cst_46 : f32 to vector<16x128xf32>
    %75 = arith.select %35, %73, %74 : vector<16x128xi1>, vector<16x128xf32>
    %76 = arith.truncf %75 : vector<16x128xf32> to vector<16x128xbf16>
    %c5_47 = arith.constant 5 : index
    %c0_48 = arith.constant 0 : index
    %c0_49 = arith.constant 0 : index
    %77 = vector.load %arg4[%c5_47, %c0_48, %c0_49] : memref<9x128x128xbf16, #tpu.memory_space<vmem>>, vector<1x128x128xbf16>
    %78 = vector.shape_cast %77 : vector<1x128x128xbf16> to vector<128x128xbf16>
    %cst_50 = arith.constant dense<0.000000e+00> : vector<16x128xf32>
    %79 = tpu.matmul %76, %78, %cst_50 {dimension_numbers = #tpu.dot_dimension_numbers<[1], [0], [0], [1], [0, 0, 1, 1], [], []>} : vector<16x128xbf16>, vector<128x128xbf16>, vector<16x128xf32> -> vector<16x128xf32>
    %80 = arith.addf %72, %79 : vector<16x128xf32>
    %c11 = arith.constant 11 : index
    %c0_51 = arith.constant 0 : index
    %81 = vector.load %arg12[%c11, %c0_51] : memref<32x128xf32, #tpu.memory_space<vmem>>, vector<16x128xf32>
    %cst_52 = arith.constant 0.000000e+00 : f32
    %82 = vector.broadcast %cst_52 : f32 to vector<16x128xf32>
    %83 = arith.select %33, %81, %82 : vector<16x128xi1>, vector<16x128xf32>
    %84 = arith.truncf %83 : vector<16x128xf32> to vector<16x128xbf16>
    %c6 = arith.constant 6 : index
    %c0_53 = arith.constant 0 : index
    %c0_54 = arith.constant 0 : index
    %85 = vector.load %arg4[%c6, %c0_53, %c0_54] : memref<9x128x128xbf16, #tpu.memory_space<vmem>>, vector<1x128x128xbf16>
    %86 = vector.shape_cast %85 : vector<1x128x128xbf16> to vector<128x128xbf16>
    %cst_55 = arith.constant dense<0.000000e+00> : vector<16x128xf32>
    %87 = tpu.matmul %84, %86, %cst_55 {dimension_numbers = #tpu.dot_dimension_numbers<[1], [0], [0], [1], [0, 0, 1, 1], [], []>} : vector<16x128xbf16>, vector<128x128xbf16>, vector<16x128xf32> -> vector<16x128xf32>
    %88 = arith.addf %80, %87 : vector<16x128xf32>
    %c12 = arith.constant 12 : index
    %c0_56 = arith.constant 0 : index
    %89 = vector.load %arg12[%c12, %c0_56] : memref<32x128xf32, #tpu.memory_space<vmem>>, vector<16x128xf32>
    %90 = arith.truncf %89 : vector<16x128xf32> to vector<16x128xbf16>
    %c7_57 = arith.constant 7 : index
    %c0_58 = arith.constant 0 : index
    %c0_59 = arith.constant 0 : index
    %91 = vector.load %arg4[%c7_57, %c0_58, %c0_59] : memref<9x128x128xbf16, #tpu.memory_space<vmem>>, vector<1x128x128xbf16>
    %92 = vector.shape_cast %91 : vector<1x128x128xbf16> to vector<128x128xbf16>
    %cst_60 = arith.constant dense<0.000000e+00> : vector<16x128xf32>
    %93 = tpu.matmul %90, %92, %cst_60 {dimension_numbers = #tpu.dot_dimension_numbers<[1], [0], [0], [1], [0, 0, 1, 1], [], []>} : vector<16x128xbf16>, vector<128x128xbf16>, vector<16x128xf32> -> vector<16x128xf32>
    %94 = arith.addf %88, %93 : vector<16x128xf32>
    %c13 = arith.constant 13 : index
    %c0_61 = arith.constant 0 : index
    %95 = vector.load %arg12[%c13, %c0_61] : memref<32x128xf32, #tpu.memory_space<vmem>>, vector<16x128xf32>
    %cst_62 = arith.constant 0.000000e+00 : f32
    %96 = vector.broadcast %cst_62 : f32 to vector<16x128xf32>
    %97 = arith.select %35, %95, %96 : vector<16x128xi1>, vector<16x128xf32>
    %98 = arith.truncf %97 : vector<16x128xf32> to vector<16x128xbf16>
    %c8_63 = arith.constant 8 : index
    %c0_64 = arith.constant 0 : index
    %c0_65 = arith.constant 0 : index
    %99 = vector.load %arg4[%c8_63, %c0_64, %c0_65] : memref<9x128x128xbf16, #tpu.memory_space<vmem>>, vector<1x128x128xbf16>
    %100 = vector.shape_cast %99 : vector<1x128x128xbf16> to vector<128x128xbf16>
    %cst_66 = arith.constant dense<0.000000e+00> : vector<16x128xf32>
    %101 = tpu.matmul %98, %100, %cst_66 {dimension_numbers = #tpu.dot_dimension_numbers<[1], [0], [0], [1], [0, 0, 1, 1], [], []>} : vector<16x128xbf16>, vector<128x128xbf16>, vector<16x128xf32> -> vector<16x128xf32>
    %102 = arith.addf %94, %101 : vector<16x128xf32>
    %c0_67 = arith.constant 0 : index
    %c0_68 = arith.constant 0 : index
    %103 = vector.load %arg5[%c0_67, %c0_68] : memref<1x128xf32, #tpu.memory_space<vmem>>, vector<1x128xf32>
    %104 = vector.broadcast %103 : vector<1x128xf32> to vector<16x128xf32>
    %105 = arith.addf %102, %104 : vector<16x128xf32>
    %cst_69 = arith.constant 0.000000e+00 : f32
    %106 = vector.broadcast %cst_69 : f32 to vector<16x128xf32>
    %107 = arith.maximumf %105, %106 : vector<16x128xf32>
    %108 = arith.truncf %107 : vector<16x128xf32> to vector<16x128xbf16>
    %c0_70 = arith.constant 0 : index
    %c0_71 = arith.constant 0 : index
    %109 = vector.load %arg6[%c0_70, %c0_71] : memref<128x128xbf16, #tpu.memory_space<vmem>>, vector<128x128xbf16>
    %cst_72 = arith.constant dense<0.000000e+00> : vector<16x128xf32>
    %110 = tpu.matmul %108, %109, %cst_72 {dimension_numbers = #tpu.dot_dimension_numbers<[1], [0], [0], [1], [0, 0, 1, 1], [], []>} : vector<16x128xbf16>, vector<128x128xbf16>, vector<16x128xf32> -> vector<16x128xf32>
    %c0_73 = arith.constant 0 : index
    %c0_74 = arith.constant 0 : index
    %111 = vector.load %arg7[%c0_73, %c0_74] : memref<1x128xf32, #tpu.memory_space<vmem>>, vector<1x128xf32>
    %112 = vector.broadcast %111 : vector<1x128xf32> to vector<16x128xf32>
    %113 = arith.addf %110, %112 : vector<16x128xf32>
    %114 = arith.addf %113, %2 : vector<16x128xf32>
    %cst_75 = arith.constant 0.000000e+00 : f32
    %115 = vector.broadcast %cst_75 : f32 to vector<16x128xf32>
    %116 = arith.maximumf %114, %115 : vector<16x128xf32>
    %117 = arith.truncf %116 : vector<16x128xf32> to vector<16x128xbf16>
    %c0_76 = arith.constant 0 : index
    %c0_77 = arith.constant 0 : index
    %c0_78 = arith.constant 0 : index
    %118 = vector.load %arg10[%c0_76, %c0_77, %c0_78] : memref<1x16x128xbf16, #tpu.memory_space<vmem>>, vector<1x16x128xbf16>
    %119 = vector.shape_cast %118 : vector<1x16x128xbf16> to vector<16x128xbf16>
    %120 = vector.shape_cast %117 : vector<16x128xbf16> to vector<1x16x128xbf16>
    tpu.vector_store %arg10[%c0_76, %c0_77, %c0_78], %120 {strides = array<i32>} : memref<1x16x128xbf16, #tpu.memory_space<vmem>>, vector<1x16x128xbf16>,
    %c0_79 = arith.constant 0 : index
    %c0_80 = arith.constant 0 : index
    %121 = vector.load %arg8[%c0_79, %c0_80] : memref<128x128xbf16, #tpu.memory_space<vmem>>, vector<128x128xbf16>
    %cst_81 = arith.constant dense<0.000000e+00> : vector<16x128xf32>
    %122 = tpu.matmul %117, %121, %cst_81 {dimension_numbers = #tpu.dot_dimension_numbers<[1], [0], [0], [1], [0, 0, 1, 1], [], []>} : vector<16x128xbf16>, vector<128x128xbf16>, vector<16x128xf32> -> vector<16x128xf32>
    %c0_82 = arith.constant 0 : index
    %c0_83 = arith.constant 0 : index
    %123 = vector.load %arg9[%c0_82, %c0_83] : memref<1x128xf32, #tpu.memory_space<vmem>>, vector<1x128xf32>
    %124 = vector.broadcast %123 : vector<1x128xf32> to vector<16x128xf32>
    %125 = arith.addf %122, %124 : vector<16x128xf32>
    %cst_84 = arith.constant 0.000000e+00 : f32
    %126 = vector.broadcast %cst_84 : f32 to vector<16x128xf32>
    %127 = arith.maximumf %125, %126 : vector<16x128xf32>
    %128 = arith.truncf %127 : vector<16x128xf32> to vector<16x128xbf16>
    %c0_85 = arith.constant 0 : index
    %c0_86 = arith.constant 0 : index
    %c0_87 = arith.constant 0 : index
    %129 = vector.load %arg11[%c0_85, %c0_86, %c0_87] : memref<1x16x128xbf16, #tpu.memory_space<vmem>>, vector<1x16x128xbf16>
    %130 = vector.shape_cast %129 : vector<1x16x128xbf16> to vector<16x128xbf16>
    %131 = vector.shape_cast %128 : vector<16x128xbf16> to vector<1x16x128xbf16>
    tpu.vector_store %arg11[%c0_85, %c0_86, %c0_87], %131 {strides = array<i32>} : memref<1x16x128xbf16, #tpu.memory_space<vmem>>, vector<1x16x128xbf16>,
    return
  }
  func.func @transform_0(%arg0: i32) -> (i32, i32, i32) {
    %c0_i32 = arith.constant 0 : i32
    %c0_i32_0 = arith.constant 0 : i32
    %c0_i32_1 = arith.constant 0 : i32
    return %arg0, %c0_i32, %c0_i32_0 : i32, i32, i32
  }
  func.func @transform_1(%arg0: i32) -> (i32, i32) {
    %c0_i32 = arith.constant 0 : i32
    %c0_i32_0 = arith.constant 0 : i32
    %c0_i32_1 = arith.constant 0 : i32
    return %c0_i32, %c0_i32_0 : i32, i32
  }
  func.func @transform_2(%arg0: i32) -> (i32, i32) {
    %c0_i32 = arith.constant 0 : i32
    %c0_i32_0 = arith.constant 0 : i32
    %c0_i32_1 = arith.constant 0 : i32
    return %c0_i32, %c0_i32_0 : i32, i32
  }
  func.func @transform_3(%arg0: i32) -> (i32, i32, i32) {
    %c0_i32 = arith.constant 0 : i32
    %c0_i32_0 = arith.constant 0 : i32
    %c0_i32_1 = arith.constant 0 : i32
    %c0_i32_2 = arith.constant 0 : i32
    return %c0_i32, %c0_i32_0, %c0_i32_1 : i32, i32, i32
  }
  func.func @transform_4(%arg0: i32) -> (i32, i32) {
    %c0_i32 = arith.constant 0 : i32
    %c0_i32_0 = arith.constant 0 : i32
    %c0_i32_1 = arith.constant 0 : i32
    return %c0_i32, %c0_i32_0 : i32, i32
  }
  func.func @transform_5(%arg0: i32) -> (i32, i32) {
    %c0_i32 = arith.constant 0 : i32
    %c0_i32_0 = arith.constant 0 : i32
    %c0_i32_1 = arith.constant 0 : i32
    return %c0_i32, %c0_i32_0 : i32, i32
  }
  func.func @transform_6(%arg0: i32) -> (i32, i32) {
    %c0_i32 = arith.constant 0 : i32
    %c0_i32_0 = arith.constant 0 : i32
    %c0_i32_1 = arith.constant 0 : i32
    return %c0_i32, %c0_i32_0 : i32, i32
  }
  func.func @transform_7(%arg0: i32) -> (i32, i32) {
    %c0_i32 = arith.constant 0 : i32
    %c0_i32_0 = arith.constant 0 : i32
    %c0_i32_1 = arith.constant 0 : i32
    return %c0_i32, %c0_i32_0 : i32, i32
  }
  func.func @transform_8(%arg0: i32) -> (i32, i32) {
    %c0_i32 = arith.constant 0 : i32
    %c0_i32_0 = arith.constant 0 : i32
    %c0_i32_1 = arith.constant 0 : i32
    return %c0_i32, %c0_i32_0 : i32, i32
  }
  func.func @transform_9(%arg0: i32) -> (i32, i32, i32) {
    %c0_i32 = arith.constant 0 : i32
    %c0_i32_0 = arith.constant 0 : i32
    %c0_i32_1 = arith.constant 0 : i32
    return %arg0, %c0_i32, %c0_i32_0 : i32, i32, i32
  }
  func.func @transform_10(%arg0: i32) -> (i32, i32, i32) {
    %c0_i32 = arith.constant 0 : i32
    %c0_i32_0 = arith.constant 0 : i32
    %c0_i32_1 = arith.constant 0 : i32
    return %arg0, %c0_i32, %c0_i32_0 : i32, i32, i32
  }
}

module attributes {stable_mosaic.version = 11 : i64} {
  func.func @_mm_bias_kernel(%arg0: i32, %arg1: memref<32x512xbf16, #tpu.memory_space<vmem>>, %arg2: memref<512x128xbf16, #tpu.memory_space<vmem>>, %arg3: memref<1x128xf32, #tpu.memory_space<vmem>>, %arg4: memref<32x128xbf16, #tpu.memory_space<vmem>>) attributes {dimension_semantics = [#tpu.dimension_semantics<parallel>], iteration_bounds = array<i64: 1>, scalar_prefetch = 0 : i64, scratch_operands = 0 : i64, tpu.core_type = #tpu.core_type<tc>, window_params = [{transform_indices = @transform_0, window_bounds = array<i64: 32, 512>}, {pipeline_mode = #tpu.pipeline_mode<synchronous>, transform_indices = @transform_1, window_bounds = array<i64: 512, 128>}, {pipeline_mode = #tpu.pipeline_mode<synchronous>, transform_indices = @transform_2, window_bounds = array<i64: 1, 128>}, {transform_indices = @transform_3, window_bounds = array<i64: 32, 128>}]} {
    %c0 = arith.constant 0 : index
    %c0_0 = arith.constant 0 : index
    %0 = vector.load %arg1[%c0, %c0_0] : memref<32x512xbf16, #tpu.memory_space<vmem>>, vector<32x512xbf16>
    %c0_1 = arith.constant 0 : index
    %c0_2 = arith.constant 0 : index
    %1 = vector.load %arg2[%c0_1, %c0_2] : memref<512x128xbf16, #tpu.memory_space<vmem>>, vector<512x128xbf16>
    %cst = arith.constant dense<0.000000e+00> : vector<32x128xf32>
    %2 = tpu.matmul %0, %1, %cst {dimension_numbers = #tpu.dot_dimension_numbers<[1], [0], [0], [1], [0, 0, 1, 1], [], []>} : vector<32x512xbf16>, vector<512x128xbf16>, vector<32x128xf32> -> vector<32x128xf32>
    %c0_3 = arith.constant 0 : index
    %c0_4 = arith.constant 0 : index
    %3 = vector.load %arg3[%c0_3, %c0_4] : memref<1x128xf32, #tpu.memory_space<vmem>>, vector<1x128xf32>
    %4 = vector.broadcast %3 : vector<1x128xf32> to vector<32x128xf32>
    %5 = arith.addf %2, %4 : vector<32x128xf32>
    %cst_5 = arith.constant 0.000000e+00 : f32
    %6 = vector.broadcast %cst_5 : f32 to vector<32x128xf32>
    %7 = arith.maximumf %5, %6 : vector<32x128xf32>
    %8 = arith.truncf %7 : vector<32x128xf32> to vector<32x128xbf16>
    %c0_6 = arith.constant 0 : index
    %c0_7 = arith.constant 0 : index
    %9 = vector.load %arg4[%c0_6, %c0_7] : memref<32x128xbf16, #tpu.memory_space<vmem>>, vector<32x128xbf16>
    tpu.vector_store %arg4[%c0_6, %c0_7], %8 {strides = array<i32>} : memref<32x128xbf16, #tpu.memory_space<vmem>>, vector<32x128xbf16>,
    return
  }
  func.func @transform_0(%arg0: i32) -> (i32, i32) {
    %c0_i32 = arith.constant 0 : i32
    %c0_i32_0 = arith.constant 0 : i32
    return %arg0, %c0_i32 : i32, i32
  }
  func.func @transform_1(%arg0: i32) -> (i32, i32) {
    %c0_i32 = arith.constant 0 : i32
    %c0_i32_0 = arith.constant 0 : i32
    %c0_i32_1 = arith.constant 0 : i32
    return %c0_i32, %c0_i32_0 : i32, i32
  }
  func.func @transform_2(%arg0: i32) -> (i32, i32) {
    %c0_i32 = arith.constant 0 : i32
    %c0_i32_0 = arith.constant 0 : i32
    %c0_i32_1 = arith.constant 0 : i32
    return %c0_i32, %c0_i32_0 : i32, i32
  }
  func.func @transform_3(%arg0: i32) -> (i32, i32) {
    %c0_i32 = arith.constant 0 : i32
    %c0_i32_0 = arith.constant 0 : i32
    return %arg0, %c0_i32 : i32, i32
  }
}

module attributes {stable_mosaic.version = 11 : i64} {
  func.func @_mm_bias_kernel(%arg0: i32, %arg1: memref<32x512xbf16, #tpu.memory_space<vmem>>, %arg2: memref<512x256xbf16, #tpu.memory_space<vmem>>, %arg3: memref<1x256xf32, #tpu.memory_space<vmem>>, %arg4: memref<32x256xbf16, #tpu.memory_space<vmem>>) attributes {dimension_semantics = [#tpu.dimension_semantics<parallel>], iteration_bounds = array<i64: 1>, scalar_prefetch = 0 : i64, scratch_operands = 0 : i64, tpu.core_type = #tpu.core_type<tc>, window_params = [{transform_indices = @transform_0, window_bounds = array<i64: 32, 512>}, {pipeline_mode = #tpu.pipeline_mode<synchronous>, transform_indices = @transform_1, window_bounds = array<i64: 512, 256>}, {pipeline_mode = #tpu.pipeline_mode<synchronous>, transform_indices = @transform_2, window_bounds = array<i64: 1, 256>}, {transform_indices = @transform_3, window_bounds = array<i64: 32, 256>}]} {
    %c0 = arith.constant 0 : index
    %c0_0 = arith.constant 0 : index
    %0 = vector.load %arg1[%c0, %c0_0] : memref<32x512xbf16, #tpu.memory_space<vmem>>, vector<32x512xbf16>
    %c0_1 = arith.constant 0 : index
    %c0_2 = arith.constant 0 : index
    %1 = vector.load %arg2[%c0_1, %c0_2] : memref<512x256xbf16, #tpu.memory_space<vmem>>, vector<512x256xbf16>
    %cst = arith.constant dense<0.000000e+00> : vector<32x256xf32>
    %2 = tpu.matmul %0, %1, %cst {dimension_numbers = #tpu.dot_dimension_numbers<[1], [0], [0], [1], [0, 0, 1, 1], [], []>} : vector<32x512xbf16>, vector<512x256xbf16>, vector<32x256xf32> -> vector<32x256xf32>
    %c0_3 = arith.constant 0 : index
    %c0_4 = arith.constant 0 : index
    %3 = vector.load %arg3[%c0_3, %c0_4] : memref<1x256xf32, #tpu.memory_space<vmem>>, vector<1x256xf32>
    %4 = vector.broadcast %3 : vector<1x256xf32> to vector<32x256xf32>
    %5 = arith.addf %2, %4 : vector<32x256xf32>
    %cst_5 = arith.constant 0.000000e+00 : f32
    %6 = vector.broadcast %cst_5 : f32 to vector<32x256xf32>
    %7 = arith.maximumf %5, %6 : vector<32x256xf32>
    %8 = arith.truncf %7 : vector<32x256xf32> to vector<32x256xbf16>
    %c0_6 = arith.constant 0 : index
    %c0_7 = arith.constant 0 : index
    %9 = vector.load %arg4[%c0_6, %c0_7] : memref<32x256xbf16, #tpu.memory_space<vmem>>, vector<32x256xbf16>
    tpu.vector_store %arg4[%c0_6, %c0_7], %8 {strides = array<i32>} : memref<32x256xbf16, #tpu.memory_space<vmem>>, vector<32x256xbf16>,
    return
  }
  func.func @transform_0(%arg0: i32) -> (i32, i32) {
    %c0_i32 = arith.constant 0 : i32
    %c0_i32_0 = arith.constant 0 : i32
    return %arg0, %c0_i32 : i32, i32
  }
  func.func @transform_1(%arg0: i32) -> (i32, i32) {
    %c0_i32 = arith.constant 0 : i32
    %c0_i32_0 = arith.constant 0 : i32
    %c0_i32_1 = arith.constant 0 : i32
    return %c0_i32, %c0_i32_0 : i32, i32
  }
  func.func @transform_2(%arg0: i32) -> (i32, i32) {
    %c0_i32 = arith.constant 0 : i32
    %c0_i32_0 = arith.constant 0 : i32
    %c0_i32_1 = arith.constant 0 : i32
    return %c0_i32, %c0_i32_0 : i32, i32
  }
  func.func @transform_3(%arg0: i32) -> (i32, i32) {
    %c0_i32 = arith.constant 0 : i32
    %c0_i32_0 = arith.constant 0 : i32
    return %arg0, %c0_i32 : i32, i32
  }
}

module attributes {stable_mosaic.version = 11 : i64} {
  func.func @_mm_bias_kernel(%arg0: i32, %arg1: memref<128x256xbf16, #tpu.memory_space<vmem>>, %arg2: memref<256x128xbf16, #tpu.memory_space<vmem>>, %arg3: memref<1x128xf32, #tpu.memory_space<vmem>>, %arg4: memref<128x128xf32, #tpu.memory_space<vmem>>) attributes {dimension_semantics = [#tpu.dimension_semantics<parallel>], iteration_bounds = array<i64: 1>, scalar_prefetch = 0 : i64, scratch_operands = 0 : i64, tpu.core_type = #tpu.core_type<tc>, window_params = [{transform_indices = @transform_0, window_bounds = array<i64: 128, 256>}, {pipeline_mode = #tpu.pipeline_mode<synchronous>, transform_indices = @transform_1, window_bounds = array<i64: 256, 128>}, {pipeline_mode = #tpu.pipeline_mode<synchronous>, transform_indices = @transform_2, window_bounds = array<i64: 1, 128>}, {transform_indices = @transform_3, window_bounds = array<i64: 128, 128>}]} {
    %c0 = arith.constant 0 : index
    %c0_0 = arith.constant 0 : index
    %0 = vector.load %arg1[%c0, %c0_0] : memref<128x256xbf16, #tpu.memory_space<vmem>>, vector<128x256xbf16>
    %c0_1 = arith.constant 0 : index
    %c0_2 = arith.constant 0 : index
    %1 = vector.load %arg2[%c0_1, %c0_2] : memref<256x128xbf16, #tpu.memory_space<vmem>>, vector<256x128xbf16>
    %cst = arith.constant dense<0.000000e+00> : vector<128x128xf32>
    %2 = tpu.matmul %0, %1, %cst {dimension_numbers = #tpu.dot_dimension_numbers<[1], [0], [0], [1], [0, 0, 1, 1], [], []>} : vector<128x256xbf16>, vector<256x128xbf16>, vector<128x128xf32> -> vector<128x128xf32>
    %c0_3 = arith.constant 0 : index
    %c0_4 = arith.constant 0 : index
    %3 = vector.load %arg3[%c0_3, %c0_4] : memref<1x128xf32, #tpu.memory_space<vmem>>, vector<1x128xf32>
    %4 = vector.broadcast %3 : vector<1x128xf32> to vector<128x128xf32>
    %5 = arith.addf %2, %4 : vector<128x128xf32>
    %c0_5 = arith.constant 0 : index
    %c0_6 = arith.constant 0 : index
    %6 = vector.load %arg4[%c0_5, %c0_6] : memref<128x128xf32, #tpu.memory_space<vmem>>, vector<128x128xf32>
    tpu.vector_store %arg4[%c0_5, %c0_6], %5 {strides = array<i32>} : memref<128x128xf32, #tpu.memory_space<vmem>>, vector<128x128xf32>,
    return
  }
  func.func @transform_0(%arg0: i32) -> (i32, i32) {
    %c0_i32 = arith.constant 0 : i32
    %c0_i32_0 = arith.constant 0 : i32
    return %arg0, %c0_i32 : i32, i32
  }
  func.func @transform_1(%arg0: i32) -> (i32, i32) {
    %c0_i32 = arith.constant 0 : i32
    %c0_i32_0 = arith.constant 0 : i32
    %c0_i32_1 = arith.constant 0 : i32
    return %c0_i32, %c0_i32_0 : i32, i32
  }
  func.func @transform_2(%arg0: i32) -> (i32, i32) {
    %c0_i32 = arith.constant 0 : i32
    %c0_i32_0 = arith.constant 0 : i32
    %c0_i32_1 = arith.constant 0 : i32
    return %c0_i32, %c0_i32_0 : i32, i32
  }
  func.func @transform_3(%arg0: i32) -> (i32, i32) {
    %c0_i32 = arith.constant 0 : i32
    %c0_i32_0 = arith.constant 0 : i32
    return %arg0, %c0_i32 : i32, i32
  }
}

</mosaic_0001>

<llo_original>
// kernel: depth_net_fwd.8
$region0: #{depth_net_fwd.8}
  #allocation0 [shape = 'u32[]', space=smem, size = 0x4, offset = 0x4, fixed_abs, tag = 'smem constant byte address 0x4 - core index']
  #allocation1 [shape = 'u32[144,128]{1,0:T(1,128)}', space=vmem, size = 0x12000, scoped, tag = 'internal scratch']
  %s0 = inlined_call_operand.vmem [shape: bf16[32,128], index: 0, kind: input, shape index: {}]
  %s1 = inlined_call_operand.vmem [shape: bf16[128,128], index: 1, kind: input, shape index: {}]
  %s2 = inlined_call_operand.vmem [shape: f32[1,128], index: 2, kind: input, shape index: {}]
  %s3 = inlined_call_operand.vmem [shape: bf16[32,128], index: 3, kind: output, shape index: {}]
  %s4 = sld [smem:[#allocation0]]
  $region22: #{depth_net_fwd.8} parent=0
    _
  %s6 = ssub.s32 1, %s4
  %s7 = scalar_select 0, %s6, %s4
  // Predicated region
  $region2: #{depth_net_fwd.8} parent=0 // pred_check
    _
  $region3: #{depth_net_fwd.8} parent=0 // pred_check_branch
    %9 = sbr.rel (0) target = $region5
  $region4: #{depth_net_fwd.8} parent=0 // pred_region
    _
  $region5: #{depth_net_fwd.8} parent=0 // pred_fallthru
    _
  // Predicated region
  $region6: #{depth_net_fwd.8} parent=0 // pred_check
    _
  $region7: #{depth_net_fwd.8} parent=0 // pred_check_branch
    %11 = sbr.rel (0) target = $region9
  $region8: #{depth_net_fwd.8} parent=0 // pred_region
    _
  $region9: #{depth_net_fwd.8} parent=0 // pred_fallthru
    _
  // Predicated region
  $region10: #{depth_net_fwd.8} parent=0 // pred_check
    _
  $region11: #{depth_net_fwd.8} parent=0 // pred_check_branch
    %13 = sbr.rel (0) target = $region13
  $region12: #{depth_net_fwd.8} parent=0 // pred_region
    _
  $region13: #{depth_net_fwd.8} parent=0 // pred_fallthru
    _
  %v15 = vld [vmem:[%s0] sm:$0xf]
  %v16 = vld [vmem:[%s0 + $0x4] sm:$0xf]
  %v17 = vld [vmem:[%s0 + $0x8] sm:$0xf]
  %v18 = vld [vmem:[%s0 + $0xc] sm:$0xf]
  %v19 = vld [vmem:[%s1] sm:$0xf]
  %v20 = vld [vmem:[%s1 + $0x4] sm:$0xf]
  %v21 = vld [vmem:[%s1 + $0x8] sm:$0xf]
  %v22 = vld [vmem:[%s1 + $0xc] sm:$0xf]
  %v23 = vld [vmem:[%s1 + $0x10] sm:$0xf]
  %v24 = vld [vmem:[%s1 + $0x14] sm:$0xf]
  %v25 = vld [vmem:[%s1 + $0x18] sm:$0xf]
  %v26 = vld [vmem:[%s1 + $0x1c] sm:$0xf]
  %v27 = vld [vmem:[%s1 + $0x20] sm:$0xf]
  %v28 = vld [vmem:[%s1 + $0x24] sm:$0xf]
  %v29 = vld [vmem:[%s1 + $0x28] sm:$0xf]
  %v30 = vld [vmem:[%s1 + $0x2c] sm:$0xf]
  %v31 = vld [vmem:[%s1 + $0x30] sm:$0xf]
  %v32 = vld [vmem:[%s1 + $0x34] sm:$0xf]
  %v33 = vld [vmem:[%s1 + $0x38] sm:$0xf]
  %v34 = vld [vmem:[%s1 + $0x3c] sm:$0xf]
  %v35 = vld [vmem:[%s2] sm:$0x1]
  %v37 = vlaneseq
  %v38 = vshrl.u32 %v37, 7
  %v39 = vsub.s32 0, %v38
  %v40 = vrot.slane %v35, %v39
  %v46 = vunpack.c.l.b16 %v15
  %v47 = vunpack.c.l.b16 %v16
  %v48 = vunpack.c.l.b16 %v17
  %v49 = vunpack.c.l.b16 %v18
  %v50 = vpack.c.b16 %v47, %v46
  %v51 = vpack.c.b16 %v49, %v48
  %v70 = vunpack.c.l.b16 %v19
  %v71 = vunpack.c.l.b16 %v20
  %v72 = vunpack.c.l.b16 %v21
  %v73 = vunpack.c.l.b16 %v22
  %v74 = vunpack.c.l.b16 %v23
  %v75 = vunpack.c.l.b16 %v24
  %v76 = vunpack.c.l.b16 %v25
  %v77 = vunpack.c.l.b16 %v26
  %v78 = vunpack.c.l.b16 %v27
  %v79 = vunpack.c.l.b16 %v28
  %v80 = vunpack.c.l.b16 %v29
  %v81 = vunpack.c.l.b16 %v30
  %v82 = vunpack.c.l.b16 %v31
  %v83 = vunpack.c.l.b16 %v32
  %v84 = vunpack.c.l.b16 %v33
  %v85 = vunpack.c.l.b16 %v34
  %v86 = vpack.c.b16 %v71, %v70
  %v87 = vpack.c.b16 %v73, %v72
  %v88 = vpack.c.b16 %v75, %v74
  %v89 = vpack.c.b16 %v77, %v76
  %v90 = vpack.c.b16 %v79, %v78
  %v91 = vpack.c.b16 %v81, %v80
  %v92 = vpack.c.b16 %v83, %v82
  %v93 = vpack.c.b16 %v85, %v84
  %102 = vmatprep.subr.bf16.mxu0 0
  %103 = vmatpush1.bf16.msra.mxu0 %v86
  %104 = vmatprep.subr.bf16.mxu0 0
  %105 = vmatpush1.bf16.msra.mxu0 %v87
  %106 = vmatprep.subr.bf16.mxu0 0
  %107 = vmatpush1.bf16.msra.mxu0 %v88
  %108 = vmatprep.subr.bf16.mxu0 0
  %109 = vmatpush1.bf16.msra.mxu0 %v89
  %110 = vmatprep.subr.bf16.mxu0 0
  %111 = vmatpush1.bf16.msra.mxu0 %v90
  %112 = vmatprep.subr.bf16.mxu0 0
  %113 = vmatpush1.bf16.msra.mxu0 %v91
  %114 = vmatprep.subr.bf16.mxu0 0
  %115 = vmatpush1.bf16.msra.mxu0 %v92
  %116 = vmatprep.subr.bf16.mxu0 0
  %117 = vmatpush1.bf16.msra.mxu0 %v93
  %118 = vmatprep.subr.bf16.mxu0 0
  %119 = vmatpush1.bf16.msra.mxu0 0
  %120 = vmatprep.subr.bf16.mxu0 0
  %121 = vmatpush1.bf16.msra.mxu0 0
  %122 = vmatprep.subr.bf16.mxu0 0
  %123 = vmatpush1.bf16.msra.mxu0 0
  %124 = vmatprep.subr.bf16.mxu0 0
  %125 = vmatpush1.bf16.msra.mxu0 0
  %126 = vmatprep.subr.bf16.mxu0 0
  %127 = vmatpush1.bf16.msra.mxu0 0
  %128 = vmatprep.subr.bf16.mxu0 0
  %129 = vmatpush1.bf16.msra.mxu0 0
  %130 = vmatprep.subr.bf16.mxu0 0
  %131 = vmatpush1.bf16.msra.mxu0 0
  %132 = vmatprep.subr.bf16.mxu0 0
  %133 = vmatpush1.bf16.msra.mxu0 0
  %134 = vmatprep.mubr.bf16.mxu0 0
  %135 = vmatmul.mubr.bf16.gmra.mrb[0].mxu0 %v50
  %v136 = vpop.f32.mrb[0].mxu0
  %v137 = vadd.f32 %v40, %v136
  %v138 = vpop.f32.mrb[0].mxu0
  %v139 = vpop.f32.mrb[0].mxu0
  %v140 = vadd.f32 %v40, %v139
  %v141 = vpop.f32.mrb[0].mxu0
  %142 = vmatprep.mubr.bf16.mxu0 0
  %143 = vmatmul.mubr.bf16.gmra.mrb[0].mxu0 %v51
  %v144 = vpop.f32.mrb[0].mxu0
  %v145 = vadd.f32 %v40, %v144
  %v146 = vpop.f32.mrb[0].mxu0
  %v147 = vpop.f32.mrb[0].mxu0
  %v148 = vadd.f32 %v40, %v147
  %v149 = vpop.f32.mrb[0].mxu0
  %150 = vdwg.mxu0
  %v151 = vmax.f32 %v137, 0.0
  %v152 = vmax.f32 %v140, 0.0
  %v153 = vmax.f32 %v145, 0.0
  %v154 = vmax.f32 %v148, 0.0
  %v155 = vpack.c.bf16 %v152, %v151
  %v156 = vpack.c.bf16 %v154, %v153
  %v159 = vunpack.c.l.b16 %v155
  %v160 = vunpack.c.h.b16 %v155
  %v161 = vunpack.c.l.b16 %v156
  %v162 = vunpack.c.h.b16 %v156
  %v163 = vpack.c.b16 %v159, %v159
  %v164 = vpack.c.b16 %v160, %v160
  %v165 = vpack.c.b16 %v161, %v161
  %v166 = vpack.c.b16 %v162, %v162
  %171 = vst [vmem:[%s3] sm:$0xf] %v163
  %172 = vst [vmem:[%s3 + $0x4] sm:$0xf] %v164
  %173 = vst [vmem:[%s3 + $0x8] sm:$0xf] %v165
  %174 = vst [vmem:[%s3 + $0xc] sm:$0xf] %v166
  // Predicated region
  $region14: #{depth_net_fwd.8} parent=0 // pred_check
    _
  $region15: #{depth_net_fwd.8} parent=0 // pred_check_branch
    %176 = sbr.rel (0) target = $region17
  $region16: #{depth_net_fwd.8} parent=0 // pred_region
    _
  $region17: #{depth_net_fwd.8} parent=0 // pred_fallthru
    _
  // Predicated region
  $region18: #{depth_net_fwd.8} parent=0 // pred_check
    _
  $region19: #{depth_net_fwd.8} parent=0 // pred_check_branch
    %178 = sbr.rel (0) target = $region21
  $region20: #{depth_net_fwd.8} parent=0 // pred_region
    _
  $region21: #{depth_net_fwd.8} parent=0 // pred_fallthru
    _

// kernel: depth_net_fwd.13
$region0: #{depth_net_fwd.13}
  #allocation0 [shape = 'u32[]', space=smem, size = 0x4, offset = 0x4, fixed_abs, tag = 'smem constant byte address 0x4 - core index']
  #allocation1 [shape = 'u32[144,128]{1,0:T(1,128)}', space=vmem, size = 0x12000, scoped, tag = 'internal scratch']
  %s0 = inlined_call_operand.vmem [shape: bf16[32,512], index: 0, kind: input, shape index: {}]
  %s1 = inlined_call_operand.vmem [shape: bf16[512,128], index: 1, kind: input, shape index: {}]
  %s2 = inlined_call_operand.vmem [shape: f32[1,128], index: 2, kind: input, shape index: {}]
  %s3 = inlined_call_operand.vmem [shape: bf16[32,128], index: 3, kind: output, shape index: {}]
  %s4 = sld [smem:[#allocation0]]
  $region22: #{depth_net_fwd.13} parent=0
    _
  %s6 = ssub.s32 1, %s4
  %s7 = scalar_select 0, %s6, %s4
  // Predicated region
  $region2: #{depth_net_fwd.13} parent=0 // pred_check
    _
  $region3: #{depth_net_fwd.13} parent=0 // pred_check_branch
    %9 = sbr.rel (0) target = $region5
  $region4: #{depth_net_fwd.13} parent=0 // pred_region
    _
  $region5: #{depth_net_fwd.13} parent=0 // pred_fallthru
    _
  // Predicated region
  $region6: #{depth_net_fwd.13} parent=0 // pred_check
    _
  $region7: #{depth_net_fwd.13} parent=0 // pred_check_branch
    %11 = sbr.rel (0) target = $region9
  $region8: #{depth_net_fwd.13} parent=0 // pred_region
    _
  $region9: #{depth_net_fwd.13} parent=0 // pred_fallthru
    _
  // Predicated region
  $region10: #{depth_net_fwd.13} parent=0 // pred_check
    _
  $region11: #{depth_net_fwd.13} parent=0 // pred_check_branch
    %13 = sbr.rel (0) target = $region13
  $region12: #{depth_net_fwd.13} parent=0 // pred_region
    _
  $region13: #{depth_net_fwd.13} parent=0 // pred_fallthru
    _
  %v15 = vld [vmem:[%s0] sm:$0xff]
  %v16 = vld [vmem:[%s0 + $0x8] sm:$0xff]
  %v17 = vld [vmem:[%s0 + $0x10] sm:$0xff]
  %v18 = vld [vmem:[%s0 + $0x18] sm:$0xff]
  %v19 = vld [vmem:[%s0 + $0x20] sm:$0xff]
  %v20 = vld [vmem:[%s0 + $0x28] sm:$0xff]
  %v21 = vld [vmem:[%s0 + $0x30] sm:$0xff]
  %v22 = vld [vmem:[%s0 + $0x38] sm:$0xff]
  %v23 = vld [vmem:[%s1] sm:$0xf]
  %v24 = vld [vmem:[%s1 + $0x4] sm:$0xf]
  %v25 = vld [vmem:[%s1 + $0x8] sm:$0xf]
  %v26 = vld [vmem:[%s1 + $0xc] sm:$0xf]
  %v27 = vld [vmem:[%s1 + $0x10] sm:$0xf]
  %v28 = vld [vmem:[%s1 + $0x14] sm:$0xf]
  %v29 = vld [vmem:[%s1 + $0x18] sm:$0xf]
  %v30 = vld [vmem:[%s1 + $0x1c] sm:$0xf]
  %v31 = vld [vmem:[%s1 + $0x20] sm:$0xf]
  %v32 = vld [vmem:[%s1 + $0x24] sm:$0xf]
  %v33 = vld [vmem:[%s1 + $0x28] sm:$0xf]
  %v34 = vld [vmem:[%s1 + $0x2c] sm:$0xf]
  %v35 = vld [vmem:[%s1 + $0x30] sm:$0xf]
  %v36 = vld [vmem:[%s1 + $0x34] sm:$0xf]
  %v37 = vld [vmem:[%s1 + $0x38] sm:$0xf]
  %v38 = vld [vmem:[%s1 + $0x3c] sm:$0xf]
  %v39 = vld [vmem:[%s1 + $0x40] sm:$0xf]
  %v40 = vld [vmem:[%s1 + $0x44] sm:$0xf]
  %v41 = vld [vmem:[%s1 + $0x48] sm:$0xf]
  %v42 = vld [vmem:[%s1 + $0x4c] sm:$0xf]
  %v43 = vld [vmem:[%s1 + $0x50] sm:$0xf]
  %v44 = vld [vmem:[%s1 + $0x54] sm:$0xf]
  %v45 = vld [vmem:[%s1 + $0x58] sm:$0xf]
  %v46 = vld [vmem:[%s1 + $0x5c] sm:$0xf]
  %v47 = vld [vmem:[%s1 + $0x60] sm:$0xf]
  %v48 = vld [vmem:[%s1 + $0x64] sm:$0xf]
  %v49 = vld [vmem:[%s1 + $0x68] sm:$0xf]
  %v50 = vld [vmem:[%s1 + $0x6c] sm:$0xf]
  %v51 = vld [vmem:[%s1 + $0x70] sm:$0xf]
  %v52 = vld [vmem:[%s1 + $0x74] sm:$0xf]
  %v53 = vld [vmem:[%s1 + $0x78] sm:$0xf]
  %v54 = vld [vmem:[%s1 + $0x7c] sm:$0xf]
  %v55 = vld [vmem:[%s1 + $0x80] sm:$0xf]
  %v56 = vld [vmem:[%s1 + $0x84] sm:$0xf]
  %v57 = vld [vmem:[%s1 + $0x88] sm:$0xf]
  %v58 = vld [vmem:[%s1 + $0x8c] sm:$0xf]
  %v59 = vld [vmem:[%s1 + $0x90] sm:$0xf]
  %v60 = vld [vmem:[%s1 + $0x94] sm:$0xf]
  %v61 = vld [vmem:[%s1 + $0x98] sm:$0xf]
  %v62 = vld [vmem:[%s1 + $0x9c] sm:$0xf]
  %v63 = vld [vmem:[%s1 + $0xa0] sm:$0xf]
  %v64 = vld [vmem:[%s1 + $0xa4] sm:$0xf]
  %v65 = vld [vmem:[%s1 + $0xa8] sm:$0xf]
  %v66 = vld [vmem:[%s1 + $0xac] sm:$0xf]
  %v67 = vld [vmem:[%s1 + $0xb0] sm:$0xf]
  %v68 = vld [vmem:[%s1 + $0xb4] sm:$0xf]
  %v69 = vld [vmem:[%s1 + $0xb8] sm:$0xf]
  %v70 = vld [vmem:[%s1 + $0xbc] sm:$0xf]
  %v71 = vld [vmem:[%s1 + $0xc0] sm:$0xf]
  %v72 = vld [vmem:[%s1 + $0xc4] sm:$0xf]
  %v73 = vld [vmem:[%s1 + $0xc8] sm:$0xf]
  %v74 = vld [vmem:[%s1 + $0xcc] sm:$0xf]
  %v75 = vld [vmem:[%s1 + $0xd0] sm:$0xf]
  %v76 = vld [vmem:[%s1 + $0xd4] sm:$0xf]
  %v77 = vld [vmem:[%s1 + $0xd8] sm:$0xf]
  %v78 = vld [vmem:[%s1 + $0xdc] sm:$0xf]
  %v79 = vld [vmem:[%s1 + $0xe0] sm:$0xf]
  %v80 = vld [vmem:[%s1 + $0xe4] sm:$0xf]
  %v81 = vld [vmem:[%s1 + $0xe8] sm:$0xf]
  %v82 = vld [vmem:[%s1 + $0xec] sm:$0xf]
  %v83 = vld [vmem:[%s1 + $0xf0] sm:$0xf]
  %v84 = vld [vmem:[%s1 + $0xf4] sm:$0xf]
  %v85 = vld [vmem:[%s1 + $0xf8] sm:$0xf]
  %v86 = vld [vmem:[%s1 + $0xfc] sm:$0xf]
  %v87 = vld [vmem:[%s2] sm:$0x1]
  %v89 = vlaneseq
  %v90 = vshrl.u32 %v89, 7
  %v91 = vsub.s32 0, %v90
  %v92 = vrot.slane %v87, %v91
  %v102 = vunpack.c.l.b16 %v15
  %v103 = vunpack.c.h.b16 %v15
  %v104 = vunpack.c.l.b16 %v16
  %v105 = vunpack.c.h.b16 %v16
  %v106 = vunpack.c.l.b16 %v17
  %v107 = vunpack.c.h.b16 %v17
  %v108 = vunpack.c.l.b16 %v18
  %v109 = vunpack.c.h.b16 %v18
  %v110 = vunpack.c.l.b16 %v19
  %v111 = vunpack.c.h.b16 %v19
  %v112 = vunpack.c.l.b16 %v20
  %v113 = vunpack.c.h.b16 %v20
  %v114 = vunpack.c.l.b16 %v21
  %v115 = vunpack.c.h.b16 %v21
  %v116 = vunpack.c.l.b16 %v22
  %v117 = vunpack.c.h.b16 %v22
  %v118 = vpack.c.b16 %v106, %v102
  %v119 = vpack.c.b16 %v107, %v103
  %v120 = vpack.c.b16 %v108, %v104
  %v121 = vpack.c.b16 %v109, %v105
  %v122 = vpack.c.b16 %v114, %v110
  %v123 = vpack.c.b16 %v115, %v111
  %v124 = vpack.c.b16 %v116, %v112
  %v125 = vpack.c.b16 %v117, %v113
  %v198 = vunpack.c.l.b16 %v23
  %v199 = vunpack.c.l.b16 %v24
  %v200 = vunpack.c.l.b16 %v25
  %v201 = vunpack.c.l.b16 %v26
  %v202 = vunpack.c.l.b16 %v27
  %v203 = vunpack.c.l.b16 %v28
  %v204 = vunpack.c.l.b16 %v29
  %v205 = vunpack.c.l.b16 %v30
  %v206 = vunpack.c.l.b16 %v31
  %v207 = vunpack.c.l.b16 %v32
  %v208 = vunpack.c.l.b16 %v33
  %v209 = vunpack.c.l.b16 %v34
  %v210 = vunpack.c.l.b16 %v35
  %v211 = vunpack.c.l.b16 %v36
  %v212 = vunpack.c.l.b16 %v37
  %v213 = vunpack.c.l.b16 %v38
  %v214 = vunpack.c.l.b16 %v39
  %v215 = vunpack.c.l.b16 %v40
  %v216 = vunpack.c.l.b16 %v41
  %v217 = vunpack.c.l.b16 %v42
  %v218 = vunpack.c.l.b16 %v43
  %v219 = vunpack.c.l.b16 %v44
  %v220 = vunpack.c.l.b16 %v45
  %v221 = vunpack.c.l.b16 %v46
  %v222 = vunpack.c.l.b16 %v47
  %v223 = vunpack.c.l.b16 %v48
  %v224 = vunpack.c.l.b16 %v49
  %v225 = vunpack.c.l.b16 %v50
  %v226 = vunpack.c.l.b16 %v51
  %v227 = vunpack.c.l.b16 %v52
  %v228 = vunpack.c.l.b16 %v53
  %v229 = vunpack.c.l.b16 %v54
  %v230 = vunpack.c.l.b16 %v55
  %v231 = vunpack.c.l.b16 %v56
  %v232 = vunpack.c.l.b16 %v57
  %v233 = vunpack.c.l.b16 %v58
  %v234 = vunpack.c.l.b16 %v59
  %v235 = vunpack.c.l.b16 %v60
  %v236 = vunpack.c.l.b16 %v61
  %v237 = vunpack.c.l.b16 %v62
  %v238 = vunpack.c.l.b16 %v63
  %v239 = vunpack.c.l.b16 %v64
  %v240 = vunpack.c.l.b16 %v65
  %v241 = vunpack.c.l.b16 %v66
  %v242 = vunpack.c.l.b16 %v67
  %v243 = vunpack.c.l.b16 %v68
  %v244 = vunpack.c.l.b16 %v69
  %v245 = vunpack.c.l.b16 %v70
  %v246 = vunpack.c.l.b16 %v71
  %v247 = vunpack.c.l.b16 %v72
  %v248 = vunpack.c.l.b16 %v73
  %v249 = vunpack.c.l.b16 %v74
  %v250 = vunpack.c.l.b16 %v75
  %v251 = vunpack.c.l.b16 %v76
  %v252 = vunpack.c.l.b16 %v77
  %v253 = vunpack.c.l.b16 %v78
  %v254 = vunpack.c.l.b16 %v79
  %v255 = vunpack.c.l.b16 %v80
  %v256 = vunpack.c.l.b16 %v81
  %v257 = vunpack.c.l.b16 %v82
  %v258 = vunpack.c.l.b16 %v83
  %v259 = vunpack.c.l.b16 %v84
  %v260 = vunpack.c.l.b16 %v85
  %v261 = vunpack.c.l.b16 %v86
  %v262 = vpack.c.b16 %v199, %v198
  %v263 = vpack.c.b16 %v201, %v200
  %v264 = vpack.c.b16 %v203, %v202
  %v265 = vpack.c.b16 %v205, %v204
  %v266 = vpack.c.b16 %v207, %v206
  %v267 = vpack.c.b16 %v209, %v208
  %v268 = vpack.c.b16 %v211, %v210
  %v269 = vpack.c.b16 %v213, %v212
  %v270 = vpack.c.b16 %v215, %v214
  %v271 = vpack.c.b16 %v217, %v216
  %v272 = vpack.c.b16 %v219, %v218
  %v273 = vpack.c.b16 %v221, %v220
  %v274 = vpack.c.b16 %v223, %v222
  %v275 = vpack.c.b16 %v225, %v224
  %v276 = vpack.c.b16 %v227, %v226
  %v277 = vpack.c.b16 %v229, %v228
  %v278 = vpack.c.b16 %v231, %v230
  %v279 = vpack.c.b16 %v233, %v232
  %v280 = vpack.c.b16 %v235, %v234
  %v281 = vpack.c.b16 %v237, %v236
  %v282 = vpack.c.b16 %v239, %v238
  %v283 = vpack.c.b16 %v241, %v240
  %v284 = vpack.c.b16 %v243, %v242
  %v285 = vpack.c.b16 %v245, %v244
  %v286 = vpack.c.b16 %v247, %v246
  %v287 = vpack.c.b16 %v249, %v248
  %v288 = vpack.c.b16 %v251, %v250
  %v289 = vpack.c.b16 %v253, %v252
  %v290 = vpack.c.b16 %v255, %v254
  %v291 = vpack.c.b16 %v257, %v256
  %v292 = vpack.c.b16 %v259, %v258
  %v293 = vpack.c.b16 %v261, %v260
  %326 = vmatprep.subr.bf16.mxu0 0
  %327 = vmatpush1.bf16.msra.mxu0 %v262
  %328 = vmatprep.subr.bf16.mxu0 0
  %329 = vmatpush1.bf16.msra.mxu0 %v263
  %330 = vmatprep.subr.bf16.mxu0 0
  %331 = vmatpush1.bf16.msra.mxu0 %v264
  %332 = vmatprep.subr.bf16.mxu0 0
  %333 = vmatpush1.bf16.msra.mxu0 %v265
  %334 = vmatprep.subr.bf16.mxu0 0
  %335 = vmatpush1.bf16.msra.mxu0 %v266
  %336 = vmatprep.subr.bf16.mxu0 0
  %337 = vmatpush1.bf16.msra.mxu0 %v267
  %338 = vmatprep.subr.bf16.mxu0 0
  %339 = vmatpush1.bf16.msra.mxu0 %v268
  %340 = vmatprep.subr.bf16.mxu0 0
  %341 = vmatpush1.bf16.msra.mxu0 %v269
  %342 = vmatprep.subr.bf16.mxu0 0
  %343 = vmatpush1.bf16.msra.mxu0 %v270
  %344 = vmatprep.subr.bf16.mxu0 0
  %345 = vmatpush1.bf16.msra.mxu0 %v271
  %346 = vmatprep.subr.bf16.mxu0 0
  %347 = vmatpush1.bf16.msra.mxu0 %v272
  %348 = vmatprep.subr.bf16.mxu0 0
  %349 = vmatpush1.bf16.msra.mxu0 %v273
  %350 = vmatprep.subr.bf16.mxu0 0
  %351 = vmatpush1.bf16.msra.mxu0 %v274
  %352 = vmatprep.subr.bf16.mxu0 0
  %353 = vmatpush1.bf16.msra.mxu0 %v275
  %354 = vmatprep.subr.bf16.mxu0 0
  %355 = vmatpush1.bf16.msra.mxu0 %v276
  %356 = vmatprep.subr.bf16.mxu0 0
  %357 = vmatpush1.bf16.msra.mxu0 %v277
  %358 = vmatprep.mubr.bf16.mxu0 %v119
  %359 = vmatmul.mubr.bf16.gmra.mrb[0].mxu0 %v118
  %v360 = vpop.f32.mrb[0].mxu0
  %v361 = vadd.f32 %v92, %v360
  %v362 = vpop.f32.mrb[0].mxu0
  %v363 = vpop.f32.mrb[0].mxu0
  %v364 = vadd.f32 %v92, %v363
  %v365 = vpop.f32.mrb[0].mxu0
  %366 = vmatprep.mubr.bf16.mxu0 %v123
  %367 = vmatmul.mubr.bf16.gmra.mrb[0].mxu0 %v122
  %v368 = vpop.f32.mrb[0].mxu0
  %v369 = vadd.f32 %v92, %v368
  %v370 = vpop.f32.mrb[0].mxu0
  %v371 = vpop.f32.mrb[0].mxu0
  %v372 = vadd.f32 %v92, %v371
  %v373 = vpop.f32.mrb[0].mxu0
  %374 = vdwg.mxu0
  %375 = vmatprep.subr.bf16.mxu0 0
  %376 = vmatpush1.bf16.msra.mxu0 %v278
  %377 = vmatprep.subr.bf16.mxu0 0
  %378 = vmatpush1.bf16.msra.mxu0 %v279
  %379 = vmatprep.subr.bf16.mxu0 0
  %380 = vmatpush1.bf16.msra.mxu0 %v280
  %381 = vmatprep.subr.bf16.mxu0 0
  %382 = vmatpush1.bf16.msra.mxu0 %v281
  %383 = vmatprep.subr.bf16.mxu0 0
  %384 = vmatpush1.bf16.msra.mxu0 %v282
  %385 = vmatprep.subr.bf16.mxu0 0
  %386 = vmatpush1.bf16.msra.mxu0 %v283
  %387 = vmatprep.subr.bf16.mxu0 0
  %388 = vmatpush1.bf16.msra.mxu0 %v284
  %389 = vmatprep.subr.bf16.mxu0 0
  %390 = vmatpush1.bf16.msra.mxu0 %v285
  %391 = vmatprep.subr.bf16.mxu0 0
  %392 = vmatpush1.bf16.msra.mxu0 %v286
  %393 = vmatprep.subr.bf16.mxu0 0
  %394 = vmatpush1.bf16.msra.mxu0 %v287
  %395 = vmatprep.subr.bf16.mxu0 0
  %396 = vmatpush1.bf16.msra.mxu0 %v288
  %397 = vmatprep.subr.bf16.mxu0 0
  %398 = vmatpush1.bf16.msra.mxu0 %v289
  %399 = vmatprep.subr.bf16.mxu0 0
  %400 = vmatpush1.bf16.msra.mxu0 %v290
  %401 = vmatprep.subr.bf16.mxu0 0
  %402 = vmatpush1.bf16.msra.mxu0 %v291
  %403 = vmatprep.subr.bf16.mxu0 0
  %404 = vmatpush1.bf16.msra.mxu0 %v292
  %405 = vmatprep.subr.bf16.mxu0 0
  %406 = vmatpush1.bf16.msra.mxu0 %v293
  %407 = vmatprep.mubr.bf16.mxu0 %v121
  %408 = vmatmul.mubr.bf16.gmra.mrb[0].mxu0 %v120
  %v409 = vpop.f32.mrb[0].mxu0
  %v410 = vadd.f32 %v361, %v409
  %v411 = vpop.f32.mrb[0].mxu0
  %v412 = vpop.f32.mrb[0].mxu0
  %v413 = vadd.f32 %v364, %v412
  %v414 = vpop.f32.mrb[0].mxu0
  %415 = vmatprep.mubr.bf16.mxu0 %v125
  %416 = vmatmul.mubr.bf16.gmra.mrb[0].mxu0 %v124
  %v417 = vpop.f32.mrb[0].mxu0
  %v418 = vadd.f32 %v369, %v417
  %v419 = vpop.f32.mrb[0].mxu0
  %v420 = vpop.f32.mrb[0].mxu0
  %v421 = vadd.f32 %v372, %v420
  %v422 = vpop.f32.mrb[0].mxu0
  %423 = vdwg.mxu0
  %v424 = vmax.f32 %v410, 0.0
  %v425 = vmax.f32 %v413, 0.0
  %v426 = vmax.f32 %v418, 0.0
  %v427 = vmax.f32 %v421, 0.0
  %v428 = vpack.c.bf16 %v425, %v424
  %v429 = vpack.c.bf16 %v427, %v426
  %v432 = vunpack.c.l.b16 %v428
  %v433 = vunpack.c.h.b16 %v428
  %v434 = vunpack.c.l.b16 %v429
  %v435 = vunpack.c.h.b16 %v429
  %v436 = vpack.c.b16 %v432, %v432
  %v437 = vpack.c.b16 %v433, %v433
  %v438 = vpack.c.b16 %v434, %v434
  %v439 = vpack.c.b16 %v435, %v435
  %444 = vst [vmem:[%s3] sm:$0xf] %v436
  %445 = vst [vmem:[%s3 + $0x4] sm:$0xf] %v437
  %446 = vst [vmem:[%s3 + $0x8] sm:$0xf] %v438
  %447 = vst [vmem:[%s3 + $0xc] sm:$0xf] %v439
  // Predicated region
  $region14: #{depth_net_fwd.13} parent=0 // pred_check
    _
  $region15: #{depth_net_fwd.13} parent=0 // pred_check_branch
    %449 = sbr.rel (0) target = $region17
  $region16: #{depth_net_fwd.13} parent=0 // pred_region
    _
  $region17: #{depth_net_fwd.13} parent=0 // pred_fallthru
    _
  // Predicated region
  $region18: #{depth_net_fwd.13} parent=0 // pred_check
    _
  $region19: #{depth_net_fwd.13} parent=0 // pred_check_branch
    %451 = sbr.rel (0) target = $region21
  $region20: #{depth_net_fwd.13} parent=0 // pred_region
    _
  $region21: #{depth_net_fwd.13} parent=0 // pred_fallthru
    _

// kernel: depth_net_fwd.9
$region0: #{depth_net_fwd.9}
  #allocation0 [shape = 'u32[]', space=smem, size = 0x4, offset = 0x4, fixed_abs, tag = 'smem constant byte address 0x4 - core index']
  #allocation1 [shape = 'u32[144,128]{1,0:T(1,128)}', space=vmem, size = 0x12000, scoped, tag = 'internal scratch']
  #allocation2 [shape = 'f32[32,128]{1,0:T(8,128)}', space=vmem, size = 0x4000, scoped, tag = 'scratch operand']
  %s0 = inlined_call_operand.vmem [shape: bf16[2,16,128], index: 0, kind: input, shape index: {}]
  %s1 = inlined_call_operand.vmem [shape: bf16[128,128], index: 1, kind: input, shape index: {}]
  %s2 = inlined_call_operand.vmem [shape: f32[1,128], index: 2, kind: input, shape index: {}]
  %s3 = inlined_call_operand.vmem [shape: bf16[9,128,128], index: 3, kind: input, shape index: {}]
  %s4 = inlined_call_operand.vmem [shape: f32[1,128], index: 4, kind: input, shape index: {}]
  %s5 = inlined_call_operand.vmem [shape: bf16[128,128], index: 5, kind: input, shape index: {}]
  %s6 = inlined_call_operand.vmem [shape: f32[1,128], index: 6, kind: input, shape index: {}]
  %s7 = inlined_call_operand.vmem [shape: bf16[128,128], index: 7, kind: input, shape index: {}]
  %s8 = inlined_call_operand.vmem [shape: f32[1,128], index: 8, kind: input, shape index: {}]
  %s9 = inlined_call_operand.vmem [shape: bf16[2,16,128], index: 9, kind: output, shape index: {0}]
  %s10 = inlined_call_operand.vmem [shape: bf16[2,16,128], index: 10, kind: output, shape index: {1}]
  %11 = xla_tuple %s9, %s10
  %s12 = sld [smem:[#allocation0]]
  $region77: #{depth_net_fwd.9} parent=0
    _
  %s14 = ssub.s32 1, %s12
  %s15 = scalar_select 0, %s14, %s12
  loop: start=0, step=1, limit=4
  $region2: #{depth_net_fwd.9} parent=0 // loop_pre_header
    _
  $region3: #{depth_net_fwd.9} parent=0 // loop_header
    %s17 = sphi 0, %s21
    %p18 = scmp.ge.s32.totalorder %s17, 4
    %s27 = sphi 0, %s29
    %s30 = sphi 0, %s27
    %s31 = sphi 0, %s30
    %s47 = sphi 0, %s31
    %s51 = sphi 0, %s51
    %s53 = sphi 0, %s51
    %s54 = sphi 0, %s53
    %s68 = sphi 0, %s54
    %s72 = sphi 0, %s72
    %s74 = sphi 0, %s72
    %s75 = sphi 0, %s74
    %s89 = sphi 0, %s75
    %s93 = sphi 0, %s93
    %s95 = sphi 0, %s93
    %s96 = sphi 0, %s95
    %s110 = sphi 0, %s96
    %s114 = sphi 0, %s114
    %s116 = sphi 0, %s114
    %s117 = sphi 0, %s116
    %s131 = sphi 0, %s117
    %s135 = sphi 0, %s135
    %s137 = sphi 0, %s135
    %s138 = sphi 0, %s137
    %s152 = sphi 0, %s138
    %s156 = sphi 0, %s156
    %s158 = sphi 0, %s156
    %s159 = sphi 0, %s158
    %s173 = sphi 0, %s159
    %s177 = sphi 0, %s177
    %s179 = sphi 0, %s177
    %s180 = sphi 0, %s179
    %s194 = sphi 0, %s180
    %s198 = sphi 0, %s198
    %s200 = sphi 0, %s198
    %s201 = sphi 0, %s200
    %s215 = sphi 0, %s201
    %s221 = sphi 0, %s223
    %s224 = sphi 0, %s221
    %s225 = sphi 0, %s224
    %s241 = sphi 0, %s225
    %s247 = sphi 0, %s249
    %s250 = sphi 0, %s247
    %s251 = sphi 0, %s250
    %s267 = sphi 0, %s251
  $region4: #{depth_net_fwd.9} parent=0 // loop_header_branch
    %20 = sbr.rel (%p18) target = $region8
  $region5: #{depth_net_fwd.9} parent=0 // loop_body
    %s22 = ssub.s32 %s17, 1
    %s23 = ssub.s32 %s17, 2
    %s24 = sadd.s32 %s17, 1
    %s25 = ssub.s32 %s17, %s24
    %p26 = scmp.eq.s32.totalorder %s25, 0
    %s28 = sadd.s32 %s27, 1
    %s29 = scalar_select %p26, %s27, %s28
    %p32 = pneg %p26
    %p33 = scmp.eq.s32.totalorder %s17, 1
    %p34 = por %p32, %p33
    %p35 = scmp.ne.s32.totalorder %s27, %s30
    %p36 = scmp.eq.s32.totalorder %s17, 0
    %p37 = por %p35, %p36
    %p38 = scmp.ne.s32.totalorder %s27, %s30
    %p39 = scmp.eq.s32.totalorder %s22, 1
    %p40 = por %p38, %p39
    %p41 = scmp.ne.s32.totalorder %s30, %s31
    %p42 = scmp.eq.s32.totalorder %s22, 0
    %p43 = por %p41, %p42
    %p44 = scmp.ne.s32.totalorder %s30, %s31
    %p45 = scmp.eq.s32.totalorder %s23, 1
    %p46 = por %p44, %p45
    %p48 = scmp.ne.s32.totalorder %s31, %s47
    %p49 = scmp.eq.s32.totalorder %s23, 0
    %p50 = por %p48, %p49
    %s52 = sadd.s32 %s51, 1
    %p55 = scmp.eq.s32.totalorder %s17, 1
    %p56 = scmp.ne.s32.totalorder %s51, %s53
    %p57 = scmp.eq.s32.totalorder %s17, 0
    %p58 = por %p56, %p57
    %p59 = scmp.ne.s32.totalorder %s51, %s53
    %p60 = scmp.eq.s32.totalorder %s22, 1
    %p61 = por %p59, %p60
    %p62 = scmp.ne.s32.totalorder %s53, %s54
    %p63 = scmp.eq.s32.totalorder %s22, 0
    %p64 = por %p62, %p63
    %p65 = scmp.ne.s32.totalorder %s53, %s54
    %p66 = scmp.eq.s32.totalorder %s23, 1
    %p67 = por %p65, %p66
    %p69 = scmp.ne.s32.totalorder %s54, %s68
    %p70 = scmp.eq.s32.totalorder %s23, 0
    %p71 = por %p69, %p70
    %s73 = sadd.s32 %s72, 1
    %p76 = scmp.eq.s32.totalorder %s17, 1
    %p77 = scmp.ne.s32.totalorder %s72, %s74
    %p78 = scmp.eq.s32.totalorder %s17, 0
    %p79 = por %p77, %p78
    %p80 = scmp.ne.s32.totalorder %s72, %s74
    %p81 = scmp.eq.s32.totalorder %s22, 1
    %p82 = por %p80, %p81
    %p83 = scmp.ne.s32.totalorder %s74, %s75
    %p84 = scmp.eq.s32.totalorder %s22, 0
    %p85 = por %p83, %p84
    %p86 = scmp.ne.s32.totalorder %s74, %s75
    %p87 = scmp.eq.s32.totalorder %s23, 1
    %p88 = por %p86, %p87
    %p90 = scmp.ne.s32.totalorder %s75, %s89
    %p91 = scmp.eq.s32.totalorder %s23, 0
    %p92 = por %p90, %p91
    %s94 = sadd.s32 %s93, 1
    %p97 = scmp.eq.s32.totalorder %s17, 1
    %p98 = scmp.ne.s32.totalorder %s93, %s95
    %p99 = scmp.eq.s32.totalorder %s17, 0
    %p100 = por %p98, %p99
    %p101 = scmp.ne.s32.totalorder %s93, %s95
    %p102 = scmp.eq.s32.totalorder %s22, 1
    %p103 = por %p101, %p102
    %p104 = scmp.ne.s32.totalorder %s95, %s96
    %p105 = scmp.eq.s32.totalorder %s22, 0
    %p106 = por %p104, %p105
    %p107 = scmp.ne.s32.totalorder %s95, %s96
    %p108 = scmp.eq.s32.totalorder %s23, 1
    %p109 = por %p107, %p108
    %p111 = scmp.ne.s32.totalorder %s96, %s110
    %p112 = scmp.eq.s32.totalorder %s23, 0
    %p113 = por %p111, %p112
    %s115 = sadd.s32 %s114, 1
    %p118 = scmp.eq.s32.totalorder %s17, 1
    %p119 = scmp.ne.s32.totalorder %s114, %s116
    %p120 = scmp.eq.s32.totalorder %s17, 0
    %p121 = por %p119, %p120
    %p122 = scmp.ne.s32.totalorder %s114, %s116
    %p123 = scmp.eq.s32.totalorder %s22, 1
    %p124 = por %p122, %p123
    %p125 = scmp.ne.s32.totalorder %s116, %s117
    %p126 = scmp.eq.s32.totalorder %s22, 0
    %p127 = por %p125, %p126
    %p128 = scmp.ne.s32.totalorder %s116, %s117
    %p129 = scmp.eq.s32.totalorder %s23, 1
    %p130 = por %p128, %p129
    %p132 = scmp.ne.s32.totalorder %s117, %s131
    %p133 = scmp.eq.s32.totalorder %s23, 0
    %p134 = por %p132, %p133
    %s136 = sadd.s32 %s135, 1
    %p139 = scmp.eq.s32.totalorder %s17, 1
    %p140 = scmp.ne.s32.totalorder %s135, %s137
    %p141 = scmp.eq.s32.totalorder %s17, 0
    %p142 = por %p140, %p141
    %p143 = scmp.ne.s32.totalorder %s135, %s137
    %p144 = scmp.eq.s32.totalorder %s22, 1
    %p145 = por %p143, %p144
    %p146 = scmp.ne.s32.totalorder %s137, %s138
    %p147 = scmp.eq.s32.totalorder %s22, 0
    %p148 = por %p146, %p147
    %p149 = scmp.ne.s32.totalorder %s137, %s138
    %p150 = scmp.eq.s32.totalorder %s23, 1
    %p151 = por %p149, %p150
    %p153 = scmp.ne.s32.totalorder %s138, %s152
    %p154 = scmp.eq.s32.totalorder %s23, 0
    %p155 = por %p153, %p154
    %s157 = sadd.s32 %s156, 1
    %p160 = scmp.eq.s32.totalorder %s17, 1
    %p161 = scmp.ne.s32.totalorder %s156, %s158
    %p162 = scmp.eq.s32.totalorder %s17, 0
    %p163 = por %p161, %p162
    %p164 = scmp.ne.s32.totalorder %s156, %s158
    %p165 = scmp.eq.s32.totalorder %s22, 1
    %p166 = por %p164, %p165
    %p167 = scmp.ne.s32.totalorder %s158, %s159
    %p168 = scmp.eq.s32.totalorder %s22, 0
    %p169 = por %p167, %p168
    %p170 = scmp.ne.s32.totalorder %s158, %s159
    %p171 = scmp.eq.s32.totalorder %s23, 1
    %p172 = por %p170, %p171
    %p174 = scmp.ne.s32.totalorder %s159, %s173
    %p175 = scmp.eq.s32.totalorder %s23, 0
    %p176 = por %p174, %p175
    %s178 = sadd.s32 %s177, 1
    %p181 = scmp.eq.s32.totalorder %s17, 1
    %p182 = scmp.ne.s32.totalorder %s177, %s179
    %p183 = scmp.eq.s32.totalorder %s17, 0
    %p184 = por %p182, %p183
    %p185 = scmp.ne.s32.totalorder %s177, %s179
    %p186 = scmp.eq.s32.totalorder %s22, 1
    %p187 = por %p185, %p186
    %p188 = scmp.ne.s32.totalorder %s179, %s180
    %p189 = scmp.eq.s32.totalorder %s22, 0
    %p190 = por %p188, %p189
    %p191 = scmp.ne.s32.totalorder %s179, %s180
    %p192 = scmp.eq.s32.totalorder %s23, 1
    %p193 = por %p191, %p192
    %p195 = scmp.ne.s32.totalorder %s180, %s194
    %p196 = scmp.eq.s32.totalorder %s23, 0
    %p197 = por %p195, %p196
    %s199 = sadd.s32 %s198, 1
    %p202 = scmp.eq.s32.totalorder %s17, 1
    %p203 = scmp.ne.s32.totalorder %s198, %s200
    %p204 = scmp.eq.s32.totalorder %s17, 0
    %p205 = por %p203, %p204
    %p206 = scmp.ne.s32.totalorder %s198, %s200
    %p207 = scmp.eq.s32.totalorder %s22, 1
    %p208 = por %p206, %p207
    %p209 = scmp.ne.s32.totalorder %s200, %s201
    %p210 = scmp.eq.s32.totalorder %s22, 0
    %p211 = por %p209, %p210
    %p212 = scmp.ne.s32.totalorder %s200, %s201
    %p213 = scmp.eq.s32.totalorder %s23, 1
    %p214 = por %p212, %p213
    %p216 = scmp.ne.s32.totalorder %s201, %s215
    %p217 = scmp.eq.s32.totalorder %s23, 0
    %p218 = por %p216, %p217
    %s219 = ssub.s32 %s17, %s24
    %p220 = scmp.eq.s32.totalorder %s219, 0
    %s222 = sadd.s32 %s221, 1
    %s223 = scalar_select %p220, %s221, %s222
    %p226 = pneg %p220
    %p227 = scmp.eq.s32.totalorder %s17, 1
    %p228 = por %p226, %p227
    %p229 = scmp.ne.s32.totalorder %s221, %s224
    %p230 = scmp.eq.s32.totalorder %s17, 0
    %p231 = por %p229, %p230
    %p232 = scmp.ne.s32.totalorder %s221, %s224
    %p233 = scmp.eq.s32.totalorder %s22, 1
    %p234 = por %p232, %p233
    %p235 = scmp.ne.s32.totalorder %s224, %s225
    %p236 = scmp.eq.s32.totalorder %s22, 0
    %p237 = por %p235, %p236
    %p238 = scmp.ne.s32.totalorder %s224, %s225
    %p239 = scmp.eq.s32.totalorder %s23, 1
    %p240 = por %p238, %p239
    %p242 = scmp.ne.s32.totalorder %s225, %s241
    %p243 = scmp.eq.s32.totalorder %s23, 0
    %p244 = por %p242, %p243
    %s245 = ssub.s32 %s17, %s24
    %p246 = scmp.eq.s32.totalorder %s245, 0
    %s248 = sadd.s32 %s247, 1
    %s249 = scalar_select %p246, %s247, %s248
    %p252 = pneg %p246
    %p253 = scmp.eq.s32.totalorder %s17, 1
    %p254 = por %p252, %p253
    %p255 = scmp.ne.s32.totalorder %s247, %s250
    %p256 = scmp.eq.s32.totalorder %s17, 0
    %p257 = por %p255, %p256
    %p258 = scmp.ne.s32.totalorder %s247, %s250
    %p259 = scmp.eq.s32.totalorder %s22, 1
    %p260 = por %p258, %p259
    %p261 = scmp.ne.s32.totalorder %s250, %s251
    %p262 = scmp.eq.s32.totalorder %s22, 0
    %p263 = por %p261, %p262
    %p264 = scmp.ne.s32.totalorder %s250, %s251
    %p265 = scmp.eq.s32.totalorder %s23, 1
    %p266 = por %p264, %p265
    %p268 = scmp.ne.s32.totalorder %s251, %s267
    %p269 = scmp.eq.s32.totalorder %s23, 0
    %p270 = por %p268, %p269
    %p271 = scmp.le.s32.totalorder 1, %s17
    %p272 = scmp.lt.s32.totalorder %s17, 3
    %p273 = pnand %p271, %p272
    %p274 = pneg %p273
    // Predicated region
    $region9: #{depth_net_fwd.9} parent=5 // pred_check
      _
    $region10: #{depth_net_fwd.9} parent=5 // pred_check_branch
      %276 = sbr.rel (%p273) target = $region12
    $region11: #{depth_net_fwd.9} parent=5 // pred_region
      %s277 = ssub.s32 %s17, 1
      // Predicated region
      $region13: #{depth_net_fwd.9} parent=11 // pred_check
        %p278 = pneg %p64
      $region14: #{depth_net_fwd.9} parent=11 // pred_check_branch
        %280 = sbr.rel (%p278) target = $region16
      $region15: #{depth_net_fwd.9} parent=11 // pred_region
        _
      $region16: #{depth_net_fwd.9} parent=11 // pred_fallthru
        _
      // Predicated region
      $region17: #{depth_net_fwd.9} parent=11 // pred_check
        %p281 = pneg %p85
      $region18: #{depth_net_fwd.9} parent=11 // pred_check_branch
        %283 = sbr.rel (%p281) target = $region20
      $region19: #{depth_net_fwd.9} parent=11 // pred_region
        _
      $region20: #{depth_net_fwd.9} parent=11 // pred_fallthru
        _
      // Predicated region
      $region21: #{depth_net_fwd.9} parent=11 // pred_check
        %p284 = pneg %p106
      $region22: #{depth_net_fwd.9} parent=11 // pred_check_branch
        %286 = sbr.rel (%p284) target = $region24
      $region23: #{depth_net_fwd.9} parent=11 // pred_region
        _
      $region24: #{depth_net_fwd.9} parent=11 // pred_fallthru
        _
      // Predicated region
      $region25: #{depth_net_fwd.9} parent=11 // pred_check
        %p287 = pneg %p127
      $region26: #{depth_net_fwd.9} parent=11 // pred_check_branch
        %289 = sbr.rel (%p287) target = $region28
      $region27: #{depth_net_fwd.9} parent=11 // pred_region
        _
      $region28: #{depth_net_fwd.9} parent=11 // pred_fallthru
        _
      // Predicated region
      $region29: #{depth_net_fwd.9} parent=11 // pred_check
        %p290 = pneg %p148
      $region30: #{depth_net_fwd.9} parent=11 // pred_check_branch
        %292 = sbr.rel (%p290) target = $region32
      $region31: #{depth_net_fwd.9} parent=11 // pred_region
        _
      $region32: #{depth_net_fwd.9} parent=11 // pred_fallthru
        _
      // Predicated region
      $region33: #{depth_net_fwd.9} parent=11 // pred_check
        %p293 = pneg %p169
      $region34: #{depth_net_fwd.9} parent=11 // pred_check_branch
        %295 = sbr.rel (%p293) target = $region36
      $region35: #{depth_net_fwd.9} parent=11 // pred_region
        _
      $region36: #{depth_net_fwd.9} parent=11 // pred_fallthru
        _
      // Predicated region
      $region37: #{depth_net_fwd.9} parent=11 // pred_check
        %p296 = pneg %p190
      $region38: #{depth_net_fwd.9} parent=11 // pred_check_branch
        %298 = sbr.rel (%p296) target = $region40
      $region39: #{depth_net_fwd.9} parent=11 // pred_region
        _
      $region40: #{depth_net_fwd.9} parent=11 // pred_fallthru
        _
      // Predicated region
      $region41: #{depth_net_fwd.9} parent=11 // pred_check
        %p299 = pneg %p211
      $region42: #{depth_net_fwd.9} parent=11 // pred_check_branch
        %301 = sbr.rel (%p299) target = $region44
      $region43: #{depth_net_fwd.9} parent=11 // pred_region
        _
      $region44: #{depth_net_fwd.9} parent=11 // pred_fallthru
        _
    $region12: #{depth_net_fwd.9} parent=5 // pred_fallthru
      _
    %p302 = scmp.lt.s32.totalorder %s17, 2
    // Predicated region
    $region45: #{depth_net_fwd.9} parent=5 // pred_check
      %p303 = pneg %p302
    $region46: #{depth_net_fwd.9} parent=5 // pred_check_branch
      %305 = sbr.rel (%p303) target = $region48
    $region47: #{depth_net_fwd.9} parent=5 // pred_region
      // Predicated region
      $region49: #{depth_net_fwd.9} parent=47 // pred_check
        %p306 = pneg %p37
      $region50: #{depth_net_fwd.9} parent=47 // pred_check_branch
        %308 = sbr.rel (%p306) target = $region52
      $region51: #{depth_net_fwd.9} parent=47 // pred_region
        %p309 = scmp.lt.s32.totalorder %s17, 1
        %s310 = scalar_select %p309, %s17, 1
        %s311 = smul.addr %s310, 2
        %s312 = smul.addr %s311, 4
        %s313 = scalar_lea.vmem %s0, %s312
      $region52: #{depth_net_fwd.9} parent=47 // pred_fallthru
        _
    $region48: #{depth_net_fwd.9} parent=5 // pred_fallthru
      _
    %p314 = scmp.le.s32.totalorder 1, %s17
    %p315 = scmp.lt.s32.totalorder %s17, 3
    %p316 = pnand %p314, %p315
    %p317 = pneg %p316
    // Predicated region
    $region53: #{depth_net_fwd.9} parent=5 // pred_check
      _
    $region54: #{depth_net_fwd.9} parent=5 // pred_check_branch
      %319 = sbr.rel (%p316) target = $region56
    $region55: #{depth_net_fwd.9} parent=5 // pred_region
      %s320 = ssub.s32 %s17, 1
      %p321 = scmp.lt.s32.totalorder %s22, 1
      %s322 = scalar_select %p321, %s22, 1
      %s323 = smul.addr %s322, 2
      %s324 = smul.addr %s323, 4
      %s325 = scalar_lea.vmem %s0, %s324
      %p326 = pneg %p43
      %p327 = pneg %p40
      %p328 = pneg %p64
      %p329 = pneg %p61
      %p330 = pneg %p85
      %p331 = pneg %p82
      %p332 = pneg %p106
      %p333 = pneg %p103
      %p334 = pneg %p127
      %p335 = pneg %p124
      %p336 = pneg %p148
      %p337 = pneg %p145
      %p338 = pneg %p169
      %p339 = pneg %p166
      %p340 = pneg %p190
      %p341 = pneg %p187
      %p342 = pneg %p211
      %p343 = pneg %p208
      %p344 = pneg %p237
      %p345 = pneg %p234
      %p346 = scmp.lt.s32.totalorder %s22, 1
      %s347 = scalar_select %p346, %s22, 1
      %s348 = smul.addr %s347, 2
      %s349 = smul.addr %s348, 4
      %s350 = scalar_lea.vmem %s9, %s349
      %p351 = pneg %p263
      %p352 = pneg %p260
      %p353 = scmp.lt.s32.totalorder %s22, 1
      %s354 = scalar_select %p353, %s22, 1
      %s355 = smul.addr %s354, 2
      %s356 = smul.addr %s355, 4
      %s357 = scalar_lea.vmem %s10, %s356
      %p358 = scmp.lt.s32.totalorder %s22, 1
      %s359 = scalar_select %p358, %s22, 1
      %s360 = smul.addr %s359, 2
      %s361 = smul.addr %s360, 4
      %s362 = scalar_lea.vmem %s0, %s361
      %p363 = scmp.lt.s32.totalorder %s22, 1
      %s364 = scalar_select %p363, %s22, 1
      %s365 = smul.addr %s364, 2
      %s366 = smul.addr %s365, 4
      %s367 = scalar_lea.vmem %s9, %s366
      %p368 = scmp.lt.s32.totalorder %s22, 1
      %s369 = scalar_select %p368, %s22, 1
      %s370 = smul.addr %s369, 2
      %s371 = smul.addr %s370, 4
      %s372 = scalar_lea.vmem %s10, %s371
      %v374 = vld [vmem:[%s362] sm:$0xf]
      %v375 = vld [vmem:[%s362 + $0x4] sm:$0xf]
      %v376 = vunpack.c.l.bf16 %v374
      %v377 = vunpack.c.l.bf16 %v375
      %v378 = vld [vmem:[%s1] sm:$0xf]
      %v379 = vld [vmem:[%s1 + $0x4] sm:$0xf]
      %v380 = vld [vmem:[%s1 + $0x8] sm:$0xf]
      %v381 = vld [vmem:[%s1 + $0xc] sm:$0xf]
      %v382 = vld [vmem:[%s1 + $0x10] sm:$0xf]
      %v383 = vld [vmem:[%s1 + $0x14] sm:$0xf]
      %v384 = vld [vmem:[%s1 + $0x18] sm:$0xf]
      %v385 = vld [vmem:[%s1 + $0x1c] sm:$0xf]
      %v386 = vld [vmem:[%s1 + $0x20] sm:$0xf]
      %v387 = vld [vmem:[%s1 + $0x24] sm:$0xf]
      %v388 = vld [vmem:[%s1 + $0x28] sm:$0xf]
      %v389 = vld [vmem:[%s1 + $0x2c] sm:$0xf]
      %v390 = vld [vmem:[%s1 + $0x30] sm:$0xf]
      %v391 = vld [vmem:[%s1 + $0x34] sm:$0xf]
      %v392 = vld [vmem:[%s1 + $0x38] sm:$0xf]
      %v393 = vld [vmem:[%s1 + $0x3c] sm:$0xf]
      %v394 = vld [vmem:[%s2] sm:$0x1]
      %v396 = vlaneseq
      %v397 = vshrl.u32 %v396, 7
      %v398 = vsub.s32 0, %v397
      %v399 = vrot.slane %v394, %v398
      %v403 = vunpack.c.l.b16 %v374
      %v404 = vunpack.c.l.b16 %v375
      %v405 = vpack.c.b16 %v404, %v403
      %v423 = vunpack.c.l.b16 %v378
      %v424 = vunpack.c.l.b16 %v379
      %v425 = vunpack.c.l.b16 %v380
      %v426 = vunpack.c.l.b16 %v381
      %v427 = vunpack.c.l.b16 %v382
      %v428 = vunpack.c.l.b16 %v383
      %v429 = vunpack.c.l.b16 %v384
      %v430 = vunpack.c.l.b16 %v385
      %v431 = vunpack.c.l.b16 %v386
      %v432 = vunpack.c.l.b16 %v387
      %v433 = vunpack.c.l.b16 %v388
      %v434 = vunpack.c.l.b16 %v389
      %v435 = vunpack.c.l.b16 %v390
      %v436 = vunpack.c.l.b16 %v391
      %v437 = vunpack.c.l.b16 %v392
      %v438 = vunpack.c.l.b16 %v393
      %v439 = vpack.c.b16 %v424, %v423
      %v440 = vpack.c.b16 %v426, %v425
      %v441 = vpack.c.b16 %v428, %v427
      %v442 = vpack.c.b16 %v430, %v429
      %v443 = vpack.c.b16 %v432, %v431
      %v444 = vpack.c.b16 %v434, %v433
      %v445 = vpack.c.b16 %v436, %v435
      %v446 = vpack.c.b16 %v438, %v437
      %455 = vmatprep.subr.bf16.mxu0 0
      %456 = vmatpush1.bf16.msra.mxu0 %v439
      %457 = vmatprep.subr.bf16.mxu0 0
      %458 = vmatpush1.bf16.msra.mxu0 %v440
      %459 = vmatprep.subr.bf16.mxu0 0
      %460 = vmatpush1.bf16.msra.mxu0 %v441
      %461 = vmatprep.subr.bf16.mxu0 0
      %462 = vmatpush1.bf16.msra.mxu0 %v442
      %463 = vmatprep.subr.bf16.mxu0 0
      %464 = vmatpush1.bf16.msra.mxu0 %v443
      %465 = vmatprep.subr.bf16.mxu0 0
      %466 = vmatpush1.bf16.msra.mxu0 %v444
      %467 = vmatprep.subr.bf16.mxu0 0
      %468 = vmatpush1.bf16.msra.mxu0 %v445
      %469 = vmatprep.subr.bf16.mxu0 0
      %470 = vmatpush1.bf16.msra.mxu0 %v446
      %471 = vmatprep.subr.bf16.mxu0 0
      %472 = vmatpush1.bf16.msra.mxu0 0
      %473 = vmatprep.subr.bf16.mxu0 0
      %474 = vmatpush1.bf16.msra.mxu0 0
      %475 = vmatprep.subr.bf16.mxu0 0
      %476 = vmatpush1.bf16.msra.mxu0 0
      %477 = vmatprep.subr.bf16.mxu0 0
      %478 = vmatpush1.bf16.msra.mxu0 0
      %479 = vmatprep.subr.bf16.mxu0 0
      %480 = vmatpush1.bf16.msra.mxu0 0
      %481 = vmatprep.subr.bf16.mxu0 0
      %482 = vmatpush1.bf16.msra.mxu0 0
      %483 = vmatprep.subr.bf16.mxu0 0
      %484 = vmatpush1.bf16.msra.mxu0 0
      %485 = vmatprep.subr.bf16.mxu0 0
      %486 = vmatpush1.bf16.msra.mxu0 0
      %487 = vmatprep.mubr.bf16.mxu0 0
      %488 = vmatmul.mubr.bf16.gmra.mrb[0].mxu0 %v405
      %v489 = vpop.f32.mrb[0].mxu0
      %v490 = vadd.f32 %v399, %v489
      %v491 = vpop.f32.mrb[0].mxu0
      %v492 = vpop.f32.mrb[0].mxu0
      %v493 = vadd.f32 %v399, %v492
      %v494 = vpop.f32.mrb[0].mxu0
      %495 = vdwg.mxu0
      %v496 = vmax.f32 %v490, 0.0
      %v497 = vmax.f32 %v493, 0.0
      %498 = vst [vmem:[#allocation2] sm:$0xff] 0.0
      %499 = vst [vmem:[#allocation2 + $0x18] sm:$0xff] 0.0
      %500 = vst [vmem:[#allocation2 + $0x8] sm:$0xff] %v496
      %501 = vst [vmem:[#allocation2 + $0x10] sm:$0xff] %v497
      %v502 = vlaneseq
      %v503 = vshrl.u32 %v502, 7
      %v504 = vadd.s32 %v503, 8
      %vm505 = vcmp.lt.s32.totalorder %v503, 0
      %v506 = vsub.s32 0, %v503
      %v507 = vsel %vm505, %v506, %v503
      %v508 = vshrl.u32 %v507, 2
      %v509 = vand.u32 %v507, 3
      %v510 = vsub.s32 0, %v509
      %v511 = vsel %vm505, %v510, %v509
      %vm512 = vcmp.lt.s32.totalorder %v504, 0
      %v513 = vsub.s32 0, %v504
      %v514 = vsel %vm512, %v513, %v504
      %v515 = vshrl.u32 %v514, 2
      %v516 = vand.u32 %v514, 3
      %v517 = vsub.s32 0, %v516
      %v518 = vsel %vm512, %v517, %v516
      %vm519 = vcmp.ne.s32.totalorder %v511, 0
      %vm520 = vcmp.ne.s32.totalorder %v518, 0
      %vm521 = vcmp.lt.s32.totalorder %v511, 0
      %vm522 = vcmp.lt.s32.totalorder %v518, 0
      %vm523 = vmand %vm521, %vm519
      %vm524 = vmand %vm522, %vm520
      %v525 = vadd.s32 %v511, 4
      %v526 = vadd.s32 %v518, 4
      %v527 = vsel %vm523, %v525, %v511
      %v528 = vsel %vm524, %v526, %v518
      %vm529 = vcmp.ge.s32.totalorder %v527, 1
      %vm530 = vcmp.ge.s32.totalorder %v528, 1
      %vm531 = vcmp.le.s32.totalorder %v527, 2
      %vm532 = vcmp.le.s32.totalorder %v528, 2
      %v533 = vld [vmem:[#allocation2 + $0x3] sm:$0xff]
      %v534 = vld [vmem:[#allocation2 + $0xb] sm:$0xff]
      %v535 = vsel %vm529, %v533, 0.0
      %v536 = vsel %vm530, %v534, 0.0
      %v537 = vpack.c.bf16 %v536, %v535
      %v538 = vld [vmem:[%s3] sm:$0xf]
      %v539 = vld [vmem:[%s3 + $0x4] sm:$0xf]
      %v540 = vld [vmem:[%s3 + $0x8] sm:$0xf]
      %v541 = vld [vmem:[%s3 + $0xc] sm:$0xf]
      %v542 = vld [vmem:[%s3 + $0x10] sm:$0xf]
      %v543 = vld [vmem:[%s3 + $0x14] sm:$0xf]
      %v544 = vld [vmem:[%s3 + $0x18] sm:$0xf]
      %v545 = vld [vmem:[%s3 + $0x1c] sm:$0xf]
      %v546 = vld [vmem:[%s3 + $0x20] sm:$0xf]
      %v547 = vld [vmem:[%s3 + $0x24] sm:$0xf]
      %v548 = vld [vmem:[%s3 + $0x28] sm:$0xf]
      %v549 = vld [vmem:[%s3 + $0x2c] sm:$0xf]
      %v550 = vld [vmem:[%s3 + $0x30] sm:$0xf]
      %v551 = vld [vmem:[%s3 + $0x34] sm:$0xf]
      %v552 = vld [vmem:[%s3 + $0x38] sm:$0xf]
      %v553 = vld [vmem:[%s3 + $0x3c] sm:$0xf]
      %v554 = vld [vmem:[#allocation2 + $0x4] sm:$0xff]
      %v555 = vld [vmem:[#allocation2 + $0xc] sm:$0xff]
      %v556 = vpack.c.bf16 %v555, %v554
      %s557 = scalar_lea.vmem %s3, 64
      %v558 = vld [vmem:[%s557] sm:$0xf]
      %v559 = vld [vmem:[%s557 + $0x4] sm:$0xf]
      %v560 = vld [vmem:[%s557 + $0x8] sm:$0xf]
      %v561 = vld [vmem:[%s557 + $0xc] sm:$0xf]
      %v562 = vld [vmem:[%s557 + $0x10] sm:$0xf]
      %v563 = vld [vmem:[%s557 + $0x14] sm:$0xf]
      %v564 = vld [vmem:[%s557 + $0x18] sm:$0xf]
      %v565 = vld [vmem:[%s557 + $0x1c] sm:$0xf]
      %v566 = vld [vmem:[%s557 + $0x20] sm:$0xf]
      %v567 = vld [vmem:[%s557 + $0x24] sm:$0xf]
      %v568 = vld [vmem:[%s557 + $0x28] sm:$0xf]
      %v569 = vld [vmem:[%s557 + $0x2c] sm:$0xf]
      %v570 = vld [vmem:[%s557 + $0x30] sm:$0xf]
      %v571 = vld [vmem:[%s557 + $0x34] sm:$0xf]
      %v572 = vld [vmem:[%s557 + $0x38] sm:$0xf]
      %v573 = vld [vmem:[%s557 + $0x3c] sm:$0xf]
      %v590 = vunpack.c.l.b16 %v558
      %v591 = vunpack.c.l.b16 %v559
      %v592 = vunpack.c.l.b16 %v560
      %v593 = vunpack.c.l.b16 %v561
      %v594 = vunpack.c.l.b16 %v562
      %v595 = vunpack.c.l.b16 %v563
      %v596 = vunpack.c.l.b16 %v564
      %v597 = vunpack.c.l.b16 %v565
      %v598 = vunpack.c.l.b16 %v566
      %v599 = vunpack.c.l.b16 %v567
      %v600 = vunpack.c.l.b16 %v568
      %v601 = vunpack.c.l.b16 %v569
      %v602 = vunpack.c.l.b16 %v570
      %v603 = vunpack.c.l.b16 %v571
      %v604 = vunpack.c.l.b16 %v572
      %v605 = vunpack.c.l.b16 %v573
      %v606 = vpack.c.b16 %v591, %v590
      %v607 = vpack.c.b16 %v593, %v592
      %v608 = vpack.c.b16 %v595, %v594
      %v609 = vpack.c.b16 %v597, %v596
      %v610 = vpack.c.b16 %v599, %v598
      %v611 = vpack.c.b16 %v601, %v600
      %v612 = vpack.c.b16 %v603, %v602
      %v613 = vpack.c.b16 %v605, %v604
      %622 = vmatprep.subr.bf16.mxu0 0
      %623 = vmatpush1.bf16.msra.mxu0 %v606
      %624 = vmatprep.subr.bf16.mxu0 0
      %625 = vmatpush1.bf16.msra.mxu0 %v607
      %626 = vmatprep.subr.bf16.mxu0 0
      %627 = vmatpush1.bf16.msra.mxu0 %v608
      %628 = vmatprep.subr.bf16.mxu0 0
      %629 = vmatpush1.bf16.msra.mxu0 %v609
      %630 = vmatprep.subr.bf16.mxu0 0
      %631 = vmatpush1.bf16.msra.mxu0 %v610
      %632 = vmatprep.subr.bf16.mxu0 0
      %633 = vmatpush1.bf16.msra.mxu0 %v611
      %634 = vmatprep.subr.bf16.mxu0 0
      %635 = vmatpush1.bf16.msra.mxu0 %v612
      %636 = vmatprep.subr.bf16.mxu0 0
      %637 = vmatpush1.bf16.msra.mxu0 %v613
      %638 = vmatprep.subr.bf16.mxu0 0
      %639 = vmatpush1.bf16.msra.mxu0 0
      %640 = vmatprep.subr.bf16.mxu0 0
      %641 = vmatpush1.bf16.msra.mxu0 0
      %642 = vmatprep.subr.bf16.mxu0 0
      %643 = vmatpush1.bf16.msra.mxu0 0
      %644 = vmatprep.subr.bf16.mxu0 0
      %645 = vmatpush1.bf16.msra.mxu0 0
      %646 = vmatprep.subr.bf16.mxu0 0
      %647 = vmatpush1.bf16.msra.mxu0 0
      %648 = vmatprep.subr.bf16.mxu0 0
      %649 = vmatpush1.bf16.msra.mxu0 0
      %650 = vmatprep.subr.bf16.mxu0 0
      %651 = vmatpush1.bf16.msra.mxu0 0
      %652 = vmatprep.subr.bf16.mxu0 0
      %653 = vmatpush1.bf16.msra.mxu0 0
      %654 = vmatprep.mubr.bf16.mxu0 0
      %655 = vmatmul.mubr.bf16.gmra.mrb[0].mxu0 %v556
      %v656 = vpop.f32.mrb[0].mxu0
      %v657 = vadd.f32 0.0, %v656
      %v658 = vpop.f32.mrb[0].mxu0
      %v659 = vpop.f32.mrb[0].mxu0
      %v660 = vadd.f32 0.0, %v659
      %v661 = vpop.f32.mrb[0].mxu0
      %662 = vdwg.mxu0
      %v679 = vunpack.c.l.b16 %v538
      %v680 = vunpack.c.l.b16 %v539
      %v681 = vunpack.c.l.b16 %v540
      %v682 = vunpack.c.l.b16 %v541
      %v683 = vunpack.c.l.b16 %v542
      %v684 = vunpack.c.l.b16 %v543
      %v685 = vunpack.c.l.b16 %v544
      %v686 = vunpack.c.l.b16 %v545
      %v687 = vunpack.c.l.b16 %v546
      %v688 = vunpack.c.l.b16 %v547
      %v689 = vunpack.c.l.b16 %v548
      %v690 = vunpack.c.l.b16 %v549
      %v691 = vunpack.c.l.b16 %v550
      %v692 = vunpack.c.l.b16 %v551
      %v693 = vunpack.c.l.b16 %v552
      %v694 = vunpack.c.l.b16 %v553
      %v695 = vpack.c.b16 %v680, %v679
      %v696 = vpack.c.b16 %v682, %v681
      %v697 = vpack.c.b16 %v684, %v683
      %v698 = vpack.c.b16 %v686, %v685
      %v699 = vpack.c.b16 %v688, %v687
      %v700 = vpack.c.b16 %v690, %v689
      %v701 = vpack.c.b16 %v692, %v691
      %v702 = vpack.c.b16 %v694, %v693
      %711 = vmatprep.subr.bf16.mxu0 0
      %712 = vmatpush1.bf16.msra.mxu0 %v695
      %713 = vmatprep.subr.bf16.mxu0 0
      %714 = vmatpush1.bf16.msra.mxu0 %v696
      %715 = vmatprep.subr.bf16.mxu0 0
      %716 = vmatpush1.bf16.msra.mxu0 %v697
      %717 = vmatprep.subr.bf16.mxu0 0
      %718 = vmatpush1.bf16.msra.mxu0 %v698
      %719 = vmatprep.subr.bf16.mxu0 0
      %720 = vmatpush1.bf16.msra.mxu0 %v699
      %721 = vmatprep.subr.bf16.mxu0 0
      %722 = vmatpush1.bf16.msra.mxu0 %v700
      %723 = vmatprep.subr.bf16.mxu0 0
      %724 = vmatpush1.bf16.msra.mxu0 %v701
      %725 = vmatprep.subr.bf16.mxu0 0
      %726 = vmatpush1.bf16.msra.mxu0 %v702
      %727 = vmatprep.subr.bf16.mxu0 0
      %728 = vmatpush1.bf16.msra.mxu0 0
      %729 = vmatprep.subr.bf16.mxu0 0
      %730 = vmatpush1.bf16.msra.mxu0 0
      %731 = vmatprep.subr.bf16.mxu0 0
      %732 = vmatpush1.bf16.msra.mxu0 0
      %733 = vmatprep.subr.bf16.mxu0 0
      %734 = vmatpush1.bf16.msra.mxu0 0
      %735 = vmatprep.subr.bf16.mxu0 0
      %736 = vmatpush1.bf16.msra.mxu0 0
      %737 = vmatprep.subr.bf16.mxu0 0
      %738 = vmatpush1.bf16.msra.mxu0 0
      %739 = vmatprep.subr.bf16.mxu0 0
      %740 = vmatpush1.bf16.msra.mxu0 0
      %741 = vmatprep.subr.bf16.mxu0 0
      %742 = vmatpush1.bf16.msra.mxu0 0
      %743 = vmatprep.mubr.bf16.mxu0 0
      %744 = vmatmul.mubr.bf16.gmra.mrb[0].mxu0 %v537
      %v745 = vpop.f32.mrb[0].mxu0
      %v746 = vadd.f32 %v657, %v745
      %v747 = vpop.f32.mrb[0].mxu0
      %v748 = vpop.f32.mrb[0].mxu0
      %v749 = vadd.f32 %v660, %v748
      %v750 = vpop.f32.mrb[0].mxu0
      %751 = vdwg.mxu0
      %v752 = vld [vmem:[#allocation2 + $0x5] sm:$0xff]
      %v753 = vld [vmem:[#allocation2 + $0xd] sm:$0xff]
      %v754 = vsel %vm531, %v752, 0.0
      %v755 = vsel %vm532, %v753, 0.0
      %v756 = vpack.c.bf16 %v755, %v754
      %s757 = scalar_lea.vmem %s3, 128
      %v758 = vld [vmem:[%s757] sm:$0xf]
      %v759 = vld [vmem:[%s757 + $0x4] sm:$0xf]
      %v760 = vld [vmem:[%s757 + $0x8] sm:$0xf]
      %v761 = vld [vmem:[%s757 + $0xc] sm:$0xf]
      %v762 = vld [vmem:[%s757 + $0x10] sm:$0xf]
      %v763 = vld [vmem:[%s757 + $0x14] sm:$0xf]
      %v764 = vld [vmem:[%s757 + $0x18] sm:$0xf]
      %v765 = vld [vmem:[%s757 + $0x1c] sm:$0xf]
      %v766 = vld [vmem:[%s757 + $0x20] sm:$0xf]
      %v767 = vld [vmem:[%s757 + $0x24] sm:$0xf]
      %v768 = vld [vmem:[%s757 + $0x28] sm:$0xf]
      %v769 = vld [vmem:[%s757 + $0x2c] sm:$0xf]
      %v770 = vld [vmem:[%s757 + $0x30] sm:$0xf]
      %v771 = vld [vmem:[%s757 + $0x34] sm:$0xf]
      %v772 = vld [vmem:[%s757 + $0x38] sm:$0xf]
      %v773 = vld [vmem:[%s757 + $0x3c] sm:$0xf]
      %v790 = vunpack.c.l.b16 %v758
      %v791 = vunpack.c.l.b16 %v759
      %v792 = vunpack.c.l.b16 %v760
      %v793 = vunpack.c.l.b16 %v761
      %v794 = vunpack.c.l.b16 %v762
      %v795 = vunpack.c.l.b16 %v763
      %v796 = vunpack.c.l.b16 %v764
      %v797 = vunpack.c.l.b16 %v765
      %v798 = vunpack.c.l.b16 %v766
      %v799 = vunpack.c.l.b16 %v767
      %v800 = vunpack.c.l.b16 %v768
      %v801 = vunpack.c.l.b16 %v769
      %v802 = vunpack.c.l.b16 %v770
      %v803 = vunpack.c.l.b16 %v771
      %v804 = vunpack.c.l.b16 %v772
      %v805 = vunpack.c.l.b16 %v773
      %v806 = vpack.c.b16 %v791, %v790
      %v807 = vpack.c.b16 %v793, %v792
      %v808 = vpack.c.b16 %v795, %v794
      %v809 = vpack.c.b16 %v797, %v796
      %v810 = vpack.c.b16 %v799, %v798
      %v811 = vpack.c.b16 %v801, %v800
      %v812 = vpack.c.b16 %v803, %v802
      %v813 = vpack.c.b16 %v805, %v804
      %822 = vmatprep.subr.bf16.mxu0 0
      %823 = vmatpush1.bf16.msra.mxu0 %v806
      %824 = vmatprep.subr.bf16.mxu0 0
      %825 = vmatpush1.bf16.msra.mxu0 %v807
      %826 = vmatprep.subr.bf16.mxu0 0
      %827 = vmatpush1.bf16.msra.mxu0 %v808
      %828 = vmatprep.subr.bf16.mxu0 0
      %829 = vmatpush1.bf16.msra.mxu0 %v809
      %830 = vmatprep.subr.bf16.mxu0 0
      %831 = vmatpush1.bf16.msra.mxu0 %v810
      %832 = vmatprep.subr.bf16.mxu0 0
      %833 = vmatpush1.bf16.msra.mxu0 %v811
      %834 = vmatprep.subr.bf16.mxu0 0
      %835 = vmatpush1.bf16.msra.mxu0 %v812
      %836 = vmatprep.subr.bf16.mxu0 0
      %837 = vmatpush1.bf16.msra.mxu0 %v813
      %838 = vmatprep.subr.bf16.mxu0 0
      %839 = vmatpush1.bf16.msra.mxu0 0
      %840 = vmatprep.subr.bf16.mxu0 0
      %841 = vmatpush1.bf16.msra.mxu0 0
      %842 = vmatprep.subr.bf16.mxu0 0
      %843 = vmatpush1.bf16.msra.mxu0 0
      %844 = vmatprep.subr.bf16.mxu0 0
      %845 = vmatpush1.bf16.msra.mxu0 0
      %846 = vmatprep.subr.bf16.mxu0 0
      %847 = vmatpush1.bf16.msra.mxu0 0
      %848 = vmatprep.subr.bf16.mxu0 0
      %849 = vmatpush1.bf16.msra.mxu0 0
      %850 = vmatprep.subr.bf16.mxu0 0
      %851 = vmatpush1.bf16.msra.mxu0 0
      %852 = vmatprep.subr.bf16.mxu0 0
      %853 = vmatpush1.bf16.msra.mxu0 0
      %854 = vmatprep.mubr.bf16.mxu0 0
      %855 = vmatmul.mubr.bf16.gmra.mrb[0].mxu0 %v756
      %v856 = vpop.f32.mrb[0].mxu0
      %v857 = vadd.f32 0.0, %v856
      %v858 = vpop.f32.mrb[0].mxu0
      %v859 = vpop.f32.mrb[0].mxu0
      %v860 = vadd.f32 0.0, %v859
      %v861 = vpop.f32.mrb[0].mxu0
      %862 = vdwg.mxu0
      %v863 = vadd.f32 %v746, %v857
      %v864 = vadd.f32 %v749, %v860
      %v865 = vld [vmem:[#allocation2 + $0x7] sm:$0xff]
      %v866 = vld [vmem:[#allocation2 + $0xf] sm:$0xff]
      %v867 = vsel %vm529, %v865, 0.0
      %v868 = vsel %vm530, %v866, 0.0
      %v869 = vpack.c.bf16 %v868, %v867
      %s870 = scalar_lea.vmem %s3, 192
      %v871 = vld [vmem:[%s870] sm:$0xf]
      %v872 = vld [vmem:[%s870 + $0x4] sm:$0xf]
      %v873 = vld [vmem:[%s870 + $0x8] sm:$0xf]
      %v874 = vld [vmem:[%s870 + $0xc] sm:$0xf]
      %v875 = vld [vmem:[%s870 + $0x10] sm:$0xf]
      %v876 = vld [vmem:[%s870 + $0x14] sm:$0xf]
      %v877 = vld [vmem:[%s870 + $0x18] sm:$0xf]
      %v878 = vld [vmem:[%s870 + $0x1c] sm:$0xf]
      %v879 = vld [vmem:[%s870 + $0x20] sm:$0xf]
      %v880 = vld [vmem:[%s870 + $0x24] sm:$0xf]
      %v881 = vld [vmem:[%s870 + $0x28] sm:$0xf]
      %v882 = vld [vmem:[%s870 + $0x2c] sm:$0xf]
      %v883 = vld [vmem:[%s870 + $0x30] sm:$0xf]
      %v884 = vld [vmem:[%s870 + $0x34] sm:$0xf]
      %v885 = vld [vmem:[%s870 + $0x38] sm:$0xf]
      %v886 = vld [vmem:[%s870 + $0x3c] sm:$0xf]
      %v903 = vunpack.c.l.b16 %v871
      %v904 = vunpack.c.l.b16 %v872
      %v905 = vunpack.c.l.b16 %v873
      %v906 = vunpack.c.l.b16 %v874
      %v907 = vunpack.c.l.b16 %v875
      %v908 = vunpack.c.l.b16 %v876
      %v909 = vunpack.c.l.b16 %v877
      %v910 = vunpack.c.l.b16 %v878
      %v911 = vunpack.c.l.b16 %v879
      %v912 = vunpack.c.l.b16 %v880
      %v913 = vunpack.c.l.b16 %v881
      %v914 = vunpack.c.l.b16 %v882
      %v915 = vunpack.c.l.b16 %v883
      %v916 = vunpack.c.l.b16 %v884
      %v917 = vunpack.c.l.b16 %v885
      %v918 = vunpack.c.l.b16 %v886
      %v919 = vpack.c.b16 %v904, %v903
      %v920 = vpack.c.b16 %v906, %v905
      %v921 = vpack.c.b16 %v908, %v907
      %v922 = vpack.c.b16 %v910, %v909
      %v923 = vpack.c.b16 %v912, %v911
      %v924 = vpack.c.b16 %v914, %v913
      %v925 = vpack.c.b16 %v916, %v915
      %v926 = vpack.c.b16 %v918, %v917
      %935 = vmatprep.subr.bf16.mxu0 0
      %936 = vmatpush1.bf16.msra.mxu0 %v919
      %937 = vmatprep.subr.bf16.mxu0 0
      %938 = vmatpush1.bf16.msra.mxu0 %v920
      %939 = vmatprep.subr.bf16.mxu0 0
      %940 = vmatpush1.bf16.msra.mxu0 %v921
      %941 = vmatprep.subr.bf16.mxu0 0
      %942 = vmatpush1.bf16.msra.mxu0 %v922
      %943 = vmatprep.subr.bf16.mxu0 0
      %944 = vmatpush1.bf16.msra.mxu0 %v923
      %945 = vmatprep.subr.bf16.mxu0 0
      %946 = vmatpush1.bf16.msra.mxu0 %v924
      %947 = vmatprep.subr.bf16.mxu0 0
      %948 = vmatpush1.bf16.msra.mxu0 %v925
      %949 = vmatprep.subr.bf16.mxu0 0
      %950 = vmatpush1.bf16.msra.mxu0 %v926
      %951 = vmatprep.subr.bf16.mxu0 0
      %952 = vmatpush1.bf16.msra.mxu0 0
      %953 = vmatprep.subr.bf16.mxu0 0
      %954 = vmatpush1.bf16.msra.mxu0 0
      %955 = vmatprep.subr.bf16.mxu0 0
      %956 = vmatpush1.bf16.msra.mxu0 0
      %957 = vmatprep.subr.bf16.mxu0 0
      %958 = vmatpush1.bf16.msra.mxu0 0
      %959 = vmatprep.subr.bf16.mxu0 0
      %960 = vmatpush1.bf16.msra.mxu0 0
      %961 = vmatprep.subr.bf16.mxu0 0
      %962 = vmatpush1.bf16.msra.mxu0 0
      %963 = vmatprep.subr.bf16.mxu0 0
      %964 = vmatpush1.bf16.msra.mxu0 0
      %965 = vmatprep.subr.bf16.mxu0 0
      %966 = vmatpush1.bf16.msra.mxu0 0
      %967 = vmatprep.mubr.bf16.mxu0 0
      %968 = vmatmul.mubr.bf16.gmra.mrb[0].mxu0 %v869
      %v969 = vpop.f32.mrb[0].mxu0
      %v970 = vadd.f32 0.0, %v969
      %v971 = vpop.f32.mrb[0].mxu0
      %v972 = vpop.f32.mrb[0].mxu0
      %v973 = vadd.f32 0.0, %v972
      %v974 = vpop.f32.mrb[0].mxu0
      %975 = vdwg.mxu0
      %v976 = vadd.f32 %v863, %v970
      %v977 = vadd.f32 %v864, %v973
      %v978 = vld [vmem:[#allocation2 + $0x8] sm:$0xff]
      %v979 = vld [vmem:[#allocation2 + $0x10] sm:$0xff]
      %v980 = vpack.c.bf16 %v979, %v978
      %s981 = scalar_lea.vmem %s3, 256
      %v982 = vld [vmem:[%s981] sm:$0xf]
      %v983 = vld [vmem:[%s981 + $0x4] sm:$0xf]
      %v984 = vld [vmem:[%s981 + $0x8] sm:$0xf]
      %v985 = vld [vmem:[%s981 + $0xc] sm:$0xf]
      %v986 = vld [vmem:[%s981 + $0x10] sm:$0xf]
      %v987 = vld [vmem:[%s981 + $0x14] sm:$0xf]
      %v988 = vld [vmem:[%s981 + $0x18] sm:$0xf]
      %v989 = vld [vmem:[%s981 + $0x1c] sm:$0xf]
      %v990 = vld [vmem:[%s981 + $0x20] sm:$0xf]
      %v991 = vld [vmem:[%s981 + $0x24] sm:$0xf]
      %v992 = vld [vmem:[%s981 + $0x28] sm:$0xf]
      %v993 = vld [vmem:[%s981 + $0x2c] sm:$0xf]
      %v994 = vld [vmem:[%s981 + $0x30] sm:$0xf]
      %v995 = vld [vmem:[%s981 + $0x34] sm:$0xf]
      %v996 = vld [vmem:[%s981 + $0x38] sm:$0xf]
      %v997 = vld [vmem:[%s981 + $0x3c] sm:$0xf]
      %v1014 = vunpack.c.l.b16 %v982
      %v1015 = vunpack.c.l.b16 %v983
      %v1016 = vunpack.c.l.b16 %v984
      %v1017 = vunpack.c.l.b16 %v985
      %v1018 = vunpack.c.l.b16 %v986
      %v1019 = vunpack.c.l.b16 %v987
      %v1020 = vunpack.c.l.b16 %v988
      %v1021 = vunpack.c.l.b16 %v989
      %v1022 = vunpack.c.l.b16 %v990
      %v1023 = vunpack.c.l.b16 %v991
      %v1024 = vunpack.c.l.b16 %v992
      %v1025 = vunpack.c.l.b16 %v993
      %v1026 = vunpack.c.l.b16 %v994
      %v1027 = vunpack.c.l.b16 %v995
      %v1028 = vunpack.c.l.b16 %v996
      %v1029 = vunpack.c.l.b16 %v997
      %v1030 = vpack.c.b16 %v1015, %v1014
      %v1031 = vpack.c.b16 %v1017, %v1016
      %v1032 = vpack.c.b16 %v1019, %v1018
      %v1033 = vpack.c.b16 %v1021, %v1020
      %v1034 = vpack.c.b16 %v1023, %v1022
      %v1035 = vpack.c.b16 %v1025, %v1024
      %v1036 = vpack.c.b16 %v1027, %v1026
      %v1037 = vpack.c.b16 %v1029, %v1028
      %1046 = vmatprep.subr.bf16.mxu0 0
      %1047 = vmatpush1.bf16.msra.mxu0 %v1030
      %1048 = vmatprep.subr.bf16.mxu0 0
      %1049 = vmatpush1.bf16.msra.mxu0 %v1031
      %1050 = vmatprep.subr.bf16.mxu0 0
      %1051 = vmatpush1.bf16.msra.mxu0 %v1032
      %1052 = vmatprep.subr.bf16.mxu0 0
      %1053 = vmatpush1.bf16.msra.mxu0 %v1033
      %1054 = vmatprep.subr.bf16.mxu0 0
      %1055 = vmatpush1.bf16.msra.mxu0 %v1034
      %1056 = vmatprep.subr.bf16.mxu0 0
      %1057 = vmatpush1.bf16.msra.mxu0 %v1035
      %1058 = vmatprep.subr.bf16.mxu0 0
      %1059 = vmatpush1.bf16.msra.mxu0 %v1036
      %1060 = vmatprep.subr.bf16.mxu0 0
      %1061 = vmatpush1.bf16.msra.mxu0 %v1037
      %1062 = vmatprep.subr.bf16.mxu0 0
      %1063 = vmatpush1.bf16.msra.mxu0 0
      %1064 = vmatprep.subr.bf16.mxu0 0
      %1065 = vmatpush1.bf16.msra.mxu0 0
      %1066 = vmatprep.subr.bf16.mxu0 0
      %1067 = vmatpush1.bf16.msra.mxu0 0
      %1068 = vmatprep.subr.bf16.mxu0 0
      %1069 = vmatpush1.bf16.msra.mxu0 0
      %1070 = vmatprep.subr.bf16.mxu0 0
      %1071 = vmatpush1.bf16.msra.mxu0 0
      %1072 = vmatprep.subr.bf16.mxu0 0
      %1073 = vmatpush1.bf16.msra.mxu0 0
      %1074 = vmatprep.subr.bf16.mxu0 0
      %1075 = vmatpush1.bf16.msra.mxu0 0
      %1076 = vmatprep.subr.bf16.mxu0 0
      %1077 = vmatpush1.bf16.msra.mxu0 0
      %1078 = vmatprep.mubr.bf16.mxu0 0
      %1079 = vmatmul.mubr.bf16.gmra.mrb[0].mxu0 %v980
      %v1080 = vpop.f32.mrb[0].mxu0
      %v1081 = vadd.f32 0.0, %v1080
      %v1082 = vpop.f32.mrb[0].mxu0
      %v1083 = vpop.f32.mrb[0].mxu0
      %v1084 = vadd.f32 0.0, %v1083
      %v1085 = vpop.f32.mrb[0].mxu0
      %1086 = vdwg.mxu0
      %v1087 = vadd.f32 %v976, %v1081
      %v1088 = vadd.f32 %v977, %v1084
      %v1089 = vld [vmem:[#allocation2 + $0x9] sm:$0xff]
      %v1090 = vld [vmem:[#allocation2 + $0x11] sm:$0xff]
      %v1091 = vsel %vm531, %v1089, 0.0
      %v1092 = vsel %vm532, %v1090, 0.0
      %v1093 = vpack.c.bf16 %v1092, %v1091
      %s1094 = scalar_lea.vmem %s3, 320
      %v1095 = vld [vmem:[%s1094] sm:$0xf]
      %v1096 = vld [vmem:[%s1094 + $0x4] sm:$0xf]
      %v1097 = vld [vmem:[%s1094 + $0x8] sm:$0xf]
      %v1098 = vld [vmem:[%s1094 + $0xc] sm:$0xf]
      %v1099 = vld [vmem:[%s1094 + $0x10] sm:$0xf]
      %v1100 = vld [vmem:[%s1094 + $0x14] sm:$0xf]
      %v1101 = vld [vmem:[%s1094 + $0x18] sm:$0xf]
      %v1102 = vld [vmem:[%s1094 + $0x1c] sm:$0xf]
      %v1103 = vld [vmem:[%s1094 + $0x20] sm:$0xf]
      %v1104 = vld [vmem:[%s1094 + $0x24] sm:$0xf]
      %v1105 = vld [vmem:[%s1094 + $0x28] sm:$0xf]
      %v1106 = vld [vmem:[%s1094 + $0x2c] sm:$0xf]
      %v1107 = vld [vmem:[%s1094 + $0x30] sm:$0xf]
      %v1108 = vld [vmem:[%s1094 + $0x34] sm:$0xf]
      %v1109 = vld [vmem:[%s1094 + $0x38] sm:$0xf]
      %v1110 = vld [vmem:[%s1094 + $0x3c] sm:$0xf]
      %v1127 = vunpack.c.l.b16 %v1095
      %v1128 = vunpack.c.l.b16 %v1096
      %v1129 = vunpack.c.l.b16 %v1097
      %v1130 = vunpack.c.l.b16 %v1098
      %v1131 = vunpack.c.l.b16 %v1099
      %v1132 = vunpack.c.l.b16 %v1100
      %v1133 = vunpack.c.l.b16 %v1101
      %v1134 = vunpack.c.l.b16 %v1102
      %v1135 = vunpack.c.l.b16 %v1103
      %v1136 = vunpack.c.l.b16 %v1104
      %v1137 = vunpack.c.l.b16 %v1105
      %v1138 = vunpack.c.l.b16 %v1106
      %v1139 = vunpack.c.l.b16 %v1107
      %v1140 = vunpack.c.l.b16 %v1108
      %v1141 = vunpack.c.l.b16 %v1109
      %v1142 = vunpack.c.l.b16 %v1110
      %v1143 = vpack.c.b16 %v1128, %v1127
      %v1144 = vpack.c.b16 %v1130, %v1129
      %v1145 = vpack.c.b16 %v1132, %v1131
      %v1146 = vpack.c.b16 %v1134, %v1133
      %v1147 = vpack.c.b16 %v1136, %v1135
      %v1148 = vpack.c.b16 %v1138, %v1137
      %v1149 = vpack.c.b16 %v1140, %v1139
      %v1150 = vpack.c.b16 %v1142, %v1141
      %1159 = vmatprep.subr.bf16.mxu0 0
      %1160 = vmatpush1.bf16.msra.mxu0 %v1143
      %1161 = vmatprep.subr.bf16.mxu0 0
      %1162 = vmatpush1.bf16.msra.mxu0 %v1144
      %1163 = vmatprep.subr.bf16.mxu0 0
      %1164 = vmatpush1.bf16.msra.mxu0 %v1145
      %1165 = vmatprep.subr.bf16.mxu0 0
      %1166 = vmatpush1.bf16.msra.mxu0 %v1146
      %1167 = vmatprep.subr.bf16.mxu0 0
      %1168 = vmatpush1.bf16.msra.mxu0 %v1147
      %1169 = vmatprep.subr.bf16.mxu0 0
      %1170 = vmatpush1.bf16.msra.mxu0 %v1148
      %1171 = vmatprep.subr.bf16.mxu0 0
      %1172 = vmatpush1.bf16.msra.mxu0 %v1149
      %1173 = vmatprep.subr.bf16.mxu0 0
      %1174 = vmatpush1.bf16.msra.mxu0 %v1150
      %1175 = vmatprep.subr.bf16.mxu0 0
      %1176 = vmatpush1.bf16.msra.mxu0 0
      %1177 = vmatprep.subr.bf16.mxu0 0
      %1178 = vmatpush1.bf16.msra.mxu0 0
      %1179 = vmatprep.subr.bf16.mxu0 0
      %1180 = vmatpush1.bf16.msra.mxu0 0
      %1181 = vmatprep.subr.bf16.mxu0 0
      %1182 = vmatpush1.bf16.msra.mxu0 0
      %1183 = vmatprep.subr.bf16.mxu0 0
      %1184 = vmatpush1.bf16.msra.mxu0 0
      %1185 = vmatprep.subr.bf16.mxu0 0
      %1186 = vmatpush1.bf16.msra.mxu0 0
      %1187 = vmatprep.subr.bf16.mxu0 0
      %1188 = vmatpush1.bf16.msra.mxu0 0
      %1189 = vmatprep.subr.bf16.mxu0 0
      %1190 = vmatpush1.bf16.msra.mxu0 0
      %1191 = vmatprep.mubr.bf16.mxu0 0
      %1192 = vmatmul.mubr.bf16.gmra.mrb[0].mxu0 %v1093
      %v1193 = vpop.f32.mrb[0].mxu0
      %v1194 = vadd.f32 0.0, %v1193
      %v1195 = vpop.f32.mrb[0].mxu0
      %v1196 = vpop.f32.mrb[0].mxu0
      %v1197 = vadd.f32 0.0, %v1196
      %v1198 = vpop.f32.mrb[0].mxu0
      %1199 = vdwg.mxu0
      %v1200 = vadd.f32 %v1087, %v1194
      %v1201 = vadd.f32 %v1088, %v1197
      %v1202 = vld [vmem:[#allocation2 + $0xb] sm:$0xff]
      %v1203 = vld [vmem:[#allocation2 + $0x13] sm:$0xff]
      %v1204 = vsel %vm529, %v1202, 0.0
      %v1205 = vsel %vm530, %v1203, 0.0
      %v1206 = vpack.c.bf16 %v1205, %v1204
      %s1207 = scalar_lea.vmem %s3, 384
      %v1208 = vld [vmem:[%s1207] sm:$0xf]
      %v1209 = vld [vmem:[%s1207 + $0x4] sm:$0xf]
      %v1210 = vld [vmem:[%s1207 + $0x8] sm:$0xf]
      %v1211 = vld [vmem:[%s1207 + $0xc] sm:$0xf]
      %v1212 = vld [vmem:[%s1207 + $0x10] sm:$0xf]
      %v1213 = vld [vmem:[%s1207 + $0x14] sm:$0xf]
      %v1214 = vld [vmem:[%s1207 + $0x18] sm:$0xf]
      %v1215 = vld [vmem:[%s1207 + $0x1c] sm:$0xf]
      %v1216 = vld [vmem:[%s1207 + $0x20] sm:$0xf]
      %v1217 = vld [vmem:[%s1207 + $0x24] sm:$0xf]
      %v1218 = vld [vmem:[%s1207 + $0x28] sm:$0xf]
      %v1219 = vld [vmem:[%s1207 + $0x2c] sm:$0xf]
      %v1220 = vld [vmem:[%s1207 + $0x30] sm:$0xf]
      %v1221 = vld [vmem:[%s1207 + $0x34] sm:$0xf]
      %v1222 = vld [vmem:[%s1207 + $0x38] sm:$0xf]
      %v1223 = vld [vmem:[%s1207 + $0x3c] sm:$0xf]
      %v1240 = vunpack.c.l.b16 %v1208
      %v1241 = vunpack.c.l.b16 %v1209
      %v1242 = vunpack.c.l.b16 %v1210
      %v1243 = vunpack.c.l.b16 %v1211
      %v1244 = vunpack.c.l.b16 %v1212
      %v1245 = vunpack.c.l.b16 %v1213
      %v1246 = vunpack.c.l.b16 %v1214
      %v1247 = vunpack.c.l.b16 %v1215
      %v1248 = vunpack.c.l.b16 %v1216
      %v1249 = vunpack.c.l.b16 %v1217
      %v1250 = vunpack.c.l.b16 %v1218
      %v1251 = vunpack.c.l.b16 %v1219
      %v1252 = vunpack.c.l.b16 %v1220
      %v1253 = vunpack.c.l.b16 %v1221
      %v1254 = vunpack.c.l.b16 %v1222
      %v1255 = vunpack.c.l.b16 %v1223
      %v1256 = vpack.c.b16 %v1241, %v1240
      %v1257 = vpack.c.b16 %v1243, %v1242
      %v1258 = vpack.c.b16 %v1245, %v1244
      %v1259 = vpack.c.b16 %v1247, %v1246
      %v1260 = vpack.c.b16 %v1249, %v1248
      %v1261 = vpack.c.b16 %v1251, %v1250
      %v1262 = vpack.c.b16 %v1253, %v1252
      %v1263 = vpack.c.b16 %v1255, %v1254
      %1272 = vmatprep.subr.bf16.mxu0 0
      %1273 = vmatpush1.bf16.msra.mxu0 %v1256
      %1274 = vmatprep.subr.bf16.mxu0 0
      %1275 = vmatpush1.bf16.msra.mxu0 %v1257
      %1276 = vmatprep.subr.bf16.mxu0 0
      %1277 = vmatpush1.bf16.msra.mxu0 %v1258
      %1278 = vmatprep.subr.bf16.mxu0 0
      %1279 = vmatpush1.bf16.msra.mxu0 %v1259
      %1280 = vmatprep.subr.bf16.mxu0 0
      %1281 = vmatpush1.bf16.msra.mxu0 %v1260
      %1282 = vmatprep.subr.bf16.mxu0 0
      %1283 = vmatpush1.bf16.msra.mxu0 %v1261
      %1284 = vmatprep.subr.bf16.mxu0 0
      %1285 = vmatpush1.bf16.msra.mxu0 %v1262
      %1286 = vmatprep.subr.bf16.mxu0 0
      %1287 = vmatpush1.bf16.msra.mxu0 %v1263
      %1288 = vmatprep.subr.bf16.mxu0 0
      %1289 = vmatpush1.bf16.msra.mxu0 0
      %1290 = vmatprep.subr.bf16.mxu0 0
      %1291 = vmatpush1.bf16.msra.mxu0 0
      %1292 = vmatprep.subr.bf16.mxu0 0
      %1293 = vmatpush1.bf16.msra.mxu0 0
      %1294 = vmatprep.subr.bf16.mxu0 0
      %1295 = vmatpush1.bf16.msra.mxu0 0
      %1296 = vmatprep.subr.bf16.mxu0 0
      %1297 = vmatpush1.bf16.msra.mxu0 0
      %1298 = vmatprep.subr.bf16.mxu0 0
      %1299 = vmatpush1.bf16.msra.mxu0 0
      %1300 = vmatprep.subr.bf16.mxu0 0
      %1301 = vmatpush1.bf16.msra.mxu0 0
      %1302 = vmatprep.subr.bf16.mxu0 0
      %1303 = vmatpush1.bf16.msra.mxu0 0
      %1304 = vmatprep.mubr.bf16.mxu0 0
      %1305 = vmatmul.mubr.bf16.gmra.mrb[0].mxu0 %v1206
      %v1306 = vpop.f32.mrb[0].mxu0
      %v1307 = vadd.f32 0.0, %v1306
      %v1308 = vpop.f32.mrb[0].mxu0
      %v1309 = vpop.f32.mrb[0].mxu0
      %v1310 = vadd.f32 0.0, %v1309
      %v1311 = vpop.f32.mrb[0].mxu0
      %1312 = vdwg.mxu0
      %v1313 = vadd.f32 %v1200, %v1307
      %v1314 = vadd.f32 %v1201, %v1310
      %v1315 = vld [vmem:[#allocation2 + $0xc] sm:$0xff]
      %v1316 = vld [vmem:[#allocation2 + $0x14] sm:$0xff]
      %v1317 = vpack.c.bf16 %v1316, %v1315
      %s1318 = scalar_lea.vmem %s3, 448
      %v1319 = vld [vmem:[%s1318] sm:$0xf]
      %v1320 = vld [vmem:[%s1318 + $0x4] sm:$0xf]
      %v1321 = vld [vmem:[%s1318 + $0x8] sm:$0xf]
      %v1322 = vld [vmem:[%s1318 + $0xc] sm:$0xf]
      %v1323 = vld [vmem:[%s1318 + $0x10] sm:$0xf]
      %v1324 = vld [vmem:[%s1318 + $0x14] sm:$0xf]
      %v1325 = vld [vmem:[%s1318 + $0x18] sm:$0xf]
      %v1326 = vld [vmem:[%s1318 + $0x1c] sm:$0xf]
      %v1327 = vld [vmem:[%s1318 + $0x20] sm:$0xf]
      %v1328 = vld [vmem:[%s1318 + $0x24] sm:$0xf]
      %v1329 = vld [vmem:[%s1318 + $0x28] sm:$0xf]
      %v1330 = vld [vmem:[%s1318 + $0x2c] sm:$0xf]
      %v1331 = vld [vmem:[%s1318 + $0x30] sm:$0xf]
      %v1332 = vld [vmem:[%s1318 + $0x34] sm:$0xf]
      %v1333 = vld [vmem:[%s1318 + $0x38] sm:$0xf]
      %v1334 = vld [vmem:[%s1318 + $0x3c] sm:$0xf]
      %v1351 = vunpack.c.l.b16 %v1319
      %v1352 = vunpack.c.l.b16 %v1320
      %v1353 = vunpack.c.l.b16 %v1321
      %v1354 = vunpack.c.l.b16 %v1322
      %v1355 = vunpack.c.l.b16 %v1323
      %v1356 = vunpack.c.l.b16 %v1324
      %v1357 = vunpack.c.l.b16 %v1325
      %v1358 = vunpack.c.l.b16 %v1326
      %v1359 = vunpack.c.l.b16 %v1327
      %v1360 = vunpack.c.l.b16 %v1328
      %v1361 = vunpack.c.l.b16 %v1329
      %v1362 = vunpack.c.l.b16 %v1330
      %v1363 = vunpack.c.l.b16 %v1331
      %v1364 = vunpack.c.l.b16 %v1332
      %v1365 = vunpack.c.l.b16 %v1333
      %v1366 = vunpack.c.l.b16 %v1334
      %v1367 = vpack.c.b16 %v1352, %v1351
      %v1368 = vpack.c.b16 %v1354, %v1353
      %v1369 = vpack.c.b16 %v1356, %v1355
      %v1370 = vpack.c.b16 %v1358, %v1357
      %v1371 = vpack.c.b16 %v1360, %v1359
      %v1372 = vpack.c.b16 %v1362, %v1361
      %v1373 = vpack.c.b16 %v1364, %v1363
      %v1374 = vpack.c.b16 %v1366, %v1365
      %1383 = vmatprep.subr.bf16.mxu0 0
      %1384 = vmatpush1.bf16.msra.mxu0 %v1367
      %1385 = vmatprep.subr.bf16.mxu0 0
      %1386 = vmatpush1.bf16.msra.mxu0 %v1368
      %1387 = vmatprep.subr.bf16.mxu0 0
      %1388 = vmatpush1.bf16.msra.mxu0 %v1369
      %1389 = vmatprep.subr.bf16.mxu0 0
      %1390 = vmatpush1.bf16.msra.mxu0 %v1370
      %1391 = vmatprep.subr.bf16.mxu0 0
      %1392 = vmatpush1.bf16.msra.mxu0 %v1371
      %1393 = vmatprep.subr.bf16.mxu0 0
      %1394 = vmatpush1.bf16.msra.mxu0 %v1372
      %1395 = vmatprep.subr.bf16.mxu0 0
      %1396 = vmatpush1.bf16.msra.mxu0 %v1373
      %1397 = vmatprep.subr.bf16.mxu0 0
      %1398 = vmatpush1.bf16.msra.mxu0 %v1374
      %1399 = vmatprep.subr.bf16.mxu0 0
      %1400 = vmatpush1.bf16.msra.mxu0 0
      %1401 = vmatprep.subr.bf16.mxu0 0
      %1402 = vmatpush1.bf16.msra.mxu0 0
      %1403 = vmatprep.subr.bf16.mxu0 0
      %1404 = vmatpush1.bf16.msra.mxu0 0
      %1405 = vmatprep.subr.bf16.mxu0 0
      %1406 = vmatpush1.bf16.msra.mxu0 0
      %1407 = vmatprep.subr.bf16.mxu0 0
      %1408 = vmatpush1.bf16.msra.mxu0 0
      %1409 = vmatprep.subr.bf16.mxu0 0
      %1410 = vmatpush1.bf16.msra.mxu0 0
      %1411 = vmatprep.subr.bf16.mxu0 0
      %1412 = vmatpush1.bf16.msra.mxu0 0
      %1413 = vmatprep.subr.bf16.mxu0 0
      %1414 = vmatpush1.bf16.msra.mxu0 0
      %1415 = vmatprep.mubr.bf16.mxu0 0
      %1416 = vmatmul.mubr.bf16.gmra.mrb[0].mxu0 %v1317
      %v1417 = vpop.f32.mrb[0].mxu0
      %v1418 = vadd.f32 0.0, %v1417
      %v1419 = vpop.f32.mrb[0].mxu0
      %v1420 = vpop.f32.mrb[0].mxu0
      %v1421 = vadd.f32 0.0, %v1420
      %v1422 = vpop.f32.mrb[0].mxu0
      %1423 = vdwg.mxu0
      %v1424 = vadd.f32 %v1313, %v1418
      %v1425 = vadd.f32 %v1314, %v1421
      %v1426 = vld [vmem:[#allocation2 + $0xd] sm:$0xff]
      %v1427 = vld [vmem:[#allocation2 + $0x15] sm:$0xff]
      %v1428 = vsel %vm531, %v1426, 0.0
      %v1429 = vsel %vm532, %v1427, 0.0
      %v1430 = vpack.c.bf16 %v1429, %v1428
      %s1431 = scalar_lea.vmem %s3, 512
      %v1432 = vld [vmem:[%s1431] sm:$0xf]
      %v1433 = vld [vmem:[%s1431 + $0x4] sm:$0xf]
      %v1434 = vld [vmem:[%s1431 + $0x8] sm:$0xf]
      %v1435 = vld [vmem:[%s1431 + $0xc] sm:$0xf]
      %v1436 = vld [vmem:[%s1431 + $0x10] sm:$0xf]
      %v1437 = vld [vmem:[%s1431 + $0x14] sm:$0xf]
      %v1438 = vld [vmem:[%s1431 + $0x18] sm:$0xf]
      %v1439 = vld [vmem:[%s1431 + $0x1c] sm:$0xf]
      %v1440 = vld [vmem:[%s1431 + $0x20] sm:$0xf]
      %v1441 = vld [vmem:[%s1431 + $0x24] sm:$0xf]
      %v1442 = vld [vmem:[%s1431 + $0x28] sm:$0xf]
      %v1443 = vld [vmem:[%s1431 + $0x2c] sm:$0xf]
      %v1444 = vld [vmem:[%s1431 + $0x30] sm:$0xf]
      %v1445 = vld [vmem:[%s1431 + $0x34] sm:$0xf]
      %v1446 = vld [vmem:[%s1431 + $0x38] sm:$0xf]
      %v1447 = vld [vmem:[%s1431 + $0x3c] sm:$0xf]
      %v1464 = vunpack.c.l.b16 %v1432
      %v1465 = vunpack.c.l.b16 %v1433
      %v1466 = vunpack.c.l.b16 %v1434
      %v1467 = vunpack.c.l.b16 %v1435
      %v1468 = vunpack.c.l.b16 %v1436
      %v1469 = vunpack.c.l.b16 %v1437
      %v1470 = vunpack.c.l.b16 %v1438
      %v1471 = vunpack.c.l.b16 %v1439
      %v1472 = vunpack.c.l.b16 %v1440
      %v1473 = vunpack.c.l.b16 %v1441
      %v1474 = vunpack.c.l.b16 %v1442
      %v1475 = vunpack.c.l.b16 %v1443
      %v1476 = vunpack.c.l.b16 %v1444
      %v1477 = vunpack.c.l.b16 %v1445
      %v1478 = vunpack.c.l.b16 %v1446
      %v1479 = vunpack.c.l.b16 %v1447
      %v1480 = vpack.c.b16 %v1465, %v1464
      %v1481 = vpack.c.b16 %v1467, %v1466
      %v1482 = vpack.c.b16 %v1469, %v1468
      %v1483 = vpack.c.b16 %v1471, %v1470
      %v1484 = vpack.c.b16 %v1473, %v1472
      %v1485 = vpack.c.b16 %v1475, %v1474
      %v1486 = vpack.c.b16 %v1477, %v1476
      %v1487 = vpack.c.b16 %v1479, %v1478
      %1496 = vmatprep.subr.bf16.mxu0 0
      %1497 = vmatpush1.bf16.msra.mxu0 %v1480
      %1498 = vmatprep.subr.bf16.mxu0 0
      %1499 = vmatpush1.bf16.msra.mxu0 %v1481
      %1500 = vmatprep.subr.bf16.mxu0 0
      %1501 = vmatpush1.bf16.msra.mxu0 %v1482
      %1502 = vmatprep.subr.bf16.mxu0 0
      %1503 = vmatpush1.bf16.msra.mxu0 %v1483
      %1504 = vmatprep.subr.bf16.mxu0 0
      %1505 = vmatpush1.bf16.msra.mxu0 %v1484
      %1506 = vmatprep.subr.bf16.mxu0 0
      %1507 = vmatpush1.bf16.msra.mxu0 %v1485
      %1508 = vmatprep.subr.bf16.mxu0 0
      %1509 = vmatpush1.bf16.msra.mxu0 %v1486
      %1510 = vmatprep.subr.bf16.mxu0 0
      %1511 = vmatpush1.bf16.msra.mxu0 %v1487
      %1512 = vmatprep.subr.bf16.mxu0 0
      %1513 = vmatpush1.bf16.msra.mxu0 0
      %1514 = vmatprep.subr.bf16.mxu0 0
      %1515 = vmatpush1.bf16.msra.mxu0 0
      %1516 = vmatprep.subr.bf16.mxu0 0
      %1517 = vmatpush1.bf16.msra.mxu0 0
      %1518 = vmatprep.subr.bf16.mxu0 0
      %1519 = vmatpush1.bf16.msra.mxu0 0
      %1520 = vmatprep.subr.bf16.mxu0 0
      %1521 = vmatpush1.bf16.msra.mxu0 0
      %1522 = vmatprep.subr.bf16.mxu0 0
      %1523 = vmatpush1.bf16.msra.mxu0 0
      %1524 = vmatprep.subr.bf16.mxu0 0
      %1525 = vmatpush1.bf16.msra.mxu0 0
      %1526 = vmatprep.subr.bf16.mxu0 0
      %1527 = vmatpush1.bf16.msra.mxu0 0
      %1528 = vmatprep.mubr.bf16.mxu0 0
      %1529 = vmatmul.mubr.bf16.gmra.mrb[0].mxu0 %v1430
      %v1530 = vpop.f32.mrb[0].mxu0
      %v1531 = vadd.f32 0.0, %v1530
      %v1532 = vpop.f32.mrb[0].mxu0
      %v1533 = vpop.f32.mrb[0].mxu0
      %v1534 = vadd.f32 0.0, %v1533
      %v1535 = vpop.f32.mrb[0].mxu0
      %1536 = vdwg.mxu0
      %v1537 = vadd.f32 %v1424, %v1531
      %v1538 = vadd.f32 %v1425, %v1534
      %v1539 = vld [vmem:[%s4] sm:$0x1]
      %v1541 = vlaneseq
      %v1542 = vshrl.u32 %v1541, 7
      %v1543 = vsub.s32 0, %v1542
      %v1544 = vrot.slane %v1539, %v1543
      %v1546 = vadd.f32 %v1537, %v1544
      %v1547 = vadd.f32 %v1538, %v1544
      %v1548 = vmax.f32 %v1546, 0.0
      %v1549 = vmax.f32 %v1547, 0.0
      %v1550 = vpack.c.bf16 %v1549, %v1548
      %v1551 = vld [vmem:[%s5] sm:$0xf]
      %v1552 = vld [vmem:[%s5 + $0x4] sm:$0xf]
      %v1553 = vld [vmem:[%s5 + $0x8] sm:$0xf]
      %v1554 = vld [vmem:[%s5 + $0xc] sm:$0xf]
      %v1555 = vld [vmem:[%s5 + $0x10] sm:$0xf]
      %v1556 = vld [vmem:[%s5 + $0x14] sm:$0xf]
      %v1557 = vld [vmem:[%s5 + $0x18] sm:$0xf]
      %v1558 = vld [vmem:[%s5 + $0x1c] sm:$0xf]
      %v1559 = vld [vmem:[%s5 + $0x20] sm:$0xf]
      %v1560 = vld [vmem:[%s5 + $0x24] sm:$0xf]
      %v1561 = vld [vmem:[%s5 + $0x28] sm:$0xf]
      %v1562 = vld [vmem:[%s5 + $0x2c] sm:$0xf]
      %v1563 = vld [vmem:[%s5 + $0x30] sm:$0xf]
      %v1564 = vld [vmem:[%s5 + $0x34] sm:$0xf]
      %v1565 = vld [vmem:[%s5 + $0x38] sm:$0xf]
      %v1566 = vld [vmem:[%s5 + $0x3c] sm:$0xf]
      %v1567 = vld [vmem:[%s6] sm:$0x1]
      %v1569 = vlaneseq
      %v1570 = vshrl.u32 %v1569, 7
      %v1571 = vsub.s32 0, %v1570
      %v1572 = vrot.slane %v1567, %v1571
      %v1590 = vunpack.c.l.b16 %v1551
      %v1591 = vunpack.c.l.b16 %v1552
      %v1592 = vunpack.c.l.b16 %v1553
      %v1593 = vunpack.c.l.b16 %v1554
      %v1594 = vunpack.c.l.b16 %v1555
      %v1595 = vunpack.c.l.b16 %v1556
      %v1596 = vunpack.c.l.b16 %v1557
      %v1597 = vunpack.c.l.b16 %v1558
      %v1598 = vunpack.c.l.b16 %v1559
      %v1599 = vunpack.c.l.b16 %v1560
      %v1600 = vunpack.c.l.b16 %v1561
      %v1601 = vunpack.c.l.b16 %v1562
      %v1602 = vunpack.c.l.b16 %v1563
      %v1603 = vunpack.c.l.b16 %v1564
      %v1604 = vunpack.c.l.b16 %v1565
      %v1605 = vunpack.c.l.b16 %v1566
      %v1606 = vpack.c.b16 %v1591, %v1590
      %v1607 = vpack.c.b16 %v1593, %v1592
      %v1608 = vpack.c.b16 %v1595, %v1594
      %v1609 = vpack.c.b16 %v1597, %v1596
      %v1610 = vpack.c.b16 %v1599, %v1598
      %v1611 = vpack.c.b16 %v1601, %v1600
      %v1612 = vpack.c.b16 %v1603, %v1602
      %v1613 = vpack.c.b16 %v1605, %v1604
      %1622 = vmatprep.subr.bf16.mxu0 0
      %1623 = vmatpush1.bf16.msra.mxu0 %v1606
      %1624 = vmatprep.subr.bf16.mxu0 0
      %1625 = vmatpush1.bf16.msra.mxu0 %v1607
      %1626 = vmatprep.subr.bf16.mxu0 0
      %1627 = vmatpush1.bf16.msra.mxu0 %v1608
      %1628 = vmatprep.subr.bf16.mxu0 0
      %1629 = vmatpush1.bf16.msra.mxu0 %v1609
      %1630 = vmatprep.subr.bf16.mxu0 0
      %1631 = vmatpush1.bf16.msra.mxu0 %v1610
      %1632 = vmatprep.subr.bf16.mxu0 0
      %1633 = vmatpush1.bf16.msra.mxu0 %v1611
      %1634 = vmatprep.subr.bf16.mxu0 0
      %1635 = vmatpush1.bf16.msra.mxu0 %v1612
      %1636 = vmatprep.subr.bf16.mxu0 0
      %1637 = vmatpush1.bf16.msra.mxu0 %v1613
      %1638 = vmatprep.subr.bf16.mxu0 0
      %1639 = vmatpush1.bf16.msra.mxu0 0
      %1640 = vmatprep.subr.bf16.mxu0 0
      %1641 = vmatpush1.bf16.msra.mxu0 0
      %1642 = vmatprep.subr.bf16.mxu0 0
      %1643 = vmatpush1.bf16.msra.mxu0 0
      %1644 = vmatprep.subr.bf16.mxu0 0
      %1645 = vmatpush1.bf16.msra.mxu0 0
      %1646 = vmatprep.subr.bf16.mxu0 0
      %1647 = vmatpush1.bf16.msra.mxu0 0
      %1648 = vmatprep.subr.bf16.mxu0 0
      %1649 = vmatpush1.bf16.msra.mxu0 0
      %1650 = vmatprep.subr.bf16.mxu0 0
      %1651 = vmatpush1.bf16.msra.mxu0 0
      %1652 = vmatprep.subr.bf16.mxu0 0
      %1653 = vmatpush1.bf16.msra.mxu0 0
      %1654 = vmatprep.mubr.bf16.mxu0 0
      %1655 = vmatmul.mubr.bf16.gmra.mrb[0].mxu0 %v1550
      %v1656 = vpop.f32.mrb[0].mxu0
      %v1657 = vadd.f32 %v1572, %v1656
      %v1658 = vpop.f32.mrb[0].mxu0
      %v1659 = vpop.f32.mrb[0].mxu0
      %v1660 = vadd.f32 %v1572, %v1659
      %v1661 = vpop.f32.mrb[0].mxu0
      %1662 = vdwg.mxu0
      %v1663 = vadd.f32 %v1657, %v376
      %v1664 = vadd.f32 %v1660, %v377
      %v1665 = vmax.f32 %v1663, 0.0
      %v1666 = vmax.f32 %v1664, 0.0
      %v1667 = vpack.c.bf16 %v1666, %v1665
      %v1669 = vunpack.c.l.b16 %v1667
      %v1670 = vunpack.c.h.b16 %v1667
      %v1671 = vpack.c.b16 %v1669, %v1669
      %v1672 = vpack.c.b16 %v1670, %v1670
      %1675 = vst [vmem:[%s367] sm:$0xf] %v1671
      %1676 = vst [vmem:[%s367 + $0x4] sm:$0xf] %v1672
      %v1677 = vld [vmem:[%s7] sm:$0xf]
      %v1678 = vld [vmem:[%s7 + $0x4] sm:$0xf]
      %v1679 = vld [vmem:[%s7 + $0x8] sm:$0xf]
      %v1680 = vld [vmem:[%s7 + $0xc] sm:$0xf]
      %v1681 = vld [vmem:[%s7 + $0x10] sm:$0xf]
      %v1682 = vld [vmem:[%s7 + $0x14] sm:$0xf]
      %v1683 = vld [vmem:[%s7 + $0x18] sm:$0xf]
      %v1684 = vld [vmem:[%s7 + $0x1c] sm:$0xf]
      %v1685 = vld [vmem:[%s7 + $0x20] sm:$0xf]
      %v1686 = vld [vmem:[%s7 + $0x24] sm:$0xf]
      %v1687 = vld [vmem:[%s7 + $0x28] sm:$0xf]
      %v1688 = vld [vmem:[%s7 + $0x2c] sm:$0xf]
      %v1689 = vld [vmem:[%s7 + $0x30] sm:$0xf]
      %v1690 = vld [vmem:[%s7 + $0x34] sm:$0xf]
      %v1691 = vld [vmem:[%s7 + $0x38] sm:$0xf]
      %v1692 = vld [vmem:[%s7 + $0x3c] sm:$0xf]
      %v1693 = vld [vmem:[%s8] sm:$0x1]
      %v1695 = vlaneseq
      %v1696 = vshrl.u32 %v1695, 7
      %v1697 = vsub.s32 0, %v1696
      %v1698 = vrot.slane %v1693, %v1697
      %v1716 = vunpack.c.l.b16 %v1677
      %v1717 = vunpack.c.l.b16 %v1678
      %v1718 = vunpack.c.l.b16 %v1679
      %v1719 = vunpack.c.l.b16 %v1680
      %v1720 = vunpack.c.l.b16 %v1681
      %v1721 = vunpack.c.l.b16 %v1682
      %v1722 = vunpack.c.l.b16 %v1683
      %v1723 = vunpack.c.l.b16 %v1684
      %v1724 = vunpack.c.l.b16 %v1685
      %v1725 = vunpack.c.l.b16 %v1686
      %v1726 = vunpack.c.l.b16 %v1687
      %v1727 = vunpack.c.l.b16 %v1688
      %v1728 = vunpack.c.l.b16 %v1689
      %v1729 = vunpack.c.l.b16 %v1690
      %v1730 = vunpack.c.l.b16 %v1691
      %v1731 = vunpack.c.l.b16 %v1692
      %v1732 = vpack.c.b16 %v1717, %v1716
      %v1733 = vpack.c.b16 %v1719, %v1718
      %v1734 = vpack.c.b16 %v1721, %v1720
      %v1735 = vpack.c.b16 %v1723, %v1722
      %v1736 = vpack.c.b16 %v1725, %v1724
      %v1737 = vpack.c.b16 %v1727, %v1726
      %v1738 = vpack.c.b16 %v1729, %v1728
      %v1739 = vpack.c.b16 %v1731, %v1730
      %1748 = vmatprep.subr.bf16.mxu0 0
      %1749 = vmatpush1.bf16.msra.mxu0 %v1732
      %1750 = vmatprep.subr.bf16.mxu0 0
      %1751 = vmatpush1.bf16.msra.mxu0 %v1733
      %1752 = vmatprep.subr.bf16.mxu0 0
      %1753 = vmatpush1.bf16.msra.mxu0 %v1734
      %1754 = vmatprep.subr.bf16.mxu0 0
      %1755 = vmatpush1.bf16.msra.mxu0 %v1735
      %1756 = vmatprep.subr.bf16.mxu0 0
      %1757 = vmatpush1.bf16.msra.mxu0 %v1736
      %1758 = vmatprep.subr.bf16.mxu0 0
      %1759 = vmatpush1.bf16.msra.mxu0 %v1737
      %1760 = vmatprep.subr.bf16.mxu0 0
      %1761 = vmatpush1.bf16.msra.mxu0 %v1738
      %1762 = vmatprep.subr.bf16.mxu0 0
      %1763 = vmatpush1.bf16.msra.mxu0 %v1739
      %1764 = vmatprep.subr.bf16.mxu0 0
      %1765 = vmatpush1.bf16.msra.mxu0 0
      %1766 = vmatprep.subr.bf16.mxu0 0
      %1767 = vmatpush1.bf16.msra.mxu0 0
      %1768 = vmatprep.subr.bf16.mxu0 0
      %1769 = vmatpush1.bf16.msra.mxu0 0
      %1770 = vmatprep.subr.bf16.mxu0 0
      %1771 = vmatpush1.bf16.msra.mxu0 0
      %1772 = vmatprep.subr.bf16.mxu0 0
      %1773 = vmatpush1.bf16.msra.mxu0 0
      %1774 = vmatprep.subr.bf16.mxu0 0
      %1775 = vmatpush1.bf16.msra.mxu0 0
      %1776 = vmatprep.subr.bf16.mxu0 0
      %1777 = vmatpush1.bf16.msra.mxu0 0
      %1778 = vmatprep.subr.bf16.mxu0 0
      %1779 = vmatpush1.bf16.msra.mxu0 0
      %1780 = vmatprep.mubr.bf16.mxu0 0
      %1781 = vmatmul.mubr.bf16.gmra.mrb[0].mxu0 %v1667
      %v1782 = vpop.f32.mrb[0].mxu0
      %v1783 = vadd.f32 %v1698, %v1782
      %v1784 = vpop.f32.mrb[0].mxu0
      %v1785 = vpop.f32.mrb[0].mxu0
      %v1786 = vadd.f32 %v1698, %v1785
      %v1787 = vpop.f32.mrb[0].mxu0
      %1788 = vdwg.mxu0
      %v1789 = vmax.f32 %v1783, 0.0
      %v1790 = vmax.f32 %v1786, 0.0
      %v1791 = vpack.c.bf16 %v1790, %v1789
      %v1793 = vunpack.c.l.b16 %v1791
      %v1794 = vunpack.c.h.b16 %v1791
      %v1795 = vpack.c.b16 %v1793, %v1793
      %v1796 = vpack.c.b16 %v1794, %v1794
      %1799 = vst [vmem:[%s372] sm:$0xf] %v1795
      %1800 = vst [vmem:[%s372 + $0x4] sm:$0xf] %v1796
      %p1801 = scmp.lt.s32.totalorder %s22, 1
      %s1802 = scalar_select %p1801, %s22, 1
      %s1803 = smul.addr %s1802, 2
      %s1804 = smul.addr %s1803, 4
      %s1805 = scalar_lea.vmem %s9, %s1804
      %p1806 = scmp.lt.s32.totalorder %s22, 1
      %s1807 = scalar_select %p1806, %s22, 1
      %s1808 = smul.addr %s1807, 2
      %s1809 = smul.addr %s1808, 4
      %s1810 = scalar_lea.vmem %s10, %s1809
      // Predicated region
      $region57: #{depth_net_fwd.9} parent=55 // pred_check
        %p1811 = pneg %p234
      $region58: #{depth_net_fwd.9} parent=55 // pred_check_branch
        %1813 = sbr.rel (%p1811) target = $region60
      $region59: #{depth_net_fwd.9} parent=55 // pred_region
        _
      $region60: #{depth_net_fwd.9} parent=55 // pred_fallthru
        _
      // Predicated region
      $region61: #{depth_net_fwd.9} parent=55 // pred_check
        %p1814 = pneg %p260
      $region62: #{depth_net_fwd.9} parent=55 // pred_check_branch
        %1816 = sbr.rel (%p1814) target = $region64
      $region63: #{depth_net_fwd.9} parent=55 // pred_region
        _
      $region64: #{depth_net_fwd.9} parent=55 // pred_fallthru
        _
    $region56: #{depth_net_fwd.9} parent=5 // pred_fallthru
      _
    %p1817 = scmp.le.s32.totalorder 2, %s17
    // Predicated region
    $region65: #{depth_net_fwd.9} parent=5 // pred_check
      %p1818 = pneg %p1817
    $region66: #{depth_net_fwd.9} parent=5 // pred_check_branch
      %1820 = sbr.rel (%p1818) target = $region68
    $region67: #{depth_net_fwd.9} parent=5 // pred_region
      %s1821 = ssub.s32 %s17, 2
      // Predicated region
      $region69: #{depth_net_fwd.9} parent=67 // pred_check
        %p1822 = pneg %p240
      $region70: #{depth_net_fwd.9} parent=67 // pred_check_branch
        %1824 = sbr.rel (%p1822) target = $region72
      $region71: #{depth_net_fwd.9} parent=67 // pred_region
        %p1825 = scmp.lt.s32.totalorder %s23, 1
        %s1826 = scalar_select %p1825, %s23, 1
        %s1827 = smul.addr %s1826, 2
        %s1828 = smul.addr %s1827, 4
        %s1829 = scalar_lea.vmem %s9, %s1828
      $region72: #{depth_net_fwd.9} parent=67 // pred_fallthru
        _
      // Predicated region
      $region73: #{depth_net_fwd.9} parent=67 // pred_check
        %p1830 = pneg %p266
      $region74: #{depth_net_fwd.9} parent=67 // pred_check_branch
        %1832 = sbr.rel (%p1830) target = $region76
      $region75: #{depth_net_fwd.9} parent=67 // pred_region
        %p1833 = scmp.lt.s32.totalorder %s23, 1
        %s1834 = scalar_select %p1833, %s23, 1
        %s1835 = smul.addr %s1834, 2
        %s1836 = smul.addr %s1835, 4
        %s1837 = scalar_lea.vmem %s10, %s1836
      $region76: #{depth_net_fwd.9} parent=67 // pred_fallthru
        _
    $region68: #{depth_net_fwd.9} parent=5 // pred_fallthru
      _
  $region6: #{depth_net_fwd.9} parent=0 // loop_footer
    %s21 = sadd.s32 1, %s17
  $region7: #{depth_net_fwd.9} parent=0 // loop_footer_branch
    %16 = sbr.rel target = $region3
  $region8: #{depth_net_fwd.9} parent=0 // loop_exit
    _

// kernel: depth_net_fwd.12
$region0: #{depth_net_fwd.12}
  #allocation0 [shape = 'u32[]', space=smem, size = 0x4, offset = 0x4, fixed_abs, tag = 'smem constant byte address 0x4 - core index']
  #allocation1 [shape = 'u32[144,128]{1,0:T(1,128)}', space=vmem, size = 0x12000, scoped, tag = 'internal scratch']
  #allocation2 [shape = 'f32[32,128]{1,0:T(8,128)}', space=vmem, size = 0x4000, scoped, tag = 'scratch operand']
  %s0 = inlined_call_operand.vmem [shape: bf16[2,16,128], index: 0, kind: input, shape index: {}]
  %s1 = inlined_call_operand.vmem [shape: bf16[128,128], index: 1, kind: input, shape index: {}]
  %s2 = inlined_call_operand.vmem [shape: f32[1,128], index: 2, kind: input, shape index: {}]
  %s3 = inlined_call_operand.vmem [shape: bf16[9,128,128], index: 3, kind: input, shape index: {}]
  %s4 = inlined_call_operand.vmem [shape: f32[1,128], index: 4, kind: input, shape index: {}]
  %s5 = inlined_call_operand.vmem [shape: bf16[128,128], index: 5, kind: input, shape index: {}]
  %s6 = inlined_call_operand.vmem [shape: f32[1,128], index: 6, kind: input, shape index: {}]
  %s7 = inlined_call_operand.vmem [shape: bf16[128,128], index: 7, kind: input, shape index: {}]
  %s8 = inlined_call_operand.vmem [shape: f32[1,128], index: 8, kind: input, shape index: {}]
  %s9 = inlined_call_operand.hbm [shape: bf16[2,16,128], index: 9, kind: output, shape index: {0}]
  %s10 = inlined_call_operand.vmem [shape: bf16[2,16,128], index: 10, kind: output, shape index: {1}]
  %11 = xla_tuple %s9, %s10
  %s12 = sld [smem:[#allocation0]]
  $region77: #{depth_net_fwd.12} parent=0
    _
  %s14 = ssub.s32 1, %s12
  %s15 = scalar_select 0, %s14, %s12
  $region1: #{depth_net_fwd.12} parent=0
    #allocation3 [shape = 'u8[8192]{0}', space=vmem, size = 0x2000, scoped, tag = 'output window, operand 0']
    #allocation4 [shape = 's32[2]{0}', space=sflag, size = 0x8, scoped, tag = 'scoped memory for depth_net_fwd.12']
    %16 = vsyncpa [#allocation4], 0
    %s17 = scalar_lea.sflag [#allocation4], 1
    %18 = vsyncpa %s17, 0
    loop: start=0, step=1, limit=4
    $region2: #{depth_net_fwd.12} parent=1 // loop_pre_header
      _
    $region3: #{depth_net_fwd.12} parent=1 // loop_header
      %s20 = sphi 0, %s24
      %p21 = scmp.ge.s32.totalorder %s20, 4
      %s30 = sphi 0, %s32
      %s33 = sphi 0, %s30
      %s34 = sphi 0, %s33
      %s50 = sphi 0, %s34
      %s54 = sphi 0, %s54
      %s56 = sphi 0, %s54
      %s57 = sphi 0, %s56
      %s71 = sphi 0, %s57
      %s75 = sphi 0, %s75
      %s77 = sphi 0, %s75
      %s78 = sphi 0, %s77
      %s92 = sphi 0, %s78
      %s96 = sphi 0, %s96
      %s98 = sphi 0, %s96
      %s99 = sphi 0, %s98
      %s113 = sphi 0, %s99
      %s117 = sphi 0, %s117
      %s119 = sphi 0, %s117
      %s120 = sphi 0, %s119
      %s134 = sphi 0, %s120
      %s138 = sphi 0, %s138
      %s140 = sphi 0, %s138
      %s141 = sphi 0, %s140
      %s155 = sphi 0, %s141
      %s159 = sphi 0, %s159
      %s161 = sphi 0, %s159
      %s162 = sphi 0, %s161
      %s176 = sphi 0, %s162
      %s180 = sphi 0, %s180
      %s182 = sphi 0, %s180
      %s183 = sphi 0, %s182
      %s197 = sphi 0, %s183
      %s201 = sphi 0, %s201
      %s203 = sphi 0, %s201
      %s204 = sphi 0, %s203
      %s218 = sphi 0, %s204
      %s224 = sphi 0, %s226
      %s227 = sphi 0, %s224
      %s228 = sphi 0, %s227
      %s244 = sphi 0, %s228
      %s250 = sphi 0, %s252
      %s253 = sphi 0, %s250
      %s254 = sphi 0, %s253
      %s270 = sphi 0, %s254
    $region4: #{depth_net_fwd.12} parent=1 // loop_header_branch
      %23 = sbr.rel (%p21) target = $region8
    $region5: #{depth_net_fwd.12} parent=1 // loop_body
      %s25 = ssub.s32 %s20, 1
      %s26 = ssub.s32 %s20, 2
      %s27 = sadd.s32 %s20, 1
      %s28 = ssub.s32 %s20, %s27
      %p29 = scmp.eq.s32.totalorder %s28, 0
      %s31 = sadd.s32 %s30, 1
      %s32 = scalar_select %p29, %s30, %s31
      %p35 = pneg %p29
      %p36 = scmp.eq.s32.totalorder %s20, 1
      %p37 = por %p35, %p36
      %p38 = scmp.ne.s32.totalorder %s30, %s33
      %p39 = scmp.eq.s32.totalorder %s20, 0
      %p40 = por %p38, %p39
      %p41 = scmp.ne.s32.totalorder %s30, %s33
      %p42 = scmp.eq.s32.totalorder %s25, 1
      %p43 = por %p41, %p42
      %p44 = scmp.ne.s32.totalorder %s33, %s34
      %p45 = scmp.eq.s32.totalorder %s25, 0
      %p46 = por %p44, %p45
      %p47 = scmp.ne.s32.totalorder %s33, %s34
      %p48 = scmp.eq.s32.totalorder %s26, 1
      %p49 = por %p47, %p48
      %p51 = scmp.ne.s32.totalorder %s34, %s50
      %p52 = scmp.eq.s32.totalorder %s26, 0
      %p53 = por %p51, %p52
      %s55 = sadd.s32 %s54, 1
      %p58 = scmp.eq.s32.totalorder %s20, 1
      %p59 = scmp.ne.s32.totalorder %s54, %s56
      %p60 = scmp.eq.s32.totalorder %s20, 0
      %p61 = por %p59, %p60
      %p62 = scmp.ne.s32.totalorder %s54, %s56
      %p63 = scmp.eq.s32.totalorder %s25, 1
      %p64 = por %p62, %p63
      %p65 = scmp.ne.s32.totalorder %s56, %s57
      %p66 = scmp.eq.s32.totalorder %s25, 0
      %p67 = por %p65, %p66
      %p68 = scmp.ne.s32.totalorder %s56, %s57
      %p69 = scmp.eq.s32.totalorder %s26, 1
      %p70 = por %p68, %p69
      %p72 = scmp.ne.s32.totalorder %s57, %s71
      %p73 = scmp.eq.s32.totalorder %s26, 0
      %p74 = por %p72, %p73
      %s76 = sadd.s32 %s75, 1
      %p79 = scmp.eq.s32.totalorder %s20, 1
      %p80 = scmp.ne.s32.totalorder %s75, %s77
      %p81 = scmp.eq.s32.totalorder %s20, 0
      %p82 = por %p80, %p81
      %p83 = scmp.ne.s32.totalorder %s75, %s77
      %p84 = scmp.eq.s32.totalorder %s25, 1
      %p85 = por %p83, %p84
      %p86 = scmp.ne.s32.totalorder %s77, %s78
      %p87 = scmp.eq.s32.totalorder %s25, 0
      %p88 = por %p86, %p87
      %p89 = scmp.ne.s32.totalorder %s77, %s78
      %p90 = scmp.eq.s32.totalorder %s26, 1
      %p91 = por %p89, %p90
      %p93 = scmp.ne.s32.totalorder %s78, %s92
      %p94 = scmp.eq.s32.totalorder %s26, 0
      %p95 = por %p93, %p94
      %s97 = sadd.s32 %s96, 1
      %p100 = scmp.eq.s32.totalorder %s20, 1
      %p101 = scmp.ne.s32.totalorder %s96, %s98
      %p102 = scmp.eq.s32.totalorder %s20, 0
      %p103 = por %p101, %p102
      %p104 = scmp.ne.s32.totalorder %s96, %s98
      %p105 = scmp.eq.s32.totalorder %s25, 1
      %p106 = por %p104, %p105
      %p107 = scmp.ne.s32.totalorder %s98, %s99
      %p108 = scmp.eq.s32.totalorder %s25, 0
      %p109 = por %p107, %p108
      %p110 = scmp.ne.s32.totalorder %s98, %s99
      %p111 = scmp.eq.s32.totalorder %s26, 1
      %p112 = por %p110, %p111
      %p114 = scmp.ne.s32.totalorder %s99, %s113
      %p115 = scmp.eq.s32.totalorder %s26, 0
      %p116 = por %p114, %p115
      %s118 = sadd.s32 %s117, 1
      %p121 = scmp.eq.s32.totalorder %s20, 1
      %p122 = scmp.ne.s32.totalorder %s117, %s119
      %p123 = scmp.eq.s32.totalorder %s20, 0
      %p124 = por %p122, %p123
      %p125 = scmp.ne.s32.totalorder %s117, %s119
      %p126 = scmp.eq.s32.totalorder %s25, 1
      %p127 = por %p125, %p126
      %p128 = scmp.ne.s32.totalorder %s119, %s120
      %p129 = scmp.eq.s32.totalorder %s25, 0
      %p130 = por %p128, %p129
      %p131 = scmp.ne.s32.totalorder %s119, %s120
      %p132 = scmp.eq.s32.totalorder %s26, 1
      %p133 = por %p131, %p132
      %p135 = scmp.ne.s32.totalorder %s120, %s134
      %p136 = scmp.eq.s32.totalorder %s26, 0
      %p137 = por %p135, %p136
      %s139 = sadd.s32 %s138, 1
      %p142 = scmp.eq.s32.totalorder %s20, 1
      %p143 = scmp.ne.s32.totalorder %s138, %s140
      %p144 = scmp.eq.s32.totalorder %s20, 0
      %p145 = por %p143, %p144
      %p146 = scmp.ne.s32.totalorder %s138, %s140
      %p147 = scmp.eq.s32.totalorder %s25, 1
      %p148 = por %p146, %p147
      %p149 = scmp.ne.s32.totalorder %s140, %s141
      %p150 = scmp.eq.s32.totalorder %s25, 0
      %p151 = por %p149, %p150
      %p152 = scmp.ne.s32.totalorder %s140, %s141
      %p153 = scmp.eq.s32.totalorder %s26, 1
      %p154 = por %p152, %p153
      %p156 = scmp.ne.s32.totalorder %s141, %s155
      %p157 = scmp.eq.s32.totalorder %s26, 0
      %p158 = por %p156, %p157
      %s160 = sadd.s32 %s159, 1
      %p163 = scmp.eq.s32.totalorder %s20, 1
      %p164 = scmp.ne.s32.totalorder %s159, %s161
      %p165 = scmp.eq.s32.totalorder %s20, 0
      %p166 = por %p164, %p165
      %p167 = scmp.ne.s32.totalorder %s159, %s161
      %p168 = scmp.eq.s32.totalorder %s25, 1
      %p169 = por %p167, %p168
      %p170 = scmp.ne.s32.totalorder %s161, %s162
      %p171 = scmp.eq.s32.totalorder %s25, 0
      %p172 = por %p170, %p171
      %p173 = scmp.ne.s32.totalorder %s161, %s162
      %p174 = scmp.eq.s32.totalorder %s26, 1
      %p175 = por %p173, %p174
      %p177 = scmp.ne.s32.totalorder %s162, %s176
      %p178 = scmp.eq.s32.totalorder %s26, 0
      %p179 = por %p177, %p178
      %s181 = sadd.s32 %s180, 1
      %p184 = scmp.eq.s32.totalorder %s20, 1
      %p185 = scmp.ne.s32.totalorder %s180, %s182
      %p186 = scmp.eq.s32.totalorder %s20, 0
      %p187 = por %p185, %p186
      %p188 = scmp.ne.s32.totalorder %s180, %s182
      %p189 = scmp.eq.s32.totalorder %s25, 1
      %p190 = por %p188, %p189
      %p191 = scmp.ne.s32.totalorder %s182, %s183
      %p192 = scmp.eq.s32.totalorder %s25, 0
      %p193 = por %p191, %p192
      %p194 = scmp.ne.s32.totalorder %s182, %s183
      %p195 = scmp.eq.s32.totalorder %s26, 1
      %p196 = por %p194, %p195
      %p198 = scmp.ne.s32.totalorder %s183, %s197
      %p199 = scmp.eq.s32.totalorder %s26, 0
      %p200 = por %p198, %p199
      %s202 = sadd.s32 %s201, 1
      %p205 = scmp.eq.s32.totalorder %s20, 1
      %p206 = scmp.ne.s32.totalorder %s201, %s203
      %p207 = scmp.eq.s32.totalorder %s20, 0
      %p208 = por %p206, %p207
      %p209 = scmp.ne.s32.totalorder %s201, %s203
      %p210 = scmp.eq.s32.totalorder %s25, 1
      %p211 = por %p209, %p210
      %p212 = scmp.ne.s32.totalorder %s203, %s204
      %p213 = scmp.eq.s32.totalorder %s25, 0
      %p214 = por %p212, %p213
      %p215 = scmp.ne.s32.totalorder %s203, %s204
      %p216 = scmp.eq.s32.totalorder %s26, 1
      %p217 = por %p215, %p216
      %p219 = scmp.ne.s32.totalorder %s204, %s218
      %p220 = scmp.eq.s32.totalorder %s26, 0
      %p221 = por %p219, %p220
      %s222 = ssub.s32 %s20, %s27
      %p223 = scmp.eq.s32.totalorder %s222, 0
      %s225 = sadd.s32 %s224, 1
      %s226 = scalar_select %p223, %s224, %s225
      %p229 = pneg %p223
      %p230 = scmp.eq.s32.totalorder %s20, 1
      %p231 = por %p229, %p230
      %p232 = scmp.ne.s32.totalorder %s224, %s227
      %p233 = scmp.eq.s32.totalorder %s20, 0
      %p234 = por %p232, %p233
      %p235 = scmp.ne.s32.totalorder %s224, %s227
      %p236 = scmp.eq.s32.totalorder %s25, 1
      %p237 = por %p235, %p236
      %p238 = scmp.ne.s32.totalorder %s227, %s228
      %p239 = scmp.eq.s32.totalorder %s25, 0
      %p240 = por %p238, %p239
      %p241 = scmp.ne.s32.totalorder %s227, %s228
      %p242 = scmp.eq.s32.totalorder %s26, 1
      %p243 = por %p241, %p242
      %p245 = scmp.ne.s32.totalorder %s228, %s244
      %p246 = scmp.eq.s32.totalorder %s26, 0
      %p247 = por %p245, %p246
      %s248 = ssub.s32 %s20, %s27
      %p249 = scmp.eq.s32.totalorder %s248, 0
      %s251 = sadd.s32 %s250, 1
      %s252 = scalar_select %p249, %s250, %s251
      %p255 = pneg %p249
      %p256 = scmp.eq.s32.totalorder %s20, 1
      %p257 = por %p255, %p256
      %p258 = scmp.ne.s32.totalorder %s250, %s253
      %p259 = scmp.eq.s32.totalorder %s20, 0
      %p260 = por %p258, %p259
      %p261 = scmp.ne.s32.totalorder %s250, %s253
      %p262 = scmp.eq.s32.totalorder %s25, 1
      %p263 = por %p261, %p262
      %p264 = scmp.ne.s32.totalorder %s253, %s254
      %p265 = scmp.eq.s32.totalorder %s25, 0
      %p266 = por %p264, %p265
      %p267 = scmp.ne.s32.totalorder %s253, %s254
      %p268 = scmp.eq.s32.totalorder %s26, 1
      %p269 = por %p267, %p268
      %p271 = scmp.ne.s32.totalorder %s254, %s270
      %p272 = scmp.eq.s32.totalorder %s26, 0
      %p273 = por %p271, %p272
      %p274 = scmp.le.s32.totalorder 1, %s20
      %p275 = scmp.lt.s32.totalorder %s20, 3
      %p276 = pnand %p274, %p275
      %p277 = pneg %p276
      // Predicated region
      $region9: #{depth_net_fwd.12} parent=5 // pred_check
        _
      $region10: #{depth_net_fwd.12} parent=5 // pred_check_branch
        %279 = sbr.rel (%p276) target = $region12
      $region11: #{depth_net_fwd.12} parent=5 // pred_region
        %s280 = ssub.s32 %s20, 1
        // Predicated region
        $region13: #{depth_net_fwd.12} parent=11 // pred_check
          %p281 = pneg %p67
        $region14: #{depth_net_fwd.12} parent=11 // pred_check_branch
          %283 = sbr.rel (%p281) target = $region16
        $region15: #{depth_net_fwd.12} parent=11 // pred_region
          _
        $region16: #{depth_net_fwd.12} parent=11 // pred_fallthru
          _
        // Predicated region
        $region17: #{depth_net_fwd.12} parent=11 // pred_check
          %p284 = pneg %p88
        $region18: #{depth_net_fwd.12} parent=11 // pred_check_branch
          %286 = sbr.rel (%p284) target = $region20
        $region19: #{depth_net_fwd.12} parent=11 // pred_region
          _
        $region20: #{depth_net_fwd.12} parent=11 // pred_fallthru
          _
        // Predicated region
        $region21: #{depth_net_fwd.12} parent=11 // pred_check
          %p287 = pneg %p109
        $region22: #{depth_net_fwd.12} parent=11 // pred_check_branch
          %289 = sbr.rel (%p287) target = $region24
        $region23: #{depth_net_fwd.12} parent=11 // pred_region
          _
        $region24: #{depth_net_fwd.12} parent=11 // pred_fallthru
          _
        // Predicated region
        $region25: #{depth_net_fwd.12} parent=11 // pred_check
          %p290 = pneg %p130
        $region26: #{depth_net_fwd.12} parent=11 // pred_check_branch
          %292 = sbr.rel (%p290) target = $region28
        $region27: #{depth_net_fwd.12} parent=11 // pred_region
          _
        $region28: #{depth_net_fwd.12} parent=11 // pred_fallthru
          _
        // Predicated region
        $region29: #{depth_net_fwd.12} parent=11 // pred_check
          %p293 = pneg %p151
        $region30: #{depth_net_fwd.12} parent=11 // pred_check_branch
          %295 = sbr.rel (%p293) target = $region32
        $region31: #{depth_net_fwd.12} parent=11 // pred_region
          _
        $region32: #{depth_net_fwd.12} parent=11 // pred_fallthru
          _
        // Predicated region
        $region33: #{depth_net_fwd.12} parent=11 // pred_check
          %p296 = pneg %p172
        $region34: #{depth_net_fwd.12} parent=11 // pred_check_branch
          %298 = sbr.rel (%p296) target = $region36
        $region35: #{depth_net_fwd.12} parent=11 // pred_region
          _
        $region36: #{depth_net_fwd.12} parent=11 // pred_fallthru
          _
        // Predicated region
        $region37: #{depth_net_fwd.12} parent=11 // pred_check
          %p299 = pneg %p193
        $region38: #{depth_net_fwd.12} parent=11 // pred_check_branch
          %301 = sbr.rel (%p299) target = $region40
        $region39: #{depth_net_fwd.12} parent=11 // pred_region
          _
        $region40: #{depth_net_fwd.12} parent=11 // pred_fallthru
          _
        // Predicated region
        $region41: #{depth_net_fwd.12} parent=11 // pred_check
          %p302 = pneg %p214
        $region42: #{depth_net_fwd.12} parent=11 // pred_check_branch
          %304 = sbr.rel (%p302) target = $region44
        $region43: #{depth_net_fwd.12} parent=11 // pred_region
          _
        $region44: #{depth_net_fwd.12} parent=11 // pred_fallthru
          _
      $region12: #{depth_net_fwd.12} parent=5 // pred_fallthru
        _
      %p305 = scmp.lt.s32.totalorder %s20, 2
      // Predicated region
      $region45: #{depth_net_fwd.12} parent=5 // pred_check
        %p306 = pneg %p305
      $region46: #{depth_net_fwd.12} parent=5 // pred_check_branch
        %308 = sbr.rel (%p306) target = $region48
      $region47: #{depth_net_fwd.12} parent=5 // pred_region
        // Predicated region
        $region49: #{depth_net_fwd.12} parent=47 // pred_check
          %p309 = pneg %p40
        $region50: #{depth_net_fwd.12} parent=47 // pred_check_branch
          %311 = sbr.rel (%p309) target = $region52
        $region51: #{depth_net_fwd.12} parent=47 // pred_region
          %p312 = scmp.lt.s32.totalorder %s20, 1
          %s313 = scalar_select %p312, %s20, 1
          %s314 = smul.addr %s313, 2
          %s315 = smul.addr %s314, 4
          %s316 = scalar_lea.vmem %s0, %s315
        $region52: #{depth_net_fwd.12} parent=47 // pred_fallthru
          _
      $region48: #{depth_net_fwd.12} parent=5 // pred_fallthru
        _
      %p317 = scmp.le.s32.totalorder 1, %s20
      %p318 = scmp.lt.s32.totalorder %s20, 3
      %p319 = pnand %p317, %p318
      %p320 = pneg %p319
      // Predicated region
      $region53: #{depth_net_fwd.12} parent=5 // pred_check
        _
      $region54: #{depth_net_fwd.12} parent=5 // pred_check_branch
        %322 = sbr.rel (%p319) target = $region56
      $region55: #{depth_net_fwd.12} parent=5 // pred_region
        %s323 = ssub.s32 %s20, 1
        %p324 = scmp.lt.s32.totalorder %s25, 1
        %s325 = scalar_select %p324, %s25, 1
        %s326 = smul.addr %s325, 2
        %s327 = smul.addr %s326, 4
        %s328 = scalar_lea.vmem %s0, %s327
        %p329 = pneg %p46
        %p330 = pneg %p43
        %p331 = pneg %p67
        %p332 = pneg %p64
        %p333 = pneg %p88
        %p334 = pneg %p85
        %p335 = pneg %p109
        %p336 = pneg %p106
        %p337 = pneg %p130
        %p338 = pneg %p127
        %p339 = pneg %p151
        %p340 = pneg %p148
        %p341 = pneg %p172
        %p342 = pneg %p169
        %p343 = pneg %p193
        %p344 = pneg %p190
        %p345 = pneg %p214
        %p346 = pneg %p211
        %p347 = pneg %p240
        %p348 = pneg %p237
        %s349 = sand.u32 %s227, 1
        %s350 = scalar_lea.sflag [#allocation4], %s349
        %s351 = sand.u32 %s227, 1
        %s352 = smul.addr %s351, 8
        %s353 = scalar_lea.vmem [#allocation3], %s352
        %p354 = pneg %p266
        %p355 = pneg %p263
        %p356 = scmp.lt.s32.totalorder %s25, 1
        %s357 = scalar_select %p356, %s25, 1
        %s358 = smul.addr %s357, 2
        %s359 = smul.addr %s358, 4
        %s360 = scalar_lea.vmem %s10, %s359
        %p361 = scmp.lt.s32.totalorder %s25, 1
        %s362 = scalar_select %p361, %s25, 1
        %s363 = smul.addr %s362, 2
        %s364 = smul.addr %s363, 4
        %s365 = scalar_lea.vmem %s0, %s364
        %p366 = scmp.lt.s32.totalorder %s25, 1
        %s367 = scalar_select %p366, %s25, 1
        %s368 = smul.addr %s367, 2
        %s369 = smul.addr %s368, 4
        %s370 = scalar_lea.vmem %s10, %s369
        %v372 = vld [vmem:[%s365] sm:$0xf]
        %v373 = vld [vmem:[%s365 + $0x4] sm:$0xf]
        %v374 = vunpack.c.l.bf16 %v372
        %v375 = vunpack.c.l.bf16 %v373
        %v376 = vld [vmem:[%s1] sm:$0xf]
        %v377 = vld [vmem:[%s1 + $0x4] sm:$0xf]
        %v378 = vld [vmem:[%s1 + $0x8] sm:$0xf]
        %v379 = vld [vmem:[%s1 + $0xc] sm:$0xf]
        %v380 = vld [vmem:[%s1 + $0x10] sm:$0xf]
        %v381 = vld [vmem:[%s1 + $0x14] sm:$0xf]
        %v382 = vld [vmem:[%s1 + $0x18] sm:$0xf]
        %v383 = vld [vmem:[%s1 + $0x1c] sm:$0xf]
        %v384 = vld [vmem:[%s1 + $0x20] sm:$0xf]
        %v385 = vld [vmem:[%s1 + $0x24] sm:$0xf]
        %v386 = vld [vmem:[%s1 + $0x28] sm:$0xf]
        %v387 = vld [vmem:[%s1 + $0x2c] sm:$0xf]
        %v388 = vld [vmem:[%s1 + $0x30] sm:$0xf]
        %v389 = vld [vmem:[%s1 + $0x34] sm:$0xf]
        %v390 = vld [vmem:[%s1 + $0x38] sm:$0xf]
        %v391 = vld [vmem:[%s1 + $0x3c] sm:$0xf]
        %v392 = vld [vmem:[%s2] sm:$0x1]
        %v394 = vlaneseq
        %v395 = vshrl.u32 %v394, 7
        %v396 = vsub.s32 0, %v395
        %v397 = vrot.slane %v392, %v396
        %v401 = vunpack.c.l.b16 %v372
        %v402 = vunpack.c.l.b16 %v373
        %v403 = vpack.c.b16 %v402, %v401
        %v421 = vunpack.c.l.b16 %v376
        %v422 = vunpack.c.l.b16 %v377
        %v423 = vunpack.c.l.b16 %v378
        %v424 = vunpack.c.l.b16 %v379
        %v425 = vunpack.c.l.b16 %v380
        %v426 = vunpack.c.l.b16 %v381
        %v427 = vunpack.c.l.b16 %v382
        %v428 = vunpack.c.l.b16 %v383
        %v429 = vunpack.c.l.b16 %v384
        %v430 = vunpack.c.l.b16 %v385
        %v431 = vunpack.c.l.b16 %v386
        %v432 = vunpack.c.l.b16 %v387
        %v433 = vunpack.c.l.b16 %v388
        %v434 = vunpack.c.l.b16 %v389
        %v435 = vunpack.c.l.b16 %v390
        %v436 = vunpack.c.l.b16 %v391
        %v437 = vpack.c.b16 %v422, %v421
        %v438 = vpack.c.b16 %v424, %v423
        %v439 = vpack.c.b16 %v426, %v425
        %v440 = vpack.c.b16 %v428, %v427
        %v441 = vpack.c.b16 %v430, %v429
        %v442 = vpack.c.b16 %v432, %v431
        %v443 = vpack.c.b16 %v434, %v433
        %v444 = vpack.c.b16 %v436, %v435
        %453 = vmatprep.subr.bf16.mxu0 0
        %454 = vmatpush1.bf16.msra.mxu0 %v437
        %455 = vmatprep.subr.bf16.mxu0 0
        %456 = vmatpush1.bf16.msra.mxu0 %v438
        %457 = vmatprep.subr.bf16.mxu0 0
        %458 = vmatpush1.bf16.msra.mxu0 %v439
        %459 = vmatprep.subr.bf16.mxu0 0
        %460 = vmatpush1.bf16.msra.mxu0 %v440
        %461 = vmatprep.subr.bf16.mxu0 0
        %462 = vmatpush1.bf16.msra.mxu0 %v441
        %463 = vmatprep.subr.bf16.mxu0 0
        %464 = vmatpush1.bf16.msra.mxu0 %v442
        %465 = vmatprep.subr.bf16.mxu0 0
        %466 = vmatpush1.bf16.msra.mxu0 %v443
        %467 = vmatprep.subr.bf16.mxu0 0
        %468 = vmatpush1.bf16.msra.mxu0 %v444
        %469 = vmatprep.subr.bf16.mxu0 0
        %470 = vmatpush1.bf16.msra.mxu0 0
        %471 = vmatprep.subr.bf16.mxu0 0
        %472 = vmatpush1.bf16.msra.mxu0 0
        %473 = vmatprep.subr.bf16.mxu0 0
        %474 = vmatpush1.bf16.msra.mxu0 0
        %475 = vmatprep.subr.bf16.mxu0 0
        %476 = vmatpush1.bf16.msra.mxu0 0
        %477 = vmatprep.subr.bf16.mxu0 0
        %478 = vmatpush1.bf16.msra.mxu0 0
        %479 = vmatprep.subr.bf16.mxu0 0
        %480 = vmatpush1.bf16.msra.mxu0 0
        %481 = vmatprep.subr.bf16.mxu0 0
        %482 = vmatpush1.bf16.msra.mxu0 0
        %483 = vmatprep.subr.bf16.mxu0 0
        %484 = vmatpush1.bf16.msra.mxu0 0
        %485 = vmatprep.mubr.bf16.mxu0 0
        %486 = vmatmul.mubr.bf16.gmra.mrb[0].mxu0 %v403
        %v487 = vpop.f32.mrb[0].mxu0
        %v488 = vadd.f32 %v397, %v487
        %v489 = vpop.f32.mrb[0].mxu0
        %v490 = vpop.f32.mrb[0].mxu0
        %v491 = vadd.f32 %v397, %v490
        %v492 = vpop.f32.mrb[0].mxu0
        %493 = vdwg.mxu0
        %v494 = vmax.f32 %v488, 0.0
        %v495 = vmax.f32 %v491, 0.0
        %496 = vst [vmem:[#allocation2] sm:$0xff] 0.0
        %497 = vst [vmem:[#allocation2 + $0x18] sm:$0xff] 0.0
        %498 = vst [vmem:[#allocation2 + $0x8] sm:$0xff] %v494
        %499 = vst [vmem:[#allocation2 + $0x10] sm:$0xff] %v495
        %v500 = vlaneseq
        %v501 = vshrl.u32 %v500, 7
        %v502 = vadd.s32 %v501, 8
        %vm503 = vcmp.lt.s32.totalorder %v501, 0
        %v504 = vsub.s32 0, %v501
        %v505 = vsel %vm503, %v504, %v501
        %v506 = vshrl.u32 %v505, 2
        %v507 = vand.u32 %v505, 3
        %v508 = vsub.s32 0, %v507
        %v509 = vsel %vm503, %v508, %v507
        %vm510 = vcmp.lt.s32.totalorder %v502, 0
        %v511 = vsub.s32 0, %v502
        %v512 = vsel %vm510, %v511, %v502
        %v513 = vshrl.u32 %v512, 2
        %v514 = vand.u32 %v512, 3
        %v515 = vsub.s32 0, %v514
        %v516 = vsel %vm510, %v515, %v514
        %vm517 = vcmp.ne.s32.totalorder %v509, 0
        %vm518 = vcmp.ne.s32.totalorder %v516, 0
        %vm519 = vcmp.lt.s32.totalorder %v509, 0
        %vm520 = vcmp.lt.s32.totalorder %v516, 0
        %vm521 = vmand %vm519, %vm517
        %vm522 = vmand %vm520, %vm518
        %v523 = vadd.s32 %v509, 4
        %v524 = vadd.s32 %v516, 4
        %v525 = vsel %vm521, %v523, %v509
        %v526 = vsel %vm522, %v524, %v516
        %vm527 = vcmp.ge.s32.totalorder %v525, 1
        %vm528 = vcmp.ge.s32.totalorder %v526, 1
        %vm529 = vcmp.le.s32.totalorder %v525, 2
        %vm530 = vcmp.le.s32.totalorder %v526, 2
        %v531 = vld [vmem:[#allocation2 + $0x3] sm:$0xff]
        %v532 = vld [vmem:[#allocation2 + $0xb] sm:$0xff]
        %v533 = vsel %vm527, %v531, 0.0
        %v534 = vsel %vm528, %v532, 0.0
        %v535 = vpack.c.bf16 %v534, %v533
        %v536 = vld [vmem:[%s3] sm:$0xf]
        %v537 = vld [vmem:[%s3 + $0x4] sm:$0xf]
        %v538 = vld [vmem:[%s3 + $0x8] sm:$0xf]
        %v539 = vld [vmem:[%s3 + $0xc] sm:$0xf]
        %v540 = vld [vmem:[%s3 + $0x10] sm:$0xf]
        %v541 = vld [vmem:[%s3 + $0x14] sm:$0xf]
        %v542 = vld [vmem:[%s3 + $0x18] sm:$0xf]
        %v543 = vld [vmem:[%s3 + $0x1c] sm:$0xf]
        %v544 = vld [vmem:[%s3 + $0x20] sm:$0xf]
        %v545 = vld [vmem:[%s3 + $0x24] sm:$0xf]
        %v546 = vld [vmem:[%s3 + $0x28] sm:$0xf]
        %v547 = vld [vmem:[%s3 + $0x2c] sm:$0xf]
        %v548 = vld [vmem:[%s3 + $0x30] sm:$0xf]
        %v549 = vld [vmem:[%s3 + $0x34] sm:$0xf]
        %v550 = vld [vmem:[%s3 + $0x38] sm:$0xf]
        %v551 = vld [vmem:[%s3 + $0x3c] sm:$0xf]
        %v552 = vld [vmem:[#allocation2 + $0x4] sm:$0xff]
        %v553 = vld [vmem:[#allocation2 + $0xc] sm:$0xff]
        %v554 = vpack.c.bf16 %v553, %v552
        %s555 = scalar_lea.vmem %s3, 64
        %v556 = vld [vmem:[%s555] sm:$0xf]
        %v557 = vld [vmem:[%s555 + $0x4] sm:$0xf]
        %v558 = vld [vmem:[%s555 + $0x8] sm:$0xf]
        %v559 = vld [vmem:[%s555 + $0xc] sm:$0xf]
        %v560 = vld [vmem:[%s555 + $0x10] sm:$0xf]
        %v561 = vld [vmem:[%s555 + $0x14] sm:$0xf]
        %v562 = vld [vmem:[%s555 + $0x18] sm:$0xf]
        %v563 = vld [vmem:[%s555 + $0x1c] sm:$0xf]
        %v564 = vld [vmem:[%s555 + $0x20] sm:$0xf]
        %v565 = vld [vmem:[%s555 + $0x24] sm:$0xf]
        %v566 = vld [vmem:[%s555 + $0x28] sm:$0xf]
        %v567 = vld [vmem:[%s555 + $0x2c] sm:$0xf]
        %v568 = vld [vmem:[%s555 + $0x30] sm:$0xf]
        %v569 = vld [vmem:[%s555 + $0x34] sm:$0xf]
        %v570 = vld [vmem:[%s555 + $0x38] sm:$0xf]
        %v571 = vld [vmem:[%s555 + $0x3c] sm:$0xf]
        %v588 = vunpack.c.l.b16 %v556
        %v589 = vunpack.c.l.b16 %v557
        %v590 = vunpack.c.l.b16 %v558
        %v591 = vunpack.c.l.b16 %v559
        %v592 = vunpack.c.l.b16 %v560
        %v593 = vunpack.c.l.b16 %v561
        %v594 = vunpack.c.l.b16 %v562
        %v595 = vunpack.c.l.b16 %v563
        %v596 = vunpack.c.l.b16 %v564
        %v597 = vunpack.c.l.b16 %v565
        %v598 = vunpack.c.l.b16 %v566
        %v599 = vunpack.c.l.b16 %v567
        %v600 = vunpack.c.l.b16 %v568
        %v601 = vunpack.c.l.b16 %v569
        %v602 = vunpack.c.l.b16 %v570
        %v603 = vunpack.c.l.b16 %v571
        %v604 = vpack.c.b16 %v589, %v588
        %v605 = vpack.c.b16 %v591, %v590
        %v606 = vpack.c.b16 %v593, %v592
        %v607 = vpack.c.b16 %v595, %v594
        %v608 = vpack.c.b16 %v597, %v596
        %v609 = vpack.c.b16 %v599, %v598
        %v610 = vpack.c.b16 %v601, %v600
        %v611 = vpack.c.b16 %v603, %v602
        %620 = vmatprep.subr.bf16.mxu0 0
        %621 = vmatpush1.bf16.msra.mxu0 %v604
        %622 = vmatprep.subr.bf16.mxu0 0
        %623 = vmatpush1.bf16.msra.mxu0 %v605
        %624 = vmatprep.subr.bf16.mxu0 0
        %625 = vmatpush1.bf16.msra.mxu0 %v606
        %626 = vmatprep.subr.bf16.mxu0 0
        %627 = vmatpush1.bf16.msra.mxu0 %v607
        %628 = vmatprep.subr.bf16.mxu0 0
        %629 = vmatpush1.bf16.msra.mxu0 %v608
        %630 = vmatprep.subr.bf16.mxu0 0
        %631 = vmatpush1.bf16.msra.mxu0 %v609
        %632 = vmatprep.subr.bf16.mxu0 0
        %633 = vmatpush1.bf16.msra.mxu0 %v610
        %634 = vmatprep.subr.bf16.mxu0 0
        %635 = vmatpush1.bf16.msra.mxu0 %v611
        %636 = vmatprep.subr.bf16.mxu0 0
        %637 = vmatpush1.bf16.msra.mxu0 0
        %638 = vmatprep.subr.bf16.mxu0 0
        %639 = vmatpush1.bf16.msra.mxu0 0
        %640 = vmatprep.subr.bf16.mxu0 0
        %641 = vmatpush1.bf16.msra.mxu0 0
        %642 = vmatprep.subr.bf16.mxu0 0
        %643 = vmatpush1.bf16.msra.mxu0 0
        %644 = vmatprep.subr.bf16.mxu0 0
        %645 = vmatpush1.bf16.msra.mxu0 0
        %646 = vmatprep.subr.bf16.mxu0 0
        %647 = vmatpush1.bf16.msra.mxu0 0
        %648 = vmatprep.subr.bf16.mxu0 0
        %649 = vmatpush1.bf16.msra.mxu0 0
        %650 = vmatprep.subr.bf16.mxu0 0
        %651 = vmatpush1.bf16.msra.mxu0 0
        %652 = vmatprep.mubr.bf16.mxu0 0
        %653 = vmatmul.mubr.bf16.gmra.mrb[0].mxu0 %v554
        %v654 = vpop.f32.mrb[0].mxu0
        %v655 = vadd.f32 0.0, %v654
        %v656 = vpop.f32.mrb[0].mxu0
        %v657 = vpop.f32.mrb[0].mxu0
        %v658 = vadd.f32 0.0, %v657
        %v659 = vpop.f32.mrb[0].mxu0
        %660 = vdwg.mxu0
        %v677 = vunpack.c.l.b16 %v536
        %v678 = vunpack.c.l.b16 %v537
        %v679 = vunpack.c.l.b16 %v538
        %v680 = vunpack.c.l.b16 %v539
        %v681 = vunpack.c.l.b16 %v540
        %v682 = vunpack.c.l.b16 %v541
        %v683 = vunpack.c.l.b16 %v542
        %v684 = vunpack.c.l.b16 %v543
        %v685 = vunpack.c.l.b16 %v544
        %v686 = vunpack.c.l.b16 %v545
        %v687 = vunpack.c.l.b16 %v546
        %v688 = vunpack.c.l.b16 %v547
        %v689 = vunpack.c.l.b16 %v548
        %v690 = vunpack.c.l.b16 %v549
        %v691 = vunpack.c.l.b16 %v550
        %v692 = vunpack.c.l.b16 %v551
        %v693 = vpack.c.b16 %v678, %v677
        %v694 = vpack.c.b16 %v680, %v679
        %v695 = vpack.c.b16 %v682, %v681
        %v696 = vpack.c.b16 %v684, %v683
        %v697 = vpack.c.b16 %v686, %v685
        %v698 = vpack.c.b16 %v688, %v687
        %v699 = vpack.c.b16 %v690, %v689
        %v700 = vpack.c.b16 %v692, %v691
        %709 = vmatprep.subr.bf16.mxu0 0
        %710 = vmatpush1.bf16.msra.mxu0 %v693
        %711 = vmatprep.subr.bf16.mxu0 0
        %712 = vmatpush1.bf16.msra.mxu0 %v694
        %713 = vmatprep.subr.bf16.mxu0 0
        %714 = vmatpush1.bf16.msra.mxu0 %v695
        %715 = vmatprep.subr.bf16.mxu0 0
        %716 = vmatpush1.bf16.msra.mxu0 %v696
        %717 = vmatprep.subr.bf16.mxu0 0
        %718 = vmatpush1.bf16.msra.mxu0 %v697
        %719 = vmatprep.subr.bf16.mxu0 0
        %720 = vmatpush1.bf16.msra.mxu0 %v698
        %721 = vmatprep.subr.bf16.mxu0 0
        %722 = vmatpush1.bf16.msra.mxu0 %v699
        %723 = vmatprep.subr.bf16.mxu0 0
        %724 = vmatpush1.bf16.msra.mxu0 %v700
        %725 = vmatprep.subr.bf16.mxu0 0
        %726 = vmatpush1.bf16.msra.mxu0 0
        %727 = vmatprep.subr.bf16.mxu0 0
        %728 = vmatpush1.bf16.msra.mxu0 0
        %729 = vmatprep.subr.bf16.mxu0 0
        %730 = vmatpush1.bf16.msra.mxu0 0
        %731 = vmatprep.subr.bf16.mxu0 0
        %732 = vmatpush1.bf16.msra.mxu0 0
        %733 = vmatprep.subr.bf16.mxu0 0
        %734 = vmatpush1.bf16.msra.mxu0 0
        %735 = vmatprep.subr.bf16.mxu0 0
        %736 = vmatpush1.bf16.msra.mxu0 0
        %737 = vmatprep.subr.bf16.mxu0 0
        %738 = vmatpush1.bf16.msra.mxu0 0
        %739 = vmatprep.subr.bf16.mxu0 0
        %740 = vmatpush1.bf16.msra.mxu0 0
        %741 = vmatprep.mubr.bf16.mxu0 0
        %742 = vmatmul.mubr.bf16.gmra.mrb[0].mxu0 %v535
        %v743 = vpop.f32.mrb[0].mxu0
        %v744 = vadd.f32 %v655, %v743
        %v745 = vpop.f32.mrb[0].mxu0
        %v746 = vpop.f32.mrb[0].mxu0
        %v747 = vadd.f32 %v658, %v746
        %v748 = vpop.f32.mrb[0].mxu0
        %749 = vdwg.mxu0
        %v750 = vld [vmem:[#allocation2 + $0x5] sm:$0xff]
        %v751 = vld [vmem:[#allocation2 + $0xd] sm:$0xff]
        %v752 = vsel %vm529, %v750, 0.0
        %v753 = vsel %vm530, %v751, 0.0
        %v754 = vpack.c.bf16 %v753, %v752
        %s755 = scalar_lea.vmem %s3, 128
        %v756 = vld [vmem:[%s755] sm:$0xf]
        %v757 = vld [vmem:[%s755 + $0x4] sm:$0xf]
        %v758 = vld [vmem:[%s755 + $0x8] sm:$0xf]
        %v759 = vld [vmem:[%s755 + $0xc] sm:$0xf]
        %v760 = vld [vmem:[%s755 + $0x10] sm:$0xf]
        %v761 = vld [vmem:[%s755 + $0x14] sm:$0xf]
        %v762 = vld [vmem:[%s755 + $0x18] sm:$0xf]
        %v763 = vld [vmem:[%s755 + $0x1c] sm:$0xf]
        %v764 = vld [vmem:[%s755 + $0x20] sm:$0xf]
        %v765 = vld [vmem:[%s755 + $0x24] sm:$0xf]
        %v766 = vld [vmem:[%s755 + $0x28] sm:$0xf]
        %v767 = vld [vmem:[%s755 + $0x2c] sm:$0xf]
        %v768 = vld [vmem:[%s755 + $0x30] sm:$0xf]
        %v769 = vld [vmem:[%s755 + $0x34] sm:$0xf]
        %v770 = vld [vmem:[%s755 + $0x38] sm:$0xf]
        %v771 = vld [vmem:[%s755 + $0x3c] sm:$0xf]
        %v788 = vunpack.c.l.b16 %v756
        %v789 = vunpack.c.l.b16 %v757
        %v790 = vunpack.c.l.b16 %v758
        %v791 = vunpack.c.l.b16 %v759
        %v792 = vunpack.c.l.b16 %v760
        %v793 = vunpack.c.l.b16 %v761
        %v794 = vunpack.c.l.b16 %v762
        %v795 = vunpack.c.l.b16 %v763
        %v796 = vunpack.c.l.b16 %v764
        %v797 = vunpack.c.l.b16 %v765
        %v798 = vunpack.c.l.b16 %v766
        %v799 = vunpack.c.l.b16 %v767
        %v800 = vunpack.c.l.b16 %v768
        %v801 = vunpack.c.l.b16 %v769
        %v802 = vunpack.c.l.b16 %v770
        %v803 = vunpack.c.l.b16 %v771
        %v804 = vpack.c.b16 %v789, %v788
        %v805 = vpack.c.b16 %v791, %v790
        %v806 = vpack.c.b16 %v793, %v792
        %v807 = vpack.c.b16 %v795, %v794
        %v808 = vpack.c.b16 %v797, %v796
        %v809 = vpack.c.b16 %v799, %v798
        %v810 = vpack.c.b16 %v801, %v800
        %v811 = vpack.c.b16 %v803, %v802
        %820 = vmatprep.subr.bf16.mxu0 0
        %821 = vmatpush1.bf16.msra.mxu0 %v804
        %822 = vmatprep.subr.bf16.mxu0 0
        %823 = vmatpush1.bf16.msra.mxu0 %v805
        %824 = vmatprep.subr.bf16.mxu0 0
        %825 = vmatpush1.bf16.msra.mxu0 %v806
        %826 = vmatprep.subr.bf16.mxu0 0
        %827 = vmatpush1.bf16.msra.mxu0 %v807
        %828 = vmatprep.subr.bf16.mxu0 0
        %829 = vmatpush1.bf16.msra.mxu0 %v808
        %830 = vmatprep.subr.bf16.mxu0 0
        %831 = vmatpush1.bf16.msra.mxu0 %v809
        %832 = vmatprep.subr.bf16.mxu0 0
        %833 = vmatpush1.bf16.msra.mxu0 %v810
        %834 = vmatprep.subr.bf16.mxu0 0
        %835 = vmatpush1.bf16.msra.mxu0 %v811
        %836 = vmatprep.subr.bf16.mxu0 0
        %837 = vmatpush1.bf16.msra.mxu0 0
        %838 = vmatprep.subr.bf16.mxu0 0
        %839 = vmatpush1.bf16.msra.mxu0 0
        %840 = vmatprep.subr.bf16.mxu0 0
        %841 = vmatpush1.bf16.msra.mxu0 0
        %842 = vmatprep.subr.bf16.mxu0 0
        %843 = vmatpush1.bf16.msra.mxu0 0
        %844 = vmatprep.subr.bf16.mxu0 0
        %845 = vmatpush1.bf16.msra.mxu0 0
        %846 = vmatprep.subr.bf16.mxu0 0
        %847 = vmatpush1.bf16.msra.mxu0 0
        %848 = vmatprep.subr.bf16.mxu0 0
        %849 = vmatpush1.bf16.msra.mxu0 0
        %850 = vmatprep.subr.bf16.mxu0 0
        %851 = vmatpush1.bf16.msra.mxu0 0
        %852 = vmatprep.mubr.bf16.mxu0 0
        %853 = vmatmul.mubr.bf16.gmra.mrb[0].mxu0 %v754
        %v854 = vpop.f32.mrb[0].mxu0
        %v855 = vadd.f32 0.0, %v854
        %v856 = vpop.f32.mrb[0].mxu0
        %v857 = vpop.f32.mrb[0].mxu0
        %v858 = vadd.f32 0.0, %v857
        %v859 = vpop.f32.mrb[0].mxu0
        %860 = vdwg.mxu0
        %v861 = vadd.f32 %v744, %v855
        %v862 = vadd.f32 %v747, %v858
        %v863 = vld [vmem:[#allocation2 + $0x7] sm:$0xff]
        %v864 = vld [vmem:[#allocation2 + $0xf] sm:$0xff]
        %v865 = vsel %vm527, %v863, 0.0
        %v866 = vsel %vm528, %v864, 0.0
        %v867 = vpack.c.bf16 %v866, %v865
        %s868 = scalar_lea.vmem %s3, 192
        %v869 = vld [vmem:[%s868] sm:$0xf]
        %v870 = vld [vmem:[%s868 + $0x4] sm:$0xf]
        %v871 = vld [vmem:[%s868 + $0x8] sm:$0xf]
        %v872 = vld [vmem:[%s868 + $0xc] sm:$0xf]
        %v873 = vld [vmem:[%s868 + $0x10] sm:$0xf]
        %v874 = vld [vmem:[%s868 + $0x14] sm:$0xf]
        %v875 = vld [vmem:[%s868 + $0x18] sm:$0xf]
        %v876 = vld [vmem:[%s868 + $0x1c] sm:$0xf]
        %v877 = vld [vmem:[%s868 + $0x20] sm:$0xf]
        %v878 = vld [vmem:[%s868 + $0x24] sm:$0xf]
        %v879 = vld [vmem:[%s868 + $0x28] sm:$0xf]
        %v880 = vld [vmem:[%s868 + $0x2c] sm:$0xf]
        %v881 = vld [vmem:[%s868 + $0x30] sm:$0xf]
        %v882 = vld [vmem:[%s868 + $0x34] sm:$0xf]
        %v883 = vld [vmem:[%s868 + $0x38] sm:$0xf]
        %v884 = vld [vmem:[%s868 + $0x3c] sm:$0xf]
        %v901 = vunpack.c.l.b16 %v869
        %v902 = vunpack.c.l.b16 %v870
        %v903 = vunpack.c.l.b16 %v871
        %v904 = vunpack.c.l.b16 %v872
        %v905 = vunpack.c.l.b16 %v873
        %v906 = vunpack.c.l.b16 %v874
        %v907 = vunpack.c.l.b16 %v875
        %v908 = vunpack.c.l.b16 %v876
        %v909 = vunpack.c.l.b16 %v877
        %v910 = vunpack.c.l.b16 %v878
        %v911 = vunpack.c.l.b16 %v879
        %v912 = vunpack.c.l.b16 %v880
        %v913 = vunpack.c.l.b16 %v881
        %v914 = vunpack.c.l.b16 %v882
        %v915 = vunpack.c.l.b16 %v883
        %v916 = vunpack.c.l.b16 %v884
        %v917 = vpack.c.b16 %v902, %v901
        %v918 = vpack.c.b16 %v904, %v903
        %v919 = vpack.c.b16 %v906, %v905
        %v920 = vpack.c.b16 %v908, %v907
        %v921 = vpack.c.b16 %v910, %v909
        %v922 = vpack.c.b16 %v912, %v911
        %v923 = vpack.c.b16 %v914, %v913
        %v924 = vpack.c.b16 %v916, %v915
        %933 = vmatprep.subr.bf16.mxu0 0
        %934 = vmatpush1.bf16.msra.mxu0 %v917
        %935 = vmatprep.subr.bf16.mxu0 0
        %936 = vmatpush1.bf16.msra.mxu0 %v918
        %937 = vmatprep.subr.bf16.mxu0 0
        %938 = vmatpush1.bf16.msra.mxu0 %v919
        %939 = vmatprep.subr.bf16.mxu0 0
        %940 = vmatpush1.bf16.msra.mxu0 %v920
        %941 = vmatprep.subr.bf16.mxu0 0
        %942 = vmatpush1.bf16.msra.mxu0 %v921
        %943 = vmatprep.subr.bf16.mxu0 0
        %944 = vmatpush1.bf16.msra.mxu0 %v922
        %945 = vmatprep.subr.bf16.mxu0 0
        %946 = vmatpush1.bf16.msra.mxu0 %v923
        %947 = vmatprep.subr.bf16.mxu0 0
        %948 = vmatpush1.bf16.msra.mxu0 %v924
        %949 = vmatprep.subr.bf16.mxu0 0
        %950 = vmatpush1.bf16.msra.mxu0 0
        %951 = vmatprep.subr.bf16.mxu0 0
        %952 = vmatpush1.bf16.msra.mxu0 0
        %953 = vmatprep.subr.bf16.mxu0 0
        %954 = vmatpush1.bf16.msra.mxu0 0
        %955 = vmatprep.subr.bf16.mxu0 0
        %956 = vmatpush1.bf16.msra.mxu0 0
        %957 = vmatprep.subr.bf16.mxu0 0
        %958 = vmatpush1.bf16.msra.mxu0 0
        %959 = vmatprep.subr.bf16.mxu0 0
        %960 = vmatpush1.bf16.msra.mxu0 0
        %961 = vmatprep.subr.bf16.mxu0 0
        %962 = vmatpush1.bf16.msra.mxu0 0
        %963 = vmatprep.subr.bf16.mxu0 0
        %964 = vmatpush1.bf16.msra.mxu0 0
        %965 = vmatprep.mubr.bf16.mxu0 0
        %966 = vmatmul.mubr.bf16.gmra.mrb[0].mxu0 %v867
        %v967 = vpop.f32.mrb[0].mxu0
        %v968 = vadd.f32 0.0, %v967
        %v969 = vpop.f32.mrb[0].mxu0
        %v970 = vpop.f32.mrb[0].mxu0
        %v971 = vadd.f32 0.0, %v970
        %v972 = vpop.f32.mrb[0].mxu0
        %973 = vdwg.mxu0
        %v974 = vadd.f32 %v861, %v968
        %v975 = vadd.f32 %v862, %v971
        %v976 = vld [vmem:[#allocation2 + $0x8] sm:$0xff]
        %v977 = vld [vmem:[#allocation2 + $0x10] sm:$0xff]
        %v978 = vpack.c.bf16 %v977, %v976
        %s979 = scalar_lea.vmem %s3, 256
        %v980 = vld [vmem:[%s979] sm:$0xf]
        %v981 = vld [vmem:[%s979 + $0x4] sm:$0xf]
        %v982 = vld [vmem:[%s979 + $0x8] sm:$0xf]
        %v983 = vld [vmem:[%s979 + $0xc] sm:$0xf]
        %v984 = vld [vmem:[%s979 + $0x10] sm:$0xf]
        %v985 = vld [vmem:[%s979 + $0x14] sm:$0xf]
        %v986 = vld [vmem:[%s979 + $0x18] sm:$0xf]
        %v987 = vld [vmem:[%s979 + $0x1c] sm:$0xf]
        %v988 = vld [vmem:[%s979 + $0x20] sm:$0xf]
        %v989 = vld [vmem:[%s979 + $0x24] sm:$0xf]
        %v990 = vld [vmem:[%s979 + $0x28] sm:$0xf]
        %v991 = vld [vmem:[%s979 + $0x2c] sm:$0xf]
        %v992 = vld [vmem:[%s979 + $0x30] sm:$0xf]
        %v993 = vld [vmem:[%s979 + $0x34] sm:$0xf]
        %v994 = vld [vmem:[%s979 + $0x38] sm:$0xf]
        %v995 = vld [vmem:[%s979 + $0x3c] sm:$0xf]
        %v1012 = vunpack.c.l.b16 %v980
        %v1013 = vunpack.c.l.b16 %v981
        %v1014 = vunpack.c.l.b16 %v982
        %v1015 = vunpack.c.l.b16 %v983
        %v1016 = vunpack.c.l.b16 %v984
        %v1017 = vunpack.c.l.b16 %v985
        %v1018 = vunpack.c.l.b16 %v986
        %v1019 = vunpack.c.l.b16 %v987
        %v1020 = vunpack.c.l.b16 %v988
        %v1021 = vunpack.c.l.b16 %v989
        %v1022 = vunpack.c.l.b16 %v990
        %v1023 = vunpack.c.l.b16 %v991
        %v1024 = vunpack.c.l.b16 %v992
        %v1025 = vunpack.c.l.b16 %v993
        %v1026 = vunpack.c.l.b16 %v994
        %v1027 = vunpack.c.l.b16 %v995
        %v1028 = vpack.c.b16 %v1013, %v1012
        %v1029 = vpack.c.b16 %v1015, %v1014
        %v1030 = vpack.c.b16 %v1017, %v1016
        %v1031 = vpack.c.b16 %v1019, %v1018
        %v1032 = vpack.c.b16 %v1021, %v1020
        %v1033 = vpack.c.b16 %v1023, %v1022
        %v1034 = vpack.c.b16 %v1025, %v1024
        %v1035 = vpack.c.b16 %v1027, %v1026
        %1044 = vmatprep.subr.bf16.mxu0 0
        %1045 = vmatpush1.bf16.msra.mxu0 %v1028
        %1046 = vmatprep.subr.bf16.mxu0 0
        %1047 = vmatpush1.bf16.msra.mxu0 %v1029
        %1048 = vmatprep.subr.bf16.mxu0 0
        %1049 = vmatpush1.bf16.msra.mxu0 %v1030
        %1050 = vmatprep.subr.bf16.mxu0 0
        %1051 = vmatpush1.bf16.msra.mxu0 %v1031
        %1052 = vmatprep.subr.bf16.mxu0 0
        %1053 = vmatpush1.bf16.msra.mxu0 %v1032
        %1054 = vmatprep.subr.bf16.mxu0 0
        %1055 = vmatpush1.bf16.msra.mxu0 %v1033
        %1056 = vmatprep.subr.bf16.mxu0 0
        %1057 = vmatpush1.bf16.msra.mxu0 %v1034
        %1058 = vmatprep.subr.bf16.mxu0 0
        %1059 = vmatpush1.bf16.msra.mxu0 %v1035
        %1060 = vmatprep.subr.bf16.mxu0 0
        %1061 = vmatpush1.bf16.msra.mxu0 0
        %1062 = vmatprep.subr.bf16.mxu0 0
        %1063 = vmatpush1.bf16.msra.mxu0 0
        %1064 = vmatprep.subr.bf16.mxu0 0
        %1065 = vmatpush1.bf16.msra.mxu0 0
        %1066 = vmatprep.subr.bf16.mxu0 0
        %1067 = vmatpush1.bf16.msra.mxu0 0
        %1068 = vmatprep.subr.bf16.mxu0 0
        %1069 = vmatpush1.bf16.msra.mxu0 0
        %1070 = vmatprep.subr.bf16.mxu0 0
        %1071 = vmatpush1.bf16.msra.mxu0 0
        %1072 = vmatprep.subr.bf16.mxu0 0
        %1073 = vmatpush1.bf16.msra.mxu0 0
        %1074 = vmatprep.subr.bf16.mxu0 0
        %1075 = vmatpush1.bf16.msra.mxu0 0
        %1076 = vmatprep.mubr.bf16.mxu0 0
        %1077 = vmatmul.mubr.bf16.gmra.mrb[0].mxu0 %v978
        %v1078 = vpop.f32.mrb[0].mxu0
        %v1079 = vadd.f32 0.0, %v1078
        %v1080 = vpop.f32.mrb[0].mxu0
        %v1081 = vpop.f32.mrb[0].mxu0
        %v1082 = vadd.f32 0.0, %v1081
        %v1083 = vpop.f32.mrb[0].mxu0
        %1084 = vdwg.mxu0
        %v1085 = vadd.f32 %v974, %v1079
        %v1086 = vadd.f32 %v975, %v1082
        %v1087 = vld [vmem:[#allocation2 + $0x9] sm:$0xff]
        %v1088 = vld [vmem:[#allocation2 + $0x11] sm:$0xff]
        %v1089 = vsel %vm529, %v1087, 0.0
        %v1090 = vsel %vm530, %v1088, 0.0
        %v1091 = vpack.c.bf16 %v1090, %v1089
        %s1092 = scalar_lea.vmem %s3, 320
        %v1093 = vld [vmem:[%s1092] sm:$0xf]
        %v1094 = vld [vmem:[%s1092 + $0x4] sm:$0xf]
        %v1095 = vld [vmem:[%s1092 + $0x8] sm:$0xf]
        %v1096 = vld [vmem:[%s1092 + $0xc] sm:$0xf]
        %v1097 = vld [vmem:[%s1092 + $0x10] sm:$0xf]
        %v1098 = vld [vmem:[%s1092 + $0x14] sm:$0xf]
        %v1099 = vld [vmem:[%s1092 + $0x18] sm:$0xf]
        %v1100 = vld [vmem:[%s1092 + $0x1c] sm:$0xf]
        %v1101 = vld [vmem:[%s1092 + $0x20] sm:$0xf]
        %v1102 = vld [vmem:[%s1092 + $0x24] sm:$0xf]
        %v1103 = vld [vmem:[%s1092 + $0x28] sm:$0xf]
        %v1104 = vld [vmem:[%s1092 + $0x2c] sm:$0xf]
        %v1105 = vld [vmem:[%s1092 + $0x30] sm:$0xf]
        %v1106 = vld [vmem:[%s1092 + $0x34] sm:$0xf]
        %v1107 = vld [vmem:[%s1092 + $0x38] sm:$0xf]
        %v1108 = vld [vmem:[%s1092 + $0x3c] sm:$0xf]
        %v1125 = vunpack.c.l.b16 %v1093
        %v1126 = vunpack.c.l.b16 %v1094
        %v1127 = vunpack.c.l.b16 %v1095
        %v1128 = vunpack.c.l.b16 %v1096
        %v1129 = vunpack.c.l.b16 %v1097
        %v1130 = vunpack.c.l.b16 %v1098
        %v1131 = vunpack.c.l.b16 %v1099
        %v1132 = vunpack.c.l.b16 %v1100
        %v1133 = vunpack.c.l.b16 %v1101
        %v1134 = vunpack.c.l.b16 %v1102
        %v1135 = vunpack.c.l.b16 %v1103
        %v1136 = vunpack.c.l.b16 %v1104
        %v1137 = vunpack.c.l.b16 %v1105
        %v1138 = vunpack.c.l.b16 %v1106
        %v1139 = vunpack.c.l.b16 %v1107
        %v1140 = vunpack.c.l.b16 %v1108
        %v1141 = vpack.c.b16 %v1126, %v1125
        %v1142 = vpack.c.b16 %v1128, %v1127
        %v1143 = vpack.c.b16 %v1130, %v1129
        %v1144 = vpack.c.b16 %v1132, %v1131
        %v1145 = vpack.c.b16 %v1134, %v1133
        %v1146 = vpack.c.b16 %v1136, %v1135
        %v1147 = vpack.c.b16 %v1138, %v1137
        %v1148 = vpack.c.b16 %v1140, %v1139
        %1157 = vmatprep.subr.bf16.mxu0 0
        %1158 = vmatpush1.bf16.msra.mxu0 %v1141
        %1159 = vmatprep.subr.bf16.mxu0 0
        %1160 = vmatpush1.bf16.msra.mxu0 %v1142
        %1161 = vmatprep.subr.bf16.mxu0 0
        %1162 = vmatpush1.bf16.msra.mxu0 %v1143
        %1163 = vmatprep.subr.bf16.mxu0 0
        %1164 = vmatpush1.bf16.msra.mxu0 %v1144
        %1165 = vmatprep.subr.bf16.mxu0 0
        %1166 = vmatpush1.bf16.msra.mxu0 %v1145
        %1167 = vmatprep.subr.bf16.mxu0 0
        %1168 = vmatpush1.bf16.msra.mxu0 %v1146
        %1169 = vmatprep.subr.bf16.mxu0 0
        %1170 = vmatpush1.bf16.msra.mxu0 %v1147
        %1171 = vmatprep.subr.bf16.mxu0 0
        %1172 = vmatpush1.bf16.msra.mxu0 %v1148
        %1173 = vmatprep.subr.bf16.mxu0 0
        %1174 = vmatpush1.bf16.msra.mxu0 0
        %1175 = vmatprep.subr.bf16.mxu0 0
        %1176 = vmatpush1.bf16.msra.mxu0 0
        %1177 = vmatprep.subr.bf16.mxu0 0
        %1178 = vmatpush1.bf16.msra.mxu0 0
        %1179 = vmatprep.subr.bf16.mxu0 0
        %1180 = vmatpush1.bf16.msra.mxu0 0
        %1181 = vmatprep.subr.bf16.mxu0 0
        %1182 = vmatpush1.bf16.msra.mxu0 0
        %1183 = vmatprep.subr.bf16.mxu0 0
        %1184 = vmatpush1.bf16.msra.mxu0 0
        %1185 = vmatprep.subr.bf16.mxu0 0
        %1186 = vmatpush1.bf16.msra.mxu0 0
        %1187 = vmatprep.subr.bf16.mxu0 0
        %1188 = vmatpush1.bf16.msra.mxu0 0
        %1189 = vmatprep.mubr.bf16.mxu0 0
        %1190 = vmatmul.mubr.bf16.gmra.mrb[0].mxu0 %v1091
        %v1191 = vpop.f32.mrb[0].mxu0
        %v1192 = vadd.f32 0.0, %v1191
        %v1193 = vpop.f32.mrb[0].mxu0
        %v1194 = vpop.f32.mrb[0].mxu0
        %v1195 = vadd.f32 0.0, %v1194
        %v1196 = vpop.f32.mrb[0].mxu0
        %1197 = vdwg.mxu0
        %v1198 = vadd.f32 %v1085, %v1192
        %v1199 = vadd.f32 %v1086, %v1195
        %v1200 = vld [vmem:[#allocation2 + $0xb] sm:$0xff]
        %v1201 = vld [vmem:[#allocation2 + $0x13] sm:$0xff]
        %v1202 = vsel %vm527, %v1200, 0.0
        %v1203 = vsel %vm528, %v1201, 0.0
        %v1204 = vpack.c.bf16 %v1203, %v1202
        %s1205 = scalar_lea.vmem %s3, 384
        %v1206 = vld [vmem:[%s1205] sm:$0xf]
        %v1207 = vld [vmem:[%s1205 + $0x4] sm:$0xf]
        %v1208 = vld [vmem:[%s1205 + $0x8] sm:$0xf]
        %v1209 = vld [vmem:[%s1205 + $0xc] sm:$0xf]
        %v1210 = vld [vmem:[%s1205 + $0x10] sm:$0xf]
        %v1211 = vld [vmem:[%s1205 + $0x14] sm:$0xf]
        %v1212 = vld [vmem:[%s1205 + $0x18] sm:$0xf]
        %v1213 = vld [vmem:[%s1205 + $0x1c] sm:$0xf]
        %v1214 = vld [vmem:[%s1205 + $0x20] sm:$0xf]
        %v1215 = vld [vmem:[%s1205 + $0x24] sm:$0xf]
        %v1216 = vld [vmem:[%s1205 + $0x28] sm:$0xf]
        %v1217 = vld [vmem:[%s1205 + $0x2c] sm:$0xf]
        %v1218 = vld [vmem:[%s1205 + $0x30] sm:$0xf]
        %v1219 = vld [vmem:[%s1205 + $0x34] sm:$0xf]
        %v1220 = vld [vmem:[%s1205 + $0x38] sm:$0xf]
        %v1221 = vld [vmem:[%s1205 + $0x3c] sm:$0xf]
        %v1238 = vunpack.c.l.b16 %v1206
        %v1239 = vunpack.c.l.b16 %v1207
        %v1240 = vunpack.c.l.b16 %v1208
        %v1241 = vunpack.c.l.b16 %v1209
        %v1242 = vunpack.c.l.b16 %v1210
        %v1243 = vunpack.c.l.b16 %v1211
        %v1244 = vunpack.c.l.b16 %v1212
        %v1245 = vunpack.c.l.b16 %v1213
        %v1246 = vunpack.c.l.b16 %v1214
        %v1247 = vunpack.c.l.b16 %v1215
        %v1248 = vunpack.c.l.b16 %v1216
        %v1249 = vunpack.c.l.b16 %v1217
        %v1250 = vunpack.c.l.b16 %v1218
        %v1251 = vunpack.c.l.b16 %v1219
        %v1252 = vunpack.c.l.b16 %v1220
        %v1253 = vunpack.c.l.b16 %v1221
        %v1254 = vpack.c.b16 %v1239, %v1238
        %v1255 = vpack.c.b16 %v1241, %v1240
        %v1256 = vpack.c.b16 %v1243, %v1242
        %v1257 = vpack.c.b16 %v1245, %v1244
        %v1258 = vpack.c.b16 %v1247, %v1246
        %v1259 = vpack.c.b16 %v1249, %v1248
        %v1260 = vpack.c.b16 %v1251, %v1250
        %v1261 = vpack.c.b16 %v1253, %v1252
        %1270 = vmatprep.subr.bf16.mxu0 0
        %1271 = vmatpush1.bf16.msra.mxu0 %v1254
        %1272 = vmatprep.subr.bf16.mxu0 0
        %1273 = vmatpush1.bf16.msra.mxu0 %v1255
        %1274 = vmatprep.subr.bf16.mxu0 0
        %1275 = vmatpush1.bf16.msra.mxu0 %v1256
        %1276 = vmatprep.subr.bf16.mxu0 0
        %1277 = vmatpush1.bf16.msra.mxu0 %v1257
        %1278 = vmatprep.subr.bf16.mxu0 0
        %1279 = vmatpush1.bf16.msra.mxu0 %v1258
        %1280 = vmatprep.subr.bf16.mxu0 0
        %1281 = vmatpush1.bf16.msra.mxu0 %v1259
        %1282 = vmatprep.subr.bf16.mxu0 0
        %1283 = vmatpush1.bf16.msra.mxu0 %v1260
        %1284 = vmatprep.subr.bf16.mxu0 0
        %1285 = vmatpush1.bf16.msra.mxu0 %v1261
        %1286 = vmatprep.subr.bf16.mxu0 0
        %1287 = vmatpush1.bf16.msra.mxu0 0
        %1288 = vmatprep.subr.bf16.mxu0 0
        %1289 = vmatpush1.bf16.msra.mxu0 0
        %1290 = vmatprep.subr.bf16.mxu0 0
        %1291 = vmatpush1.bf16.msra.mxu0 0
        %1292 = vmatprep.subr.bf16.mxu0 0
        %1293 = vmatpush1.bf16.msra.mxu0 0
        %1294 = vmatprep.subr.bf16.mxu0 0
        %1295 = vmatpush1.bf16.msra.mxu0 0
        %1296 = vmatprep.subr.bf16.mxu0 0
        %1297 = vmatpush1.bf16.msra.mxu0 0
        %1298 = vmatprep.subr.bf16.mxu0 0
        %1299 = vmatpush1.bf16.msra.mxu0 0
        %1300 = vmatprep.subr.bf16.mxu0 0
        %1301 = vmatpush1.bf16.msra.mxu0 0
        %1302 = vmatprep.mubr.bf16.mxu0 0
        %1303 = vmatmul.mubr.bf16.gmra.mrb[0].mxu0 %v1204
        %v1304 = vpop.f32.mrb[0].mxu0
        %v1305 = vadd.f32 0.0, %v1304
        %v1306 = vpop.f32.mrb[0].mxu0
        %v1307 = vpop.f32.mrb[0].mxu0
        %v1308 = vadd.f32 0.0, %v1307
        %v1309 = vpop.f32.mrb[0].mxu0
        %1310 = vdwg.mxu0
        %v1311 = vadd.f32 %v1198, %v1305
        %v1312 = vadd.f32 %v1199, %v1308
        %v1313 = vld [vmem:[#allocation2 + $0xc] sm:$0xff]
        %v1314 = vld [vmem:[#allocation2 + $0x14] sm:$0xff]
        %v1315 = vpack.c.bf16 %v1314, %v1313
        %s1316 = scalar_lea.vmem %s3, 448
        %v1317 = vld [vmem:[%s1316] sm:$0xf]
        %v1318 = vld [vmem:[%s1316 + $0x4] sm:$0xf]
        %v1319 = vld [vmem:[%s1316 + $0x8] sm:$0xf]
        %v1320 = vld [vmem:[%s1316 + $0xc] sm:$0xf]
        %v1321 = vld [vmem:[%s1316 + $0x10] sm:$0xf]
        %v1322 = vld [vmem:[%s1316 + $0x14] sm:$0xf]
        %v1323 = vld [vmem:[%s1316 + $0x18] sm:$0xf]
        %v1324 = vld [vmem:[%s1316 + $0x1c] sm:$0xf]
        %v1325 = vld [vmem:[%s1316 + $0x20] sm:$0xf]
        %v1326 = vld [vmem:[%s1316 + $0x24] sm:$0xf]
        %v1327 = vld [vmem:[%s1316 + $0x28] sm:$0xf]
        %v1328 = vld [vmem:[%s1316 + $0x2c] sm:$0xf]
        %v1329 = vld [vmem:[%s1316 + $0x30] sm:$0xf]
        %v1330 = vld [vmem:[%s1316 + $0x34] sm:$0xf]
        %v1331 = vld [vmem:[%s1316 + $0x38] sm:$0xf]
        %v1332 = vld [vmem:[%s1316 + $0x3c] sm:$0xf]
        %v1349 = vunpack.c.l.b16 %v1317
        %v1350 = vunpack.c.l.b16 %v1318
        %v1351 = vunpack.c.l.b16 %v1319
        %v1352 = vunpack.c.l.b16 %v1320
        %v1353 = vunpack.c.l.b16 %v1321
        %v1354 = vunpack.c.l.b16 %v1322
        %v1355 = vunpack.c.l.b16 %v1323
        %v1356 = vunpack.c.l.b16 %v1324
        %v1357 = vunpack.c.l.b16 %v1325
        %v1358 = vunpack.c.l.b16 %v1326
        %v1359 = vunpack.c.l.b16 %v1327
        %v1360 = vunpack.c.l.b16 %v1328
        %v1361 = vunpack.c.l.b16 %v1329
        %v1362 = vunpack.c.l.b16 %v1330
        %v1363 = vunpack.c.l.b16 %v1331
        %v1364 = vunpack.c.l.b16 %v1332
        %v1365 = vpack.c.b16 %v1350, %v1349
        %v1366 = vpack.c.b16 %v1352, %v1351
        %v1367 = vpack.c.b16 %v1354, %v1353
        %v1368 = vpack.c.b16 %v1356, %v1355
        %v1369 = vpack.c.b16 %v1358, %v1357
        %v1370 = vpack.c.b16 %v1360, %v1359
        %v1371 = vpack.c.b16 %v1362, %v1361
        %v1372 = vpack.c.b16 %v1364, %v1363
        %1381 = vmatprep.subr.bf16.mxu0 0
        %1382 = vmatpush1.bf16.msra.mxu0 %v1365
        %1383 = vmatprep.subr.bf16.mxu0 0
        %1384 = vmatpush1.bf16.msra.mxu0 %v1366
        %1385 = vmatprep.subr.bf16.mxu0 0
        %1386 = vmatpush1.bf16.msra.mxu0 %v1367
        %1387 = vmatprep.subr.bf16.mxu0 0
        %1388 = vmatpush1.bf16.msra.mxu0 %v1368
        %1389 = vmatprep.subr.bf16.mxu0 0
        %1390 = vmatpush1.bf16.msra.mxu0 %v1369
        %1391 = vmatprep.subr.bf16.mxu0 0
        %1392 = vmatpush1.bf16.msra.mxu0 %v1370
        %1393 = vmatprep.subr.bf16.mxu0 0
        %1394 = vmatpush1.bf16.msra.mxu0 %v1371
        %1395 = vmatprep.subr.bf16.mxu0 0
        %1396 = vmatpush1.bf16.msra.mxu0 %v1372
        %1397 = vmatprep.subr.bf16.mxu0 0
        %1398 = vmatpush1.bf16.msra.mxu0 0
        %1399 = vmatprep.subr.bf16.mxu0 0
        %1400 = vmatpush1.bf16.msra.mxu0 0
        %1401 = vmatprep.subr.bf16.mxu0 0
        %1402 = vmatpush1.bf16.msra.mxu0 0
        %1403 = vmatprep.subr.bf16.mxu0 0
        %1404 = vmatpush1.bf16.msra.mxu0 0
        %1405 = vmatprep.subr.bf16.mxu0 0
        %1406 = vmatpush1.bf16.msra.mxu0 0
        %1407 = vmatprep.subr.bf16.mxu0 0
        %1408 = vmatpush1.bf16.msra.mxu0 0
        %1409 = vmatprep.subr.bf16.mxu0 0
        %1410 = vmatpush1.bf16.msra.mxu0 0
        %1411 = vmatprep.subr.bf16.mxu0 0
        %1412 = vmatpush1.bf16.msra.mxu0 0
        %1413 = vmatprep.mubr.bf16.mxu0 0
        %1414 = vmatmul.mubr.bf16.gmra.mrb[0].mxu0 %v1315
        %v1415 = vpop.f32.mrb[0].mxu0
        %v1416 = vadd.f32 0.0, %v1415
        %v1417 = vpop.f32.mrb[0].mxu0
        %v1418 = vpop.f32.mrb[0].mxu0
        %v1419 = vadd.f32 0.0, %v1418
        %v1420 = vpop.f32.mrb[0].mxu0
        %1421 = vdwg.mxu0
        %v1422 = vadd.f32 %v1311, %v1416
        %v1423 = vadd.f32 %v1312, %v1419
        %v1424 = vld [vmem:[#allocation2 + $0xd] sm:$0xff]
        %v1425 = vld [vmem:[#allocation2 + $0x15] sm:$0xff]
        %v1426 = vsel %vm529, %v1424, 0.0
        %v1427 = vsel %vm530, %v1425, 0.0
        %v1428 = vpack.c.bf16 %v1427, %v1426
        %s1429 = scalar_lea.vmem %s3, 512
        %v1430 = vld [vmem:[%s1429] sm:$0xf]
        %v1431 = vld [vmem:[%s1429 + $0x4] sm:$0xf]
        %v1432 = vld [vmem:[%s1429 + $0x8] sm:$0xf]
        %v1433 = vld [vmem:[%s1429 + $0xc] sm:$0xf]
        %v1434 = vld [vmem:[%s1429 + $0x10] sm:$0xf]
        %v1435 = vld [vmem:[%s1429 + $0x14] sm:$0xf]
        %v1436 = vld [vmem:[%s1429 + $0x18] sm:$0xf]
        %v1437 = vld [vmem:[%s1429 + $0x1c] sm:$0xf]
        %v1438 = vld [vmem:[%s1429 + $0x20] sm:$0xf]
        %v1439 = vld [vmem:[%s1429 + $0x24] sm:$0xf]
        %v1440 = vld [vmem:[%s1429 + $0x28] sm:$0xf]
        %v1441 = vld [vmem:[%s1429 + $0x2c] sm:$0xf]
        %v1442 = vld [vmem:[%s1429 + $0x30] sm:$0xf]
        %v1443 = vld [vmem:[%s1429 + $0x34] sm:$0xf]
        %v1444 = vld [vmem:[%s1429 + $0x38] sm:$0xf]
        %v1445 = vld [vmem:[%s1429 + $0x3c] sm:$0xf]
        %v1462 = vunpack.c.l.b16 %v1430
        %v1463 = vunpack.c.l.b16 %v1431
        %v1464 = vunpack.c.l.b16 %v1432
        %v1465 = vunpack.c.l.b16 %v1433
        %v1466 = vunpack.c.l.b16 %v1434
        %v1467 = vunpack.c.l.b16 %v1435
        %v1468 = vunpack.c.l.b16 %v1436
        %v1469 = vunpack.c.l.b16 %v1437
        %v1470 = vunpack.c.l.b16 %v1438
        %v1471 = vunpack.c.l.b16 %v1439
        %v1472 = vunpack.c.l.b16 %v1440
        %v1473 = vunpack.c.l.b16 %v1441
        %v1474 = vunpack.c.l.b16 %v1442
        %v1475 = vunpack.c.l.b16 %v1443
        %v1476 = vunpack.c.l.b16 %v1444
        %v1477 = vunpack.c.l.b16 %v1445
        %v1478 = vpack.c.b16 %v1463, %v1462
        %v1479 = vpack.c.b16 %v1465, %v1464
        %v1480 = vpack.c.b16 %v1467, %v1466
        %v1481 = vpack.c.b16 %v1469, %v1468
        %v1482 = vpack.c.b16 %v1471, %v1470
        %v1483 = vpack.c.b16 %v1473, %v1472
        %v1484 = vpack.c.b16 %v1475, %v1474
        %v1485 = vpack.c.b16 %v1477, %v1476
        %1494 = vmatprep.subr.bf16.mxu0 0
        %1495 = vmatpush1.bf16.msra.mxu0 %v1478
        %1496 = vmatprep.subr.bf16.mxu0 0
        %1497 = vmatpush1.bf16.msra.mxu0 %v1479
        %1498 = vmatprep.subr.bf16.mxu0 0
        %1499 = vmatpush1.bf16.msra.mxu0 %v1480
        %1500 = vmatprep.subr.bf16.mxu0 0
        %1501 = vmatpush1.bf16.msra.mxu0 %v1481
        %1502 = vmatprep.subr.bf16.mxu0 0
        %1503 = vmatpush1.bf16.msra.mxu0 %v1482
        %1504 = vmatprep.subr.bf16.mxu0 0
        %1505 = vmatpush1.bf16.msra.mxu0 %v1483
        %1506 = vmatprep.subr.bf16.mxu0 0
        %1507 = vmatpush1.bf16.msra.mxu0 %v1484
        %1508 = vmatprep.subr.bf16.mxu0 0
        %1509 = vmatpush1.bf16.msra.mxu0 %v1485
        %1510 = vmatprep.subr.bf16.mxu0 0
        %1511 = vmatpush1.bf16.msra.mxu0 0
        %1512 = vmatprep.subr.bf16.mxu0 0
        %1513 = vmatpush1.bf16.msra.mxu0 0
        %1514 = vmatprep.subr.bf16.mxu0 0
        %1515 = vmatpush1.bf16.msra.mxu0 0
        %1516 = vmatprep.subr.bf16.mxu0 0
        %1517 = vmatpush1.bf16.msra.mxu0 0
        %1518 = vmatprep.subr.bf16.mxu0 0
        %1519 = vmatpush1.bf16.msra.mxu0 0
        %1520 = vmatprep.subr.bf16.mxu0 0
        %1521 = vmatpush1.bf16.msra.mxu0 0
        %1522 = vmatprep.subr.bf16.mxu0 0
        %1523 = vmatpush1.bf16.msra.mxu0 0
        %1524 = vmatprep.subr.bf16.mxu0 0
        %1525 = vmatpush1.bf16.msra.mxu0 0
        %1526 = vmatprep.mubr.bf16.mxu0 0
        %1527 = vmatmul.mubr.bf16.gmra.mrb[0].mxu0 %v1428
        %v1528 = vpop.f32.mrb[0].mxu0
        %v1529 = vadd.f32 0.0, %v1528
        %v1530 = vpop.f32.mrb[0].mxu0
        %v1531 = vpop.f32.mrb[0].mxu0
        %v1532 = vadd.f32 0.0, %v1531
        %v1533 = vpop.f32.mrb[0].mxu0
        %1534 = vdwg.mxu0
        %v1535 = vadd.f32 %v1422, %v1529
        %v1536 = vadd.f32 %v1423, %v1532
        %v1537 = vld [vmem:[%s4] sm:$0x1]
        %v1539 = vlaneseq
        %v1540 = vshrl.u32 %v1539, 7
        %v1541 = vsub.s32 0, %v1540
        %v1542 = vrot.slane %v1537, %v1541
        %v1544 = vadd.f32 %v1535, %v1542
        %v1545 = vadd.f32 %v1536, %v1542
        %v1546 = vmax.f32 %v1544, 0.0
        %v1547 = vmax.f32 %v1545, 0.0
        %v1548 = vpack.c.bf16 %v1547, %v1546
        %v1549 = vld [vmem:[%s5] sm:$0xf]
        %v1550 = vld [vmem:[%s5 + $0x4] sm:$0xf]
        %v1551 = vld [vmem:[%s5 + $0x8] sm:$0xf]
        %v1552 = vld [vmem:[%s5 + $0xc] sm:$0xf]
        %v1553 = vld [vmem:[%s5 + $0x10] sm:$0xf]
        %v1554 = vld [vmem:[%s5 + $0x14] sm:$0xf]
        %v1555 = vld [vmem:[%s5 + $0x18] sm:$0xf]
        %v1556 = vld [vmem:[%s5 + $0x1c] sm:$0xf]
        %v1557 = vld [vmem:[%s5 + $0x20] sm:$0xf]
        %v1558 = vld [vmem:[%s5 + $0x24] sm:$0xf]
        %v1559 = vld [vmem:[%s5 + $0x28] sm:$0xf]
        %v1560 = vld [vmem:[%s5 + $0x2c] sm:$0xf]
        %v1561 = vld [vmem:[%s5 + $0x30] sm:$0xf]
        %v1562 = vld [vmem:[%s5 + $0x34] sm:$0xf]
        %v1563 = vld [vmem:[%s5 + $0x38] sm:$0xf]
        %v1564 = vld [vmem:[%s5 + $0x3c] sm:$0xf]
        %v1565 = vld [vmem:[%s6] sm:$0x1]
        %v1567 = vlaneseq
        %v1568 = vshrl.u32 %v1567, 7
        %v1569 = vsub.s32 0, %v1568
        %v1570 = vrot.slane %v1565, %v1569
        %v1588 = vunpack.c.l.b16 %v1549
        %v1589 = vunpack.c.l.b16 %v1550
        %v1590 = vunpack.c.l.b16 %v1551
        %v1591 = vunpack.c.l.b16 %v1552
        %v1592 = vunpack.c.l.b16 %v1553
        %v1593 = vunpack.c.l.b16 %v1554
        %v1594 = vunpack.c.l.b16 %v1555
        %v1595 = vunpack.c.l.b16 %v1556
        %v1596 = vunpack.c.l.b16 %v1557
        %v1597 = vunpack.c.l.b16 %v1558
        %v1598 = vunpack.c.l.b16 %v1559
        %v1599 = vunpack.c.l.b16 %v1560
        %v1600 = vunpack.c.l.b16 %v1561
        %v1601 = vunpack.c.l.b16 %v1562
        %v1602 = vunpack.c.l.b16 %v1563
        %v1603 = vunpack.c.l.b16 %v1564
        %v1604 = vpack.c.b16 %v1589, %v1588
        %v1605 = vpack.c.b16 %v1591, %v1590
        %v1606 = vpack.c.b16 %v1593, %v1592
        %v1607 = vpack.c.b16 %v1595, %v1594
        %v1608 = vpack.c.b16 %v1597, %v1596
        %v1609 = vpack.c.b16 %v1599, %v1598
        %v1610 = vpack.c.b16 %v1601, %v1600
        %v1611 = vpack.c.b16 %v1603, %v1602
        %1620 = vmatprep.subr.bf16.mxu0 0
        %1621 = vmatpush1.bf16.msra.mxu0 %v1604
        %1622 = vmatprep.subr.bf16.mxu0 0
        %1623 = vmatpush1.bf16.msra.mxu0 %v1605
        %1624 = vmatprep.subr.bf16.mxu0 0
        %1625 = vmatpush1.bf16.msra.mxu0 %v1606
        %1626 = vmatprep.subr.bf16.mxu0 0
        %1627 = vmatpush1.bf16.msra.mxu0 %v1607
        %1628 = vmatprep.subr.bf16.mxu0 0
        %1629 = vmatpush1.bf16.msra.mxu0 %v1608
        %1630 = vmatprep.subr.bf16.mxu0 0
        %1631 = vmatpush1.bf16.msra.mxu0 %v1609
        %1632 = vmatprep.subr.bf16.mxu0 0
        %1633 = vmatpush1.bf16.msra.mxu0 %v1610
        %1634 = vmatprep.subr.bf16.mxu0 0
        %1635 = vmatpush1.bf16.msra.mxu0 %v1611
        %1636 = vmatprep.subr.bf16.mxu0 0
        %1637 = vmatpush1.bf16.msra.mxu0 0
        %1638 = vmatprep.subr.bf16.mxu0 0
        %1639 = vmatpush1.bf16.msra.mxu0 0
        %1640 = vmatprep.subr.bf16.mxu0 0
        %1641 = vmatpush1.bf16.msra.mxu0 0
        %1642 = vmatprep.subr.bf16.mxu0 0
        %1643 = vmatpush1.bf16.msra.mxu0 0
        %1644 = vmatprep.subr.bf16.mxu0 0
        %1645 = vmatpush1.bf16.msra.mxu0 0
        %1646 = vmatprep.subr.bf16.mxu0 0
        %1647 = vmatpush1.bf16.msra.mxu0 0
        %1648 = vmatprep.subr.bf16.mxu0 0
        %1649 = vmatpush1.bf16.msra.mxu0 0
        %1650 = vmatprep.subr.bf16.mxu0 0
        %1651 = vmatpush1.bf16.msra.mxu0 0
        %1652 = vmatprep.mubr.bf16.mxu0 0
        %1653 = vmatmul.mubr.bf16.gmra.mrb[0].mxu0 %v1548
        %v1654 = vpop.f32.mrb[0].mxu0
        %v1655 = vadd.f32 %v1570, %v1654
        %v1656 = vpop.f32.mrb[0].mxu0
        %v1657 = vpop.f32.mrb[0].mxu0
        %v1658 = vadd.f32 %v1570, %v1657
        %v1659 = vpop.f32.mrb[0].mxu0
        %1660 = vdwg.mxu0
        %v1661 = vadd.f32 %v1655, %v374
        %v1662 = vadd.f32 %v1658, %v375
        %v1663 = vmax.f32 %v1661, 0.0
        %v1664 = vmax.f32 %v1662, 0.0
        %v1665 = vpack.c.bf16 %v1664, %v1663
        %v1667 = vunpack.c.l.b16 %v1665
        %v1668 = vunpack.c.h.b16 %v1665
        %v1669 = vpack.c.b16 %v1667, %v1667
        %v1670 = vpack.c.b16 %v1668, %v1668
        %1673 = vst [vmem:[%s353] sm:$0xf] %v1669
        %1674 = vst [vmem:[%s353 + $0x4] sm:$0xf] %v1670
        %v1675 = vld [vmem:[%s7] sm:$0xf]
        %v1676 = vld [vmem:[%s7 + $0x4] sm:$0xf]
        %v1677 = vld [vmem:[%s7 + $0x8] sm:$0xf]
        %v1678 = vld [vmem:[%s7 + $0xc] sm:$0xf]
        %v1679 = vld [vmem:[%s7 + $0x10] sm:$0xf]
        %v1680 = vld [vmem:[%s7 + $0x14] sm:$0xf]
        %v1681 = vld [vmem:[%s7 + $0x18] sm:$0xf]
        %v1682 = vld [vmem:[%s7 + $0x1c] sm:$0xf]
        %v1683 = vld [vmem:[%s7 + $0x20] sm:$0xf]
        %v1684 = vld [vmem:[%s7 + $0x24] sm:$0xf]
        %v1685 = vld [vmem:[%s7 + $0x28] sm:$0xf]
        %v1686 = vld [vmem:[%s7 + $0x2c] sm:$0xf]
        %v1687 = vld [vmem:[%s7 + $0x30] sm:$0xf]
        %v1688 = vld [vmem:[%s7 + $0x34] sm:$0xf]
        %v1689 = vld [vmem:[%s7 + $0x38] sm:$0xf]
        %v1690 = vld [vmem:[%s7 + $0x3c] sm:$0xf]
        %v1691 = vld [vmem:[%s8] sm:$0x1]
        %v1693 = vlaneseq
        %v1694 = vshrl.u32 %v1693, 7
        %v1695 = vsub.s32 0, %v1694
        %v1696 = vrot.slane %v1691, %v1695
        %v1714 = vunpack.c.l.b16 %v1675
        %v1715 = vunpack.c.l.b16 %v1676
        %v1716 = vunpack.c.l.b16 %v1677
        %v1717 = vunpack.c.l.b16 %v1678
        %v1718 = vunpack.c.l.b16 %v1679
        %v1719 = vunpack.c.l.b16 %v1680
        %v1720 = vunpack.c.l.b16 %v1681
        %v1721 = vunpack.c.l.b16 %v1682
        %v1722 = vunpack.c.l.b16 %v1683
        %v1723 = vunpack.c.l.b16 %v1684
        %v1724 = vunpack.c.l.b16 %v1685
        %v1725 = vunpack.c.l.b16 %v1686
        %v1726 = vunpack.c.l.b16 %v1687
        %v1727 = vunpack.c.l.b16 %v1688
        %v1728 = vunpack.c.l.b16 %v1689
        %v1729 = vunpack.c.l.b16 %v1690
        %v1730 = vpack.c.b16 %v1715, %v1714
        %v1731 = vpack.c.b16 %v1717, %v1716
        %v1732 = vpack.c.b16 %v1719, %v1718
        %v1733 = vpack.c.b16 %v1721, %v1720
        %v1734 = vpack.c.b16 %v1723, %v1722
        %v1735 = vpack.c.b16 %v1725, %v1724
        %v1736 = vpack.c.b16 %v1727, %v1726
        %v1737 = vpack.c.b16 %v1729, %v1728
        %1746 = vmatprep.subr.bf16.mxu0 0
        %1747 = vmatpush1.bf16.msra.mxu0 %v1730
        %1748 = vmatprep.subr.bf16.mxu0 0
        %1749 = vmatpush1.bf16.msra.mxu0 %v1731
        %1750 = vmatprep.subr.bf16.mxu0 0
        %1751 = vmatpush1.bf16.msra.mxu0 %v1732
        %1752 = vmatprep.subr.bf16.mxu0 0
        %1753 = vmatpush1.bf16.msra.mxu0 %v1733
        %1754 = vmatprep.subr.bf16.mxu0 0
        %1755 = vmatpush1.bf16.msra.mxu0 %v1734
        %1756 = vmatprep.subr.bf16.mxu0 0
        %1757 = vmatpush1.bf16.msra.mxu0 %v1735
        %1758 = vmatprep.subr.bf16.mxu0 0
        %1759 = vmatpush1.bf16.msra.mxu0 %v1736
        %1760 = vmatprep.subr.bf16.mxu0 0
        %1761 = vmatpush1.bf16.msra.mxu0 %v1737
        %1762 = vmatprep.subr.bf16.mxu0 0
        %1763 = vmatpush1.bf16.msra.mxu0 0
        %1764 = vmatprep.subr.bf16.mxu0 0
        %1765 = vmatpush1.bf16.msra.mxu0 0
        %1766 = vmatprep.subr.bf16.mxu0 0
        %1767 = vmatpush1.bf16.msra.mxu0 0
        %1768 = vmatprep.subr.bf16.mxu0 0
        %1769 = vmatpush1.bf16.msra.mxu0 0
        %1770 = vmatprep.subr.bf16.mxu0 0
        %1771 = vmatpush1.bf16.msra.mxu0 0
        %1772 = vmatprep.subr.bf16.mxu0 0
        %1773 = vmatpush1.bf16.msra.mxu0 0
        %1774 = vmatprep.subr.bf16.mxu0 0
        %1775 = vmatpush1.bf16.msra.mxu0 0
        %1776 = vmatprep.subr.bf16.mxu0 0
        %1777 = vmatpush1.bf16.msra.mxu0 0
        %1778 = vmatprep.mubr.bf16.mxu0 0
        %1779 = vmatmul.mubr.bf16.gmra.mrb[0].mxu0 %v1665
        %v1780 = vpop.f32.mrb[0].mxu0
        %v1781 = vadd.f32 %v1696, %v1780
        %v1782 = vpop.f32.mrb[0].mxu0
        %v1783 = vpop.f32.mrb[0].mxu0
        %v1784 = vadd.f32 %v1696, %v1783
        %v1785 = vpop.f32.mrb[0].mxu0
        %1786 = vdwg.mxu0
        %v1787 = vmax.f32 %v1781, 0.0
        %v1788 = vmax.f32 %v1784, 0.0
        %v1789 = vpack.c.bf16 %v1788, %v1787
        %v1791 = vunpack.c.l.b16 %v1789
        %v1792 = vunpack.c.h.b16 %v1789
        %v1793 = vpack.c.b16 %v1791, %v1791
        %v1794 = vpack.c.b16 %v1792, %v1792
        %1797 = vst [vmem:[%s370] sm:$0xf] %v1793
        %1798 = vst [vmem:[%s370 + $0x4] sm:$0xf] %v1794
        %s1799 = sand.u32 %s227, 1
        %s1800 = scalar_lea.sflag [#allocation4], %s1799
        %s1801 = sand.u32 %s227, 1
        %s1802 = smul.addr %s1801, 8
        %s1803 = scalar_lea.vmem [#allocation3], %s1802
        %p1804 = scmp.lt.s32.totalorder %s25, 1
        %s1805 = scalar_select %p1804, %s25, 1
        %s1806 = smul.addr %s1805, 2
        %s1807 = smul.addr %s1806, 4
        %s1808 = scalar_lea.vmem %s10, %s1807
        // Predicated region
        $region57: #{depth_net_fwd.12} parent=55 // pred_check
          %p1809 = pneg %p237
        $region58: #{depth_net_fwd.12} parent=55 // pred_check_branch
          %1811 = sbr.rel (%p1809) target = $region60
        $region59: #{depth_net_fwd.12} parent=55 // pred_region
          %s1813 = ssub.s32 128, 128
          %1814 = vsyncadd %s1800, %s1813
          %s1815 = smul.addr %s25, 2
          %s1816 = smul.addr %s1815, 64
          %s1817 = scalar_lea.hbm %s9, %s1816
          %s1818 = sshll.u32 %s1803, 4
          %s1819 = int_to_ptr.vmem [resolvable:$true] %s1818
          %1824 = dma.vmem_to_hbm [thread:$0]  %s1819, 128, %s1817, %s1800, 64, 64, 4
        $region60: #{depth_net_fwd.12} parent=55 // pred_fallthru
          _
        // Predicated region
        $region61: #{depth_net_fwd.12} parent=55 // pred_check
          %p1825 = pneg %p263
        $region62: #{depth_net_fwd.12} parent=55 // pred_check_branch
          %1827 = sbr.rel (%p1825) target = $region64
        $region63: #{depth_net_fwd.12} parent=55 // pred_region
          _
        $region64: #{depth_net_fwd.12} parent=55 // pred_fallthru
          _
      $region56: #{depth_net_fwd.12} parent=5 // pred_fallthru
        _
      %p1828 = scmp.le.s32.totalorder 2, %s20
      // Predicated region
      $region65: #{depth_net_fwd.12} parent=5 // pred_check
        %p1829 = pneg %p1828
      $region66: #{depth_net_fwd.12} parent=5 // pred_check_branch
        %1831 = sbr.rel (%p1829) target = $region68
      $region67: #{depth_net_fwd.12} parent=5 // pred_region
        %s1832 = ssub.s32 %s20, 2
        // Predicated region
        $region69: #{depth_net_fwd.12} parent=67 // pred_check
          %p1833 = pneg %p243
        $region70: #{depth_net_fwd.12} parent=67 // pred_check_branch
          %1835 = sbr.rel (%p1833) target = $region72
        $region71: #{depth_net_fwd.12} parent=67 // pred_region
          %s1836 = sand.u32 %s228, 1
          %s1837 = scalar_lea.sflag [#allocation4], %s1836
          %s1838 = sand.u32 %s228, 1
          %s1839 = smul.addr %s1838, 8
          %s1840 = scalar_lea.vmem [#allocation3], %s1839
          %1841 = dma.done %s1837, 128
        $region72: #{depth_net_fwd.12} parent=67 // pred_fallthru
          _
        // Predicated region
        $region73: #{depth_net_fwd.12} parent=67 // pred_check
          %p1842 = pneg %p269
        $region74: #{depth_net_fwd.12} parent=67 // pred_check_branch
          %1844 = sbr.rel (%p1842) target = $region76
        $region75: #{depth_net_fwd.12} parent=67 // pred_region
          %p1845 = scmp.lt.s32.totalorder %s26, 1
          %s1846 = scalar_select %p1845, %s26, 1
          %s1847 = smul.addr %s1846, 2
          %s1848 = smul.addr %s1847, 4
          %s1849 = scalar_lea.vmem %s10, %s1848
        $region76: #{depth_net_fwd.12} parent=67 // pred_fallthru
          _
      $region68: #{depth_net_fwd.12} parent=5 // pred_fallthru
        _
    $region6: #{depth_net_fwd.12} parent=1 // loop_footer
      %s24 = sadd.s32 1, %s20
    $region7: #{depth_net_fwd.12} parent=1 // loop_footer_branch
      %19 = sbr.rel target = $region3
    $region8: #{depth_net_fwd.12} parent=1 // loop_exit
      _
    %1850 = vsyncpa [#allocation4], 1
    %s1851 = scalar_lea.sflag [#allocation4], 1
    %1852 = vsyncpa %s1851, 1

// kernel: depth_net_fwd.14
$region0: #{depth_net_fwd.14}
  #allocation0 [shape = 'u32[]', space=smem, size = 0x4, offset = 0x4, fixed_abs, tag = 'smem constant byte address 0x4 - core index']
  #allocation1 [shape = 'u32[144,128]{1,0:T(1,128)}', space=vmem, size = 0x12000, scoped, tag = 'internal scratch']
  %s0 = inlined_call_operand.vmem [shape: bf16[32,512], index: 0, kind: input, shape index: {}]
  %s1 = inlined_call_operand.vmem [shape: bf16[512,256], index: 1, kind: input, shape index: {}]
  %s2 = inlined_call_operand.vmem [shape: f32[1,256], index: 2, kind: input, shape index: {}]
  %s3 = inlined_call_operand.vmem [shape: bf16[32,256], index: 3, kind: output, shape index: {}]
  %s4 = sld [smem:[#allocation0]]
  $region22: #{depth_net_fwd.14} parent=0
    _
  %s6 = ssub.s32 1, %s4
  %s7 = scalar_select 0, %s6, %s4
  // Predicated region
  $region2: #{depth_net_fwd.14} parent=0 // pred_check
    _
  $region3: #{depth_net_fwd.14} parent=0 // pred_check_branch
    %9 = sbr.rel (0) target = $region5
  $region4: #{depth_net_fwd.14} parent=0 // pred_region
    _
  $region5: #{depth_net_fwd.14} parent=0 // pred_fallthru
    _
  // Predicated region
  $region6: #{depth_net_fwd.14} parent=0 // pred_check
    _
  $region7: #{depth_net_fwd.14} parent=0 // pred_check_branch
    %11 = sbr.rel (0) target = $region9
  $region8: #{depth_net_fwd.14} parent=0 // pred_region
    _
  $region9: #{depth_net_fwd.14} parent=0 // pred_fallthru
    _
  // Predicated region
  $region10: #{depth_net_fwd.14} parent=0 // pred_check
    _
  $region11: #{depth_net_fwd.14} parent=0 // pred_check_branch
    %13 = sbr.rel (0) target = $region13
  $region12: #{depth_net_fwd.14} parent=0 // pred_region
    _
  $region13: #{depth_net_fwd.14} parent=0 // pred_fallthru
    _
  %v14 = vld [vmem:[%s0] sm:$0xff]
  %v15 = vld [vmem:[%s0 + $0x8] sm:$0xff]
  %v16 = vld [vmem:[%s0 + $0x10] sm:$0xff]
  %v17 = vld [vmem:[%s0 + $0x18] sm:$0xff]
  %v18 = vld [vmem:[%s0 + $0x20] sm:$0xff]
  %v19 = vld [vmem:[%s0 + $0x28] sm:$0xff]
  %v20 = vld [vmem:[%s0 + $0x30] sm:$0xff]
  %v21 = vld [vmem:[%s0 + $0x38] sm:$0xff]
  %v22 = vld [vmem:[%s1] sm:$0xff]
  %v23 = vld [vmem:[%s1 + $0x8] sm:$0xff]
  %v24 = vld [vmem:[%s1 + $0x10] sm:$0xff]
  %v25 = vld [vmem:[%s1 + $0x18] sm:$0xff]
  %v26 = vld [vmem:[%s1 + $0x20] sm:$0xff]
  %v27 = vld [vmem:[%s1 + $0x28] sm:$0xff]
  %v28 = vld [vmem:[%s1 + $0x30] sm:$0xff]
  %v29 = vld [vmem:[%s1 + $0x38] sm:$0xff]
  %v30 = vld [vmem:[%s1 + $0x40] sm:$0xff]
  %v31 = vld [vmem:[%s1 + $0x48] sm:$0xff]
  %v32 = vld [vmem:[%s1 + $0x50] sm:$0xff]
  %v33 = vld [vmem:[%s1 + $0x58] sm:$0xff]
  %v34 = vld [vmem:[%s1 + $0x60] sm:$0xff]
  %v35 = vld [vmem:[%s1 + $0x68] sm:$0xff]
  %v36 = vld [vmem:[%s1 + $0x70] sm:$0xff]
  %v37 = vld [vmem:[%s1 + $0x78] sm:$0xff]
  %v38 = vld [vmem:[%s1 + $0x80] sm:$0xff]
  %v39 = vld [vmem:[%s1 + $0x88] sm:$0xff]
  %v40 = vld [vmem:[%s1 + $0x90] sm:$0xff]
  %v41 = vld [vmem:[%s1 + $0x98] sm:$0xff]
  %v42 = vld [vmem:[%s1 + $0xa0] sm:$0xff]
  %v43 = vld [vmem:[%s1 + $0xa8] sm:$0xff]
  %v44 = vld [vmem:[%s1 + $0xb0] sm:$0xff]
  %v45 = vld [vmem:[%s1 + $0xb8] sm:$0xff]
  %v46 = vld [vmem:[%s1 + $0xc0] sm:$0xff]
  %v47 = vld [vmem:[%s1 + $0xc8] sm:$0xff]
  %v48 = vld [vmem:[%s1 + $0xd0] sm:$0xff]
  %v49 = vld [vmem:[%s1 + $0xd8] sm:$0xff]
  %v50 = vld [vmem:[%s1 + $0xe0] sm:$0xff]
  %v51 = vld [vmem:[%s1 + $0xe8] sm:$0xff]
  %v52 = vld [vmem:[%s1 + $0xf0] sm:$0xff]
  %v53 = vld [vmem:[%s1 + $0xf8] sm:$0xff]
  %v54 = vld [vmem:[%s1 + $0x100] sm:$0xff]
  %v55 = vld [vmem:[%s1 + $0x108] sm:$0xff]
  %v56 = vld [vmem:[%s1 + $0x110] sm:$0xff]
  %v57 = vld [vmem:[%s1 + $0x118] sm:$0xff]
  %v58 = vld [vmem:[%s1 + $0x120] sm:$0xff]
  %v59 = vld [vmem:[%s1 + $0x128] sm:$0xff]
  %v60 = vld [vmem:[%s1 + $0x130] sm:$0xff]
  %v61 = vld [vmem:[%s1 + $0x138] sm:$0xff]
  %v62 = vld [vmem:[%s1 + $0x140] sm:$0xff]
  %v63 = vld [vmem:[%s1 + $0x148] sm:$0xff]
  %v64 = vld [vmem:[%s1 + $0x150] sm:$0xff]
  %v65 = vld [vmem:[%s1 + $0x158] sm:$0xff]
  %v66 = vld [vmem:[%s1 + $0x160] sm:$0xff]
  %v67 = vld [vmem:[%s1 + $0x168] sm:$0xff]
  %v68 = vld [vmem:[%s1 + $0x170] sm:$0xff]
  %v69 = vld [vmem:[%s1 + $0x178] sm:$0xff]
  %v70 = vld [vmem:[%s1 + $0x180] sm:$0xff]
  %v71 = vld [vmem:[%s1 + $0x188] sm:$0xff]
  %v72 = vld [vmem:[%s1 + $0x190] sm:$0xff]
  %v73 = vld [vmem:[%s1 + $0x198] sm:$0xff]
  %v74 = vld [vmem:[%s1 + $0x1a0] sm:$0xff]
  %v75 = vld [vmem:[%s1 + $0x1a8] sm:$0xff]
  %v76 = vld [vmem:[%s1 + $0x1b0] sm:$0xff]
  %v77 = vld [vmem:[%s1 + $0x1b8] sm:$0xff]
  %v78 = vld [vmem:[%s1 + $0x1c0] sm:$0xff]
  %v79 = vld [vmem:[%s1 + $0x1c8] sm:$0xff]
  %v80 = vld [vmem:[%s1 + $0x1d0] sm:$0xff]
  %v81 = vld [vmem:[%s1 + $0x1d8] sm:$0xff]
  %v82 = vld [vmem:[%s1 + $0x1e0] sm:$0xff]
  %v83 = vld [vmem:[%s1 + $0x1e8] sm:$0xff]
  %v84 = vld [vmem:[%s1 + $0x1f0] sm:$0xff]
  %v85 = vld [vmem:[%s1 + $0x1f8] sm:$0xff]
  %v86 = vld [vmem:[%s2] sm:$0x3]
  %v88 = vlaneseq
  %v89 = vshrl.u32 %v88, 7
  %v90 = vsub.s32 0, %v89
  %v91 = vrot.slane %v86, %v90
  %v92 = vlaneseq
  %v93 = vshrl.u32 %v92, 7
  %v94 = vsub.s32 1, %v93
  %v95 = vrot.slane %v86, %v94
  %v106 = vunpack.c.l.b16 %v14
  %v107 = vunpack.c.h.b16 %v14
  %v108 = vunpack.c.l.b16 %v15
  %v109 = vunpack.c.h.b16 %v15
  %v110 = vunpack.c.l.b16 %v16
  %v111 = vunpack.c.h.b16 %v16
  %v112 = vunpack.c.l.b16 %v17
  %v113 = vunpack.c.h.b16 %v17
  %v114 = vunpack.c.l.b16 %v18
  %v115 = vunpack.c.h.b16 %v18
  %v116 = vunpack.c.l.b16 %v19
  %v117 = vunpack.c.h.b16 %v19
  %v118 = vunpack.c.l.b16 %v20
  %v119 = vunpack.c.h.b16 %v20
  %v120 = vunpack.c.l.b16 %v21
  %v121 = vunpack.c.h.b16 %v21
  %v122 = vpack.c.b16 %v110, %v106
  %v123 = vpack.c.b16 %v111, %v107
  %v124 = vpack.c.b16 %v112, %v108
  %v125 = vpack.c.b16 %v113, %v109
  %v126 = vpack.c.b16 %v118, %v114
  %v127 = vpack.c.b16 %v119, %v115
  %v128 = vpack.c.b16 %v120, %v116
  %v129 = vpack.c.b16 %v121, %v117
  %v202 = vunpack.c.l.b16 %v22
  %v203 = vunpack.c.h.b16 %v22
  %v204 = vunpack.c.l.b16 %v23
  %v205 = vunpack.c.h.b16 %v23
  %v206 = vunpack.c.l.b16 %v24
  %v207 = vunpack.c.h.b16 %v24
  %v208 = vunpack.c.l.b16 %v25
  %v209 = vunpack.c.h.b16 %v25
  %v210 = vunpack.c.l.b16 %v26
  %v211 = vunpack.c.h.b16 %v26
  %v212 = vunpack.c.l.b16 %v27
  %v213 = vunpack.c.h.b16 %v27
  %v214 = vunpack.c.l.b16 %v28
  %v215 = vunpack.c.h.b16 %v28
  %v216 = vunpack.c.l.b16 %v29
  %v217 = vunpack.c.h.b16 %v29
  %v218 = vunpack.c.l.b16 %v30
  %v219 = vunpack.c.h.b16 %v30
  %v220 = vunpack.c.l.b16 %v31
  %v221 = vunpack.c.h.b16 %v31
  %v222 = vunpack.c.l.b16 %v32
  %v223 = vunpack.c.h.b16 %v32
  %v224 = vunpack.c.l.b16 %v33
  %v225 = vunpack.c.h.b16 %v33
  %v226 = vunpack.c.l.b16 %v34
  %v227 = vunpack.c.h.b16 %v34
  %v228 = vunpack.c.l.b16 %v35
  %v229 = vunpack.c.h.b16 %v35
  %v230 = vunpack.c.l.b16 %v36
  %v231 = vunpack.c.h.b16 %v36
  %v232 = vunpack.c.l.b16 %v37
  %v233 = vunpack.c.h.b16 %v37
  %v234 = vunpack.c.l.b16 %v38
  %v235 = vunpack.c.h.b16 %v38
  %v236 = vunpack.c.l.b16 %v39
  %v237 = vunpack.c.h.b16 %v39
  %v238 = vunpack.c.l.b16 %v40
  %v239 = vunpack.c.h.b16 %v40
  %v240 = vunpack.c.l.b16 %v41
  %v241 = vunpack.c.h.b16 %v41
  %v242 = vunpack.c.l.b16 %v42
  %v243 = vunpack.c.h.b16 %v42
  %v244 = vunpack.c.l.b16 %v43
  %v245 = vunpack.c.h.b16 %v43
  %v246 = vunpack.c.l.b16 %v44
  %v247 = vunpack.c.h.b16 %v44
  %v248 = vunpack.c.l.b16 %v45
  %v249 = vunpack.c.h.b16 %v45
  %v250 = vunpack.c.l.b16 %v46
  %v251 = vunpack.c.h.b16 %v46
  %v252 = vunpack.c.l.b16 %v47
  %v253 = vunpack.c.h.b16 %v47
  %v254 = vunpack.c.l.b16 %v48
  %v255 = vunpack.c.h.b16 %v48
  %v256 = vunpack.c.l.b16 %v49
  %v257 = vunpack.c.h.b16 %v49
  %v258 = vunpack.c.l.b16 %v50
  %v259 = vunpack.c.h.b16 %v50
  %v260 = vunpack.c.l.b16 %v51
  %v261 = vunpack.c.h.b16 %v51
  %v262 = vunpack.c.l.b16 %v52
  %v263 = vunpack.c.h.b16 %v52
  %v264 = vunpack.c.l.b16 %v53
  %v265 = vunpack.c.h.b16 %v53
  %v266 = vunpack.c.l.b16 %v54
  %v267 = vunpack.c.h.b16 %v54
  %v268 = vunpack.c.l.b16 %v55
  %v269 = vunpack.c.h.b16 %v55
  %v270 = vunpack.c.l.b16 %v56
  %v271 = vunpack.c.h.b16 %v56
  %v272 = vunpack.c.l.b16 %v57
  %v273 = vunpack.c.h.b16 %v57
  %v274 = vunpack.c.l.b16 %v58
  %v275 = vunpack.c.h.b16 %v58
  %v276 = vunpack.c.l.b16 %v59
  %v277 = vunpack.c.h.b16 %v59
  %v278 = vunpack.c.l.b16 %v60
  %v279 = vunpack.c.h.b16 %v60
  %v280 = vunpack.c.l.b16 %v61
  %v281 = vunpack.c.h.b16 %v61
  %v282 = vunpack.c.l.b16 %v62
  %v283 = vunpack.c.h.b16 %v62
  %v284 = vunpack.c.l.b16 %v63
  %v285 = vunpack.c.h.b16 %v63
  %v286 = vunpack.c.l.b16 %v64
  %v287 = vunpack.c.h.b16 %v64
  %v288 = vunpack.c.l.b16 %v65
  %v289 = vunpack.c.h.b16 %v65
  %v290 = vunpack.c.l.b16 %v66
  %v291 = vunpack.c.h.b16 %v66
  %v292 = vunpack.c.l.b16 %v67
  %v293 = vunpack.c.h.b16 %v67
  %v294 = vunpack.c.l.b16 %v68
  %v295 = vunpack.c.h.b16 %v68
  %v296 = vunpack.c.l.b16 %v69
  %v297 = vunpack.c.h.b16 %v69
  %v298 = vunpack.c.l.b16 %v70
  %v299 = vunpack.c.h.b16 %v70
  %v300 = vunpack.c.l.b16 %v71
  %v301 = vunpack.c.h.b16 %v71
  %v302 = vunpack.c.l.b16 %v72
  %v303 = vunpack.c.h.b16 %v72
  %v304 = vunpack.c.l.b16 %v73
  %v305 = vunpack.c.h.b16 %v73
  %v306 = vunpack.c.l.b16 %v74
  %v307 = vunpack.c.h.b16 %v74
  %v308 = vunpack.c.l.b16 %v75
  %v309 = vunpack.c.h.b16 %v75
  %v310 = vunpack.c.l.b16 %v76
  %v311 = vunpack.c.h.b16 %v76
  %v312 = vunpack.c.l.b16 %v77
  %v313 = vunpack.c.h.b16 %v77
  %v314 = vunpack.c.l.b16 %v78
  %v315 = vunpack.c.h.b16 %v78
  %v316 = vunpack.c.l.b16 %v79
  %v317 = vunpack.c.h.b16 %v79
  %v318 = vunpack.c.l.b16 %v80
  %v319 = vunpack.c.h.b16 %v80
  %v320 = vunpack.c.l.b16 %v81
  %v321 = vunpack.c.h.b16 %v81
  %v322 = vunpack.c.l.b16 %v82
  %v323 = vunpack.c.h.b16 %v82
  %v324 = vunpack.c.l.b16 %v83
  %v325 = vunpack.c.h.b16 %v83
  %v326 = vunpack.c.l.b16 %v84
  %v327 = vunpack.c.h.b16 %v84
  %v328 = vunpack.c.l.b16 %v85
  %v329 = vunpack.c.h.b16 %v85
  %v330 = vpack.c.b16 %v204, %v202
  %v331 = vpack.c.b16 %v205, %v203
  %v332 = vpack.c.b16 %v208, %v206
  %v333 = vpack.c.b16 %v209, %v207
  %v334 = vpack.c.b16 %v212, %v210
  %v335 = vpack.c.b16 %v213, %v211
  %v336 = vpack.c.b16 %v216, %v214
  %v337 = vpack.c.b16 %v217, %v215
  %v338 = vpack.c.b16 %v220, %v218
  %v339 = vpack.c.b16 %v221, %v219
  %v340 = vpack.c.b16 %v224, %v222
  %v341 = vpack.c.b16 %v225, %v223
  %v342 = vpack.c.b16 %v228, %v226
  %v343 = vpack.c.b16 %v229, %v227
  %v344 = vpack.c.b16 %v232, %v230
  %v345 = vpack.c.b16 %v233, %v231
  %v346 = vpack.c.b16 %v236, %v234
  %v347 = vpack.c.b16 %v237, %v235
  %v348 = vpack.c.b16 %v240, %v238
  %v349 = vpack.c.b16 %v241, %v239
  %v350 = vpack.c.b16 %v244, %v242
  %v351 = vpack.c.b16 %v245, %v243
  %v352 = vpack.c.b16 %v248, %v246
  %v353 = vpack.c.b16 %v249, %v247
  %v354 = vpack.c.b16 %v252, %v250
  %v355 = vpack.c.b16 %v253, %v251
  %v356 = vpack.c.b16 %v256, %v254
  %v357 = vpack.c.b16 %v257, %v255
  %v358 = vpack.c.b16 %v260, %v258
  %v359 = vpack.c.b16 %v261, %v259
  %v360 = vpack.c.b16 %v264, %v262
  %v361 = vpack.c.b16 %v265, %v263
  %v362 = vpack.c.b16 %v268, %v266
  %v363 = vpack.c.b16 %v269, %v267
  %v364 = vpack.c.b16 %v272, %v270
  %v365 = vpack.c.b16 %v273, %v271
  %v366 = vpack.c.b16 %v276, %v274
  %v367 = vpack.c.b16 %v277, %v275
  %v368 = vpack.c.b16 %v280, %v278
  %v369 = vpack.c.b16 %v281, %v279
  %v370 = vpack.c.b16 %v284, %v282
  %v371 = vpack.c.b16 %v285, %v283
  %v372 = vpack.c.b16 %v288, %v286
  %v373 = vpack.c.b16 %v289, %v287
  %v374 = vpack.c.b16 %v292, %v290
  %v375 = vpack.c.b16 %v293, %v291
  %v376 = vpack.c.b16 %v296, %v294
  %v377 = vpack.c.b16 %v297, %v295
  %v378 = vpack.c.b16 %v300, %v298
  %v379 = vpack.c.b16 %v301, %v299
  %v380 = vpack.c.b16 %v304, %v302
  %v381 = vpack.c.b16 %v305, %v303
  %v382 = vpack.c.b16 %v308, %v306
  %v383 = vpack.c.b16 %v309, %v307
  %v384 = vpack.c.b16 %v312, %v310
  %v385 = vpack.c.b16 %v313, %v311
  %v386 = vpack.c.b16 %v316, %v314
  %v387 = vpack.c.b16 %v317, %v315
  %v388 = vpack.c.b16 %v320, %v318
  %v389 = vpack.c.b16 %v321, %v319
  %v390 = vpack.c.b16 %v324, %v322
  %v391 = vpack.c.b16 %v325, %v323
  %v392 = vpack.c.b16 %v328, %v326
  %v393 = vpack.c.b16 %v329, %v327
  %458 = vmatprep.subr.bf16.mxu0 %v331
  %459 = vmatpush1.bf16.msra.mxu0 %v330
  %460 = vmatprep.subr.bf16.mxu0 %v333
  %461 = vmatpush1.bf16.msra.mxu0 %v332
  %462 = vmatprep.subr.bf16.mxu0 %v335
  %463 = vmatpush1.bf16.msra.mxu0 %v334
  %464 = vmatprep.subr.bf16.mxu0 %v337
  %465 = vmatpush1.bf16.msra.mxu0 %v336
  %466 = vmatprep.subr.bf16.mxu0 %v339
  %467 = vmatpush1.bf16.msra.mxu0 %v338
  %468 = vmatprep.subr.bf16.mxu0 %v341
  %469 = vmatpush1.bf16.msra.mxu0 %v340
  %470 = vmatprep.subr.bf16.mxu0 %v343
  %471 = vmatpush1.bf16.msra.mxu0 %v342
  %472 = vmatprep.subr.bf16.mxu0 %v345
  %473 = vmatpush1.bf16.msra.mxu0 %v344
  %474 = vmatprep.subr.bf16.mxu0 %v347
  %475 = vmatpush1.bf16.msra.mxu0 %v346
  %476 = vmatprep.subr.bf16.mxu0 %v349
  %477 = vmatpush1.bf16.msra.mxu0 %v348
  %478 = vmatprep.subr.bf16.mxu0 %v351
  %479 = vmatpush1.bf16.msra.mxu0 %v350
  %480 = vmatprep.subr.bf16.mxu0 %v353
  %481 = vmatpush1.bf16.msra.mxu0 %v352
  %482 = vmatprep.subr.bf16.mxu0 %v355
  %483 = vmatpush1.bf16.msra.mxu0 %v354
  %484 = vmatprep.subr.bf16.mxu0 %v357
  %485 = vmatpush1.bf16.msra.mxu0 %v356
  %486 = vmatprep.subr.bf16.mxu0 %v359
  %487 = vmatpush1.bf16.msra.mxu0 %v358
  %488 = vmatprep.subr.bf16.mxu0 %v361
  %489 = vmatpush1.bf16.msra.mxu0 %v360
  %490 = vmatprep.mubr.bf16.mxu0 %v123
  %491 = vmatmul.mubr.bf16.gmra.mrb[0].mxu0 %v122
  %v492 = vpop.f32.mrb[0].mxu0
  %v493 = vadd.f32 %v91, %v492
  %v494 = vpop.f32.mrb[0].mxu0
  %v495 = vadd.f32 %v95, %v494
  %v496 = vpop.f32.mrb[0].mxu0
  %v497 = vadd.f32 %v91, %v496
  %v498 = vpop.f32.mrb[0].mxu0
  %v499 = vadd.f32 %v95, %v498
  %500 = vmatprep.mubr.bf16.mxu0 %v127
  %501 = vmatmul.mubr.bf16.gmra.mrb[0].mxu0 %v126
  %v502 = vpop.f32.mrb[0].mxu0
  %v503 = vadd.f32 %v91, %v502
  %v504 = vpop.f32.mrb[0].mxu0
  %v505 = vadd.f32 %v95, %v504
  %v506 = vpop.f32.mrb[0].mxu0
  %v507 = vadd.f32 %v91, %v506
  %v508 = vpop.f32.mrb[0].mxu0
  %v509 = vadd.f32 %v95, %v508
  %510 = vdwg.mxu0
  %511 = vmatprep.subr.bf16.mxu0 %v363
  %512 = vmatpush1.bf16.msra.mxu0 %v362
  %513 = vmatprep.subr.bf16.mxu0 %v365
  %514 = vmatpush1.bf16.msra.mxu0 %v364
  %515 = vmatprep.subr.bf16.mxu0 %v367
  %516 = vmatpush1.bf16.msra.mxu0 %v366
  %517 = vmatprep.subr.bf16.mxu0 %v369
  %518 = vmatpush1.bf16.msra.mxu0 %v368
  %519 = vmatprep.subr.bf16.mxu0 %v371
  %520 = vmatpush1.bf16.msra.mxu0 %v370
  %521 = vmatprep.subr.bf16.mxu0 %v373
  %522 = vmatpush1.bf16.msra.mxu0 %v372
  %523 = vmatprep.subr.bf16.mxu0 %v375
  %524 = vmatpush1.bf16.msra.mxu0 %v374
  %525 = vmatprep.subr.bf16.mxu0 %v377
  %526 = vmatpush1.bf16.msra.mxu0 %v376
  %527 = vmatprep.subr.bf16.mxu0 %v379
  %528 = vmatpush1.bf16.msra.mxu0 %v378
  %529 = vmatprep.subr.bf16.mxu0 %v381
  %530 = vmatpush1.bf16.msra.mxu0 %v380
  %531 = vmatprep.subr.bf16.mxu0 %v383
  %532 = vmatpush1.bf16.msra.mxu0 %v382
  %533 = vmatprep.subr.bf16.mxu0 %v385
  %534 = vmatpush1.bf16.msra.mxu0 %v384
  %535 = vmatprep.subr.bf16.mxu0 %v387
  %536 = vmatpush1.bf16.msra.mxu0 %v386
  %537 = vmatprep.subr.bf16.mxu0 %v389
  %538 = vmatpush1.bf16.msra.mxu0 %v388
  %539 = vmatprep.subr.bf16.mxu0 %v391
  %540 = vmatpush1.bf16.msra.mxu0 %v390
  %541 = vmatprep.subr.bf16.mxu0 %v393
  %542 = vmatpush1.bf16.msra.mxu0 %v392
  %543 = vmatprep.mubr.bf16.mxu0 %v125
  %544 = vmatmul.mubr.bf16.gmra.mrb[0].mxu0 %v124
  %v545 = vpop.f32.mrb[0].mxu0
  %v546 = vadd.f32 %v493, %v545
  %v547 = vpop.f32.mrb[0].mxu0
  %v548 = vadd.f32 %v495, %v547
  %v549 = vpop.f32.mrb[0].mxu0
  %v550 = vadd.f32 %v497, %v549
  %v551 = vpop.f32.mrb[0].mxu0
  %v552 = vadd.f32 %v499, %v551
  %553 = vmatprep.mubr.bf16.mxu0 %v129
  %554 = vmatmul.mubr.bf16.gmra.mrb[0].mxu0 %v128
  %v555 = vpop.f32.mrb[0].mxu0
  %v556 = vadd.f32 %v503, %v555
  %v557 = vpop.f32.mrb[0].mxu0
  %v558 = vadd.f32 %v505, %v557
  %v559 = vpop.f32.mrb[0].mxu0
  %v560 = vadd.f32 %v507, %v559
  %v561 = vpop.f32.mrb[0].mxu0
  %v562 = vadd.f32 %v509, %v561
  %563 = vdwg.mxu0
  %v564 = vmax.f32 %v546, 0.0
  %v565 = vmax.f32 %v548, 0.0
  %v566 = vmax.f32 %v550, 0.0
  %v567 = vmax.f32 %v552, 0.0
  %v568 = vmax.f32 %v556, 0.0
  %v569 = vmax.f32 %v558, 0.0
  %v570 = vmax.f32 %v560, 0.0
  %v571 = vmax.f32 %v562, 0.0
  %v572 = vpack.c.bf16 %v566, %v564
  %v573 = vpack.c.bf16 %v567, %v565
  %v574 = vpack.c.bf16 %v570, %v568
  %v575 = vpack.c.bf16 %v571, %v569
  %v580 = vunpack.c.l.b16 %v572
  %v581 = vunpack.c.l.b16 %v573
  %v582 = vunpack.c.h.b16 %v572
  %v583 = vunpack.c.h.b16 %v573
  %v584 = vunpack.c.l.b16 %v574
  %v585 = vunpack.c.l.b16 %v575
  %v586 = vunpack.c.h.b16 %v574
  %v587 = vunpack.c.h.b16 %v575
  %v588 = vpack.c.b16 %v581, %v580
  %v589 = vpack.c.b16 %v583, %v582
  %v590 = vpack.c.b16 %v585, %v584
  %v591 = vpack.c.b16 %v587, %v586
  %596 = vst [vmem:[%s3] sm:$0xff] %v588
  %597 = vst [vmem:[%s3 + $0x8] sm:$0xff] %v589
  %598 = vst [vmem:[%s3 + $0x10] sm:$0xff] %v590
  %599 = vst [vmem:[%s3 + $0x18] sm:$0xff] %v591
  // Predicated region
  $region14: #{depth_net_fwd.14} parent=0 // pred_check
    _
  $region15: #{depth_net_fwd.14} parent=0 // pred_check_branch
    %601 = sbr.rel (0) target = $region17
  $region16: #{depth_net_fwd.14} parent=0 // pred_region
    _
  $region17: #{depth_net_fwd.14} parent=0 // pred_fallthru
    _
  // Predicated region
  $region18: #{depth_net_fwd.14} parent=0 // pred_check
    _
  $region19: #{depth_net_fwd.14} parent=0 // pred_check_branch
    %603 = sbr.rel (0) target = $region21
  $region20: #{depth_net_fwd.14} parent=0 // pred_region
    _
  $region21: #{depth_net_fwd.14} parent=0 // pred_fallthru
    _

// kernel: depth_net_fwd.15
$region0: #{depth_net_fwd.15}
  #allocation0 [shape = 'u32[]', space=smem, size = 0x4, offset = 0x4, fixed_abs, tag = 'smem constant byte address 0x4 - core index']
  #allocation1 [shape = 'u32[144,128]{1,0:T(1,128)}', space=vmem, size = 0x12000, scoped, tag = 'internal scratch']
  %s0 = inlined_call_operand.vmem [shape: bf16[128,256], index: 0, kind: input, shape index: {}]
  %s1 = inlined_call_operand.vmem [shape: bf16[256,128], index: 1, kind: input, shape index: {}]
  %s2 = inlined_call_operand.vmem [shape: f32[1,128], index: 2, kind: input, shape index: {}]
  %s3 = inlined_call_operand.vmem [shape: f32[128,128], index: 3, kind: output, shape index: {}]
  %s4 = sld [smem:[#allocation0]]
  $region22: #{depth_net_fwd.15} parent=0
    _
  %s6 = ssub.s32 1, %s4
  %s7 = scalar_select 0, %s6, %s4
  // Predicated region
  $region2: #{depth_net_fwd.15} parent=0 // pred_check
    _
  $region3: #{depth_net_fwd.15} parent=0 // pred_check_branch
    %9 = sbr.rel (0) target = $region5
  $region4: #{depth_net_fwd.15} parent=0 // pred_region
    _
  $region5: #{depth_net_fwd.15} parent=0 // pred_fallthru
    _
  // Predicated region
  $region6: #{depth_net_fwd.15} parent=0 // pred_check
    _
  $region7: #{depth_net_fwd.15} parent=0 // pred_check_branch
    %11 = sbr.rel (0) target = $region9
  $region8: #{depth_net_fwd.15} parent=0 // pred_region
    _
  $region9: #{depth_net_fwd.15} parent=0 // pred_fallthru
    _
  // Predicated region
  $region10: #{depth_net_fwd.15} parent=0 // pred_check
    _
  $region11: #{depth_net_fwd.15} parent=0 // pred_check_branch
    %13 = sbr.rel (0) target = $region13
  $region12: #{depth_net_fwd.15} parent=0 // pred_region
    _
  $region13: #{depth_net_fwd.15} parent=0 // pred_fallthru
    _
  %v15 = vld [vmem:[%s0] sm:$0xff]
  %v16 = vld [vmem:[%s0 + $0x8] sm:$0xff]
  %v17 = vld [vmem:[%s0 + $0x10] sm:$0xff]
  %v18 = vld [vmem:[%s0 + $0x18] sm:$0xff]
  %v19 = vld [vmem:[%s0 + $0x20] sm:$0xff]
  %v20 = vld [vmem:[%s0 + $0x28] sm:$0xff]
  %v21 = vld [vmem:[%s0 + $0x30] sm:$0xff]
  %v22 = vld [vmem:[%s0 + $0x38] sm:$0xff]
  %v23 = vld [vmem:[%s0 + $0x40] sm:$0xff]
  %v24 = vld [vmem:[%s0 + $0x48] sm:$0xff]
  %v25 = vld [vmem:[%s0 + $0x50] sm:$0xff]
  %v26 = vld [vmem:[%s0 + $0x58] sm:$0xff]
  %v27 = vld [vmem:[%s0 + $0x60] sm:$0xff]
  %v28 = vld [vmem:[%s0 + $0x68] sm:$0xff]
  %v29 = vld [vmem:[%s0 + $0x70] sm:$0xff]
  %v30 = vld [vmem:[%s0 + $0x78] sm:$0xff]
  %v31 = vld [vmem:[%s1] sm:$0xf]
  %v32 = vld [vmem:[%s1 + $0x4] sm:$0xf]
  %v33 = vld [vmem:[%s1 + $0x8] sm:$0xf]
  %v34 = vld [vmem:[%s1 + $0xc] sm:$0xf]
  %v35 = vld [vmem:[%s1 + $0x10] sm:$0xf]
  %v36 = vld [vmem:[%s1 + $0x14] sm:$0xf]
  %v37 = vld [vmem:[%s1 + $0x18] sm:$0xf]
  %v38 = vld [vmem:[%s1 + $0x1c] sm:$0xf]
  %v39 = vld [vmem:[%s1 + $0x20] sm:$0xf]
  %v40 = vld [vmem:[%s1 + $0x24] sm:$0xf]
  %v41 = vld [vmem:[%s1 + $0x28] sm:$0xf]
  %v42 = vld [vmem:[%s1 + $0x2c] sm:$0xf]
  %v43 = vld [vmem:[%s1 + $0x30] sm:$0xf]
  %v44 = vld [vmem:[%s1 + $0x34] sm:$0xf]
  %v45 = vld [vmem:[%s1 + $0x38] sm:$0xf]
  %v46 = vld [vmem:[%s1 + $0x3c] sm:$0xf]
  %v47 = vld [vmem:[%s1 + $0x40] sm:$0xf]
  %v48 = vld [vmem:[%s1 + $0x44] sm:$0xf]
  %v49 = vld [vmem:[%s1 + $0x48] sm:$0xf]
  %v50 = vld [vmem:[%s1 + $0x4c] sm:$0xf]
  %v51 = vld [vmem:[%s1 + $0x50] sm:$0xf]
  %v52 = vld [vmem:[%s1 + $0x54] sm:$0xf]
  %v53 = vld [vmem:[%s1 + $0x58] sm:$0xf]
  %v54 = vld [vmem:[%s1 + $0x5c] sm:$0xf]
  %v55 = vld [vmem:[%s1 + $0x60] sm:$0xf]
  %v56 = vld [vmem:[%s1 + $0x64] sm:$0xf]
  %v57 = vld [vmem:[%s1 + $0x68] sm:$0xf]
  %v58 = vld [vmem:[%s1 + $0x6c] sm:$0xf]
  %v59 = vld [vmem:[%s1 + $0x70] sm:$0xf]
  %v60 = vld [vmem:[%s1 + $0x74] sm:$0xf]
  %v61 = vld [vmem:[%s1 + $0x78] sm:$0xf]
  %v62 = vld [vmem:[%s1 + $0x7c] sm:$0xf]
  %v63 = vld [vmem:[%s2] sm:$0x1]
  %v65 = vlaneseq
  %v66 = vshrl.u32 %v65, 7
  %v67 = vsub.s32 0, %v66
  %v68 = vrot.slane %v63, %v67
  %v86 = vunpack.c.l.b16 %v15
  %v87 = vunpack.c.h.b16 %v15
  %v88 = vunpack.c.l.b16 %v16
  %v89 = vunpack.c.h.b16 %v16
  %v90 = vunpack.c.l.b16 %v17
  %v91 = vunpack.c.h.b16 %v17
  %v92 = vunpack.c.l.b16 %v18
  %v93 = vunpack.c.h.b16 %v18
  %v94 = vunpack.c.l.b16 %v19
  %v95 = vunpack.c.h.b16 %v19
  %v96 = vunpack.c.l.b16 %v20
  %v97 = vunpack.c.h.b16 %v20
  %v98 = vunpack.c.l.b16 %v21
  %v99 = vunpack.c.h.b16 %v21
  %v100 = vunpack.c.l.b16 %v22
  %v101 = vunpack.c.h.b16 %v22
  %v102 = vunpack.c.l.b16 %v23
  %v103 = vunpack.c.h.b16 %v23
  %v104 = vunpack.c.l.b16 %v24
  %v105 = vunpack.c.h.b16 %v24
  %v106 = vunpack.c.l.b16 %v25
  %v107 = vunpack.c.h.b16 %v25
  %v108 = vunpack.c.l.b16 %v26
  %v109 = vunpack.c.h.b16 %v26
  %v110 = vunpack.c.l.b16 %v27
  %v111 = vunpack.c.h.b16 %v27
  %v112 = vunpack.c.l.b16 %v28
  %v113 = vunpack.c.h.b16 %v28
  %v114 = vunpack.c.l.b16 %v29
  %v115 = vunpack.c.h.b16 %v29
  %v116 = vunpack.c.l.b16 %v30
  %v117 = vunpack.c.h.b16 %v30
  %v118 = vpack.c.b16 %v88, %v86
  %v119 = vpack.c.b16 %v89, %v87
  %v120 = vpack.c.b16 %v92, %v90
  %v121 = vpack.c.b16 %v93, %v91
  %v122 = vpack.c.b16 %v96, %v94
  %v123 = vpack.c.b16 %v97, %v95
  %v124 = vpack.c.b16 %v100, %v98
  %v125 = vpack.c.b16 %v101, %v99
  %v126 = vpack.c.b16 %v104, %v102
  %v127 = vpack.c.b16 %v105, %v103
  %v128 = vpack.c.b16 %v108, %v106
  %v129 = vpack.c.b16 %v109, %v107
  %v130 = vpack.c.b16 %v112, %v110
  %v131 = vpack.c.b16 %v113, %v111
  %v132 = vpack.c.b16 %v116, %v114
  %v133 = vpack.c.b16 %v117, %v115
  %v182 = vunpack.c.l.b16 %v31
  %v183 = vunpack.c.l.b16 %v32
  %v184 = vunpack.c.l.b16 %v33
  %v185 = vunpack.c.l.b16 %v34
  %v186 = vunpack.c.l.b16 %v35
  %v187 = vunpack.c.l.b16 %v36
  %v188 = vunpack.c.l.b16 %v37
  %v189 = vunpack.c.l.b16 %v38
  %v190 = vunpack.c.l.b16 %v39
  %v191 = vunpack.c.l.b16 %v40
  %v192 = vunpack.c.l.b16 %v41
  %v193 = vunpack.c.l.b16 %v42
  %v194 = vunpack.c.l.b16 %v43
  %v195 = vunpack.c.l.b16 %v44
  %v196 = vunpack.c.l.b16 %v45
  %v197 = vunpack.c.l.b16 %v46
  %v198 = vunpack.c.l.b16 %v47
  %v199 = vunpack.c.l.b16 %v48
  %v200 = vunpack.c.l.b16 %v49
  %v201 = vunpack.c.l.b16 %v50
  %v202 = vunpack.c.l.b16 %v51
  %v203 = vunpack.c.l.b16 %v52
  %v204 = vunpack.c.l.b16 %v53
  %v205 = vunpack.c.l.b16 %v54
  %v206 = vunpack.c.l.b16 %v55
  %v207 = vunpack.c.l.b16 %v56
  %v208 = vunpack.c.l.b16 %v57
  %v209 = vunpack.c.l.b16 %v58
  %v210 = vunpack.c.l.b16 %v59
  %v211 = vunpack.c.l.b16 %v60
  %v212 = vunpack.c.l.b16 %v61
  %v213 = vunpack.c.l.b16 %v62
  %v214 = vpack.c.b16 %v183, %v182
  %v215 = vpack.c.b16 %v185, %v184
  %v216 = vpack.c.b16 %v187, %v186
  %v217 = vpack.c.b16 %v189, %v188
  %v218 = vpack.c.b16 %v191, %v190
  %v219 = vpack.c.b16 %v193, %v192
  %v220 = vpack.c.b16 %v195, %v194
  %v221 = vpack.c.b16 %v197, %v196
  %v222 = vpack.c.b16 %v199, %v198
  %v223 = vpack.c.b16 %v201, %v200
  %v224 = vpack.c.b16 %v203, %v202
  %v225 = vpack.c.b16 %v205, %v204
  %v226 = vpack.c.b16 %v207, %v206
  %v227 = vpack.c.b16 %v209, %v208
  %v228 = vpack.c.b16 %v211, %v210
  %v229 = vpack.c.b16 %v213, %v212
  %246 = vmatprep.subr.bf16.mxu0 0
  %247 = vmatpush1.bf16.msra.mxu0 %v214
  %248 = vmatprep.subr.bf16.mxu0 0
  %249 = vmatpush1.bf16.msra.mxu0 %v215
  %250 = vmatprep.subr.bf16.mxu0 0
  %251 = vmatpush1.bf16.msra.mxu0 %v216
  %252 = vmatprep.subr.bf16.mxu0 0
  %253 = vmatpush1.bf16.msra.mxu0 %v217
  %254 = vmatprep.subr.bf16.mxu0 0
  %255 = vmatpush1.bf16.msra.mxu0 %v218
  %256 = vmatprep.subr.bf16.mxu0 0
  %257 = vmatpush1.bf16.msra.mxu0 %v219
  %258 = vmatprep.subr.bf16.mxu0 0
  %259 = vmatpush1.bf16.msra.mxu0 %v220
  %260 = vmatprep.subr.bf16.mxu0 0
  %261 = vmatpush1.bf16.msra.mxu0 %v221
  %262 = vmatprep.subr.bf16.mxu0 0
  %263 = vmatpush1.bf16.msra.mxu0 %v222
  %264 = vmatprep.subr.bf16.mxu0 0
  %265 = vmatpush1.bf16.msra.mxu0 %v223
  %266 = vmatprep.subr.bf16.mxu0 0
  %267 = vmatpush1.bf16.msra.mxu0 %v224
  %268 = vmatprep.subr.bf16.mxu0 0
  %269 = vmatpush1.bf16.msra.mxu0 %v225
  %270 = vmatprep.subr.bf16.mxu0 0
  %271 = vmatpush1.bf16.msra.mxu0 %v226
  %272 = vmatprep.subr.bf16.mxu0 0
  %273 = vmatpush1.bf16.msra.mxu0 %v227
  %274 = vmatprep.subr.bf16.mxu0 0
  %275 = vmatpush1.bf16.msra.mxu0 %v228
  %276 = vmatprep.subr.bf16.mxu0 0
  %277 = vmatpush1.bf16.msra.mxu0 %v229
  %278 = vmatprep.mubr.bf16.mxu0 %v119
  %279 = vmatmul.mubr.bf16.gmra.mrb[0].mxu0 %v118
  %v280 = vpop.f32.mrb[0].mxu0
  %v281 = vadd.f32 %v68, %v280
  %v282 = vpop.f32.mrb[0].mxu0
  %v283 = vpop.f32.mrb[0].mxu0
  %v284 = vadd.f32 %v68, %v283
  %v285 = vpop.f32.mrb[0].mxu0
  %286 = vmatprep.mubr.bf16.mxu0 %v121
  %287 = vmatmul.mubr.bf16.gmra.mrb[0].mxu0 %v120
  %v288 = vpop.f32.mrb[0].mxu0
  %v289 = vadd.f32 %v68, %v288
  %v290 = vpop.f32.mrb[0].mxu0
  %v291 = vpop.f32.mrb[0].mxu0
  %v292 = vadd.f32 %v68, %v291
  %v293 = vpop.f32.mrb[0].mxu0
  %294 = vmatprep.mubr.bf16.mxu0 %v123
  %295 = vmatmul.mubr.bf16.gmra.mrb[0].mxu0 %v122
  %v296 = vpop.f32.mrb[0].mxu0
  %v297 = vadd.f32 %v68, %v296
  %v298 = vpop.f32.mrb[0].mxu0
  %v299 = vpop.f32.mrb[0].mxu0
  %v300 = vadd.f32 %v68, %v299
  %v301 = vpop.f32.mrb[0].mxu0
  %302 = vmatprep.mubr.bf16.mxu0 %v125
  %303 = vmatmul.mubr.bf16.gmra.mrb[0].mxu0 %v124
  %v304 = vpop.f32.mrb[0].mxu0
  %v305 = vadd.f32 %v68, %v304
  %v306 = vpop.f32.mrb[0].mxu0
  %v307 = vpop.f32.mrb[0].mxu0
  %v308 = vadd.f32 %v68, %v307
  %v309 = vpop.f32.mrb[0].mxu0
  %310 = vmatprep.mubr.bf16.mxu0 %v127
  %311 = vmatmul.mubr.bf16.gmra.mrb[0].mxu0 %v126
  %v312 = vpop.f32.mrb[0].mxu0
  %v313 = vadd.f32 %v68, %v312
  %v314 = vpop.f32.mrb[0].mxu0
  %v315 = vpop.f32.mrb[0].mxu0
  %v316 = vadd.f32 %v68, %v315
  %v317 = vpop.f32.mrb[0].mxu0
  %318 = vmatprep.mubr.bf16.mxu0 %v129
  %319 = vmatmul.mubr.bf16.gmra.mrb[0].mxu0 %v128
  %v320 = vpop.f32.mrb[0].mxu0
  %v321 = vadd.f32 %v68, %v320
  %v322 = vpop.f32.mrb[0].mxu0
  %v323 = vpop.f32.mrb[0].mxu0
  %v324 = vadd.f32 %v68, %v323
  %v325 = vpop.f32.mrb[0].mxu0
  %326 = vmatprep.mubr.bf16.mxu0 %v131
  %327 = vmatmul.mubr.bf16.gmra.mrb[0].mxu0 %v130
  %v328 = vpop.f32.mrb[0].mxu0
  %v329 = vadd.f32 %v68, %v328
  %v330 = vpop.f32.mrb[0].mxu0
  %v331 = vpop.f32.mrb[0].mxu0
  %v332 = vadd.f32 %v68, %v331
  %v333 = vpop.f32.mrb[0].mxu0
  %334 = vmatprep.mubr.bf16.mxu0 %v133
  %335 = vmatmul.mubr.bf16.gmra.mrb[0].mxu0 %v132
  %v336 = vpop.f32.mrb[0].mxu0
  %v337 = vadd.f32 %v68, %v336
  %v338 = vpop.f32.mrb[0].mxu0
  %v339 = vpop.f32.mrb[0].mxu0
  %v340 = vadd.f32 %v68, %v339
  %v341 = vpop.f32.mrb[0].mxu0
  %342 = vdwg.mxu0
  %343 = vst [vmem:[%s3] sm:$0xff] %v281
  %344 = vst [vmem:[%s3 + $0x8] sm:$0xff] %v284
  %345 = vst [vmem:[%s3 + $0x10] sm:$0xff] %v289
  %346 = vst [vmem:[%s3 + $0x18] sm:$0xff] %v292
  %347 = vst [vmem:[%s3 + $0x20] sm:$0xff] %v297
  %348 = vst [vmem:[%s3 + $0x28] sm:$0xff] %v300
  %349 = vst [vmem:[%s3 + $0x30] sm:$0xff] %v305
  %350 = vst [vmem:[%s3 + $0x38] sm:$0xff] %v308
  %351 = vst [vmem:[%s3 + $0x40] sm:$0xff] %v313
  %352 = vst [vmem:[%s3 + $0x48] sm:$0xff] %v316
  %353 = vst [vmem:[%s3 + $0x50] sm:$0xff] %v321
  %354 = vst [vmem:[%s3 + $0x58] sm:$0xff] %v324
  %355 = vst [vmem:[%s3 + $0x60] sm:$0xff] %v329
  %356 = vst [vmem:[%s3 + $0x68] sm:$0xff] %v332
  %357 = vst [vmem:[%s3 + $0x70] sm:$0xff] %v337
  %358 = vst [vmem:[%s3 + $0x78] sm:$0xff] %v340
  // Predicated region
  $region14: #{depth_net_fwd.15} parent=0 // pred_check
    _
  $region15: #{depth_net_fwd.15} parent=0 // pred_check_branch
    %360 = sbr.rel (0) target = $region17
  $region16: #{depth_net_fwd.15} parent=0 // pred_region
    _
  $region17: #{depth_net_fwd.15} parent=0 // pred_fallthru
    _
  // Predicated region
  $region18: #{depth_net_fwd.15} parent=0 // pred_check
    _
  $region19: #{depth_net_fwd.15} parent=0 // pred_check_branch
    %362 = sbr.rel (0) target = $region21
  $region20: #{depth_net_fwd.15} parent=0 // pred_region
    _
  $region21: #{depth_net_fwd.15} parent=0 // pred_fallthru
    _

</llo_original>
